<compile_context>
chip_gen: v5e
topology: v5e:2x2
jax: 0.10.0
libtpu: 0.0.40
codegen_flags: <defaults>
</compile_context>

<pallas_src>
import jax
import jax.numpy as jnp
import numpy as np
from jax.experimental import pallas as pl
from jax.experimental.pallas import tpu as pltpu


def _fire_kernel(x_ref, wsq_ref, bsq_ref, we1_ref, be1_ref, we3_ref, be3_ref,
                 out_ref, pad_ref):
    # x_ref:   (1, H, W, Cin)          out_ref: (1, H, W, Ce1 + Ce3)
    # wsq_ref: (Cin, Csq)              bsq_ref: (1, Csq)
    # we1_ref: (Csq, Ce1)              be1_ref: (1, Ce1)
    # we3_ref: (3, 3*Csq, Ce3)         be3_ref: (1, Ce3)
    # pad_ref: (Npad, Csq) flat zero-padded squeeze activations, Npad >= (H+2)*(W+2)+2
    H, W, Cin = x_ref.shape[1], x_ref.shape[2], x_ref.shape[3]
    Csq = wsq_ref.shape[1]
    Ce1 = we1_ref.shape[1]
    Ce3 = we3_ref.shape[2]
    Wp = W + 2
    HW = H * W
    HWp = H * Wp
    Npad = pad_ref.shape[0]
    cdt = pad_ref.dtype  # activation dtype on the MXU path (== input dtype)

    # Re-zero only the padding border (top pad row + bottom pad rows / tail); the
    # interior rows are fully rewritten below. This tiny memset per step is safe
    # with "parallel" batch semantics (no cross-step state dependence).
    pad_ref[pl.ds(0, Wp), :] = jnp.zeros((Wp, Csq), cdt)
    tail = Npad - (Wp + HWp)
    pad_ref[pl.ds(Wp + HWp, tail), :] = jnp.zeros((tail, Csq), cdt)

    # Hoisted weight / bias loads (no loop re-emission of loads / broadcasts).
    wsq = wsq_ref[...]
    bsq = bsq_ref[...]
    we1 = we1_ref[...]
    be1 = be1_ref[...]
    be3 = be3_ref[...]

    # ---- squeeze 1x1 conv + ReLU : single matmul, M = H*W ----
    x_flat = x_ref[0].reshape(HW, Cin)                               # (H*W, Cin)
    s = jnp.maximum(
        jnp.dot(x_flat, wsq, preferred_element_type=jnp.float32) + bsq, 0.0)
    sa = s.astype(cdt)                                               # (H*W, Csq)

    # ---- expand1x1 conv + ReLU : single matmul ----
    e1 = jnp.maximum(
        jnp.dot(sa, we1, preferred_element_type=jnp.float32) + be1, 0.0)
    e1 = e1.reshape(H, W, Ce1)

    # ---- write column-padded squeeze activations into the flat scratch ----
    # One contiguous store of H*(W+2) rows, starting right after the top pad row.
    zcol = jnp.zeros((H, 1, Csq), cdt)
    s_cp = jnp.concatenate([zcol, sa.reshape(H, W, Csq), zcol], axis=1)  # (H, Wp, Csq)
    pad_ref[pl.ds(Wp, HWp), :] = s_cp.reshape(HWp, Csq)

    # ---- expand3x3 conv (padding=1) + ReLU ----
    # Fat output over width W+2; 3 matmuls (one per kernel row) with the 3 column
    # taps fused into the contraction dim: (H*Wp, 3*Csq) @ (3*Csq, Ce3).
    acc = jnp.zeros((HWp, Ce3), jnp.float32)
    for ky in range(3):
        base = ky * Wp
        win = jnp.concatenate(
            [pad_ref[pl.ds(base + 0, HWp), :],
             pad_ref[pl.ds(base + 1, HWp), :],
             pad_ref[pl.ds(base + 2, HWp), :]], axis=-1)             # (H*Wp, 3*Csq)
        acc = acc + jnp.dot(win, we3_ref[ky],
                            preferred_element_type=jnp.float32)
    e3 = jnp.maximum(acc + be3, 0.0)
    e3 = e3.reshape(H, Wp, Ce3)[:, :W, :]            # drop the 2 garbage columns

    # ---- assemble full output tile, single store ----
    out_ref[0] = jnp.concatenate(
        [e1.astype(out_ref.dtype), e3.astype(out_ref.dtype)], axis=-1)


def fire_forward(x_nchw, params):
    """Fire module forward. x_nchw: (N, Cin, H, W). Returns (N, Ce1+Ce3, H, W)."""
    wsq, bsq, we1, be1, we3, be3 = params   # PyTorch-shaped conv weights / biases
    N, Cin, H, W = x_nchw.shape
    Csq = wsq.shape[0]
    Ce1 = we1.shape[0]
    Ce3 = we3.shape[0]
    Cout = Ce1 + Ce3
    Wp = W + 2
    # Flat padded-scratch rows: (H+2)*(W+2) plus 2 extra so the fat-output garbage
    # columns never read out of bounds; rounded up to a sublane multiple.
    Npad = ((H + 2) * Wp + 2 + 7) // 8 * 8
    dt = x_nchw.dtype

    # NCHW -> NHWC (would be dropped in an NHWC pipeline).
    x = jnp.transpose(x_nchw, (0, 2, 3, 1))

    # Torch conv weights -> matmul form.
    wsq_k = jnp.transpose(wsq[:, :, 0, 0], (1, 0)).astype(dt)            # (Cin, Csq)
    we1_k = jnp.transpose(we1[:, :, 0, 0], (1, 0)).astype(dt)            # (Csq, Ce1)
    # (O, I, KH, KW) -> (KH, KW, I, O) -> (3, 3*Csq, Ce3); inner-K order is
    # [kx=0 chans | kx=1 chans | kx=2 chans], matching the in-kernel window concat.
    we3_k = jnp.transpose(we3, (2, 3, 1, 0)).reshape(3, 3 * Csq, Ce3).astype(dt)
    bsq_k = bsq.reshape(1, Csq).astype(jnp.float32)
    be1_k = be1.reshape(1, Ce1).astype(jnp.float32)
    be3_k = be3.reshape(1, Ce3).astype(jnp.float32)

    itemsize = jnp.dtype(dt).itemsize
    flops = 2 * N * H * W * (Cin * Csq + Csq * Ce1 + 9 * Csq * Ce3)
    bytes_accessed = (N * H * W * (Cin + Cout) * itemsize
                      + (wsq_k.size + we1_k.size + we3_k.size) * itemsize
                      + (bsq_k.size + be1_k.size + be3_k.size) * 4)

    out_nhwc = pl.pallas_call(
        _fire_kernel,
        out_shape=jax.ShapeDtypeStruct((N, H, W, Cout), dt),
        grid_spec=pltpu.PrefetchScalarGridSpec(
            num_scalar_prefetch=0,
            grid=(N,),
            in_specs=[
                pl.BlockSpec((1, H, W, Cin), lambda n: (n, 0, 0, 0)),
                pl.BlockSpec((Cin, Csq), lambda n: (0, 0)),
                pl.BlockSpec((1, Csq), lambda n: (0, 0)),
                pl.BlockSpec((Csq, Ce1), lambda n: (0, 0)),
                pl.BlockSpec((1, Ce1), lambda n: (0, 0)),
                pl.BlockSpec((3, 3 * Csq, Ce3), lambda n: (0, 0, 0)),
                pl.BlockSpec((1, Ce3), lambda n: (0, 0)),
            ],
            out_specs=pl.BlockSpec((1, H, W, Cout), lambda n: (n, 0, 0, 0)),
            scratch_shapes=[pltpu.VMEM((Npad, Csq), dt)],
        ),
        compiler_params=pltpu.CompilerParams(
            dimension_semantics=("parallel",)),
        cost_estimate=pl.CostEstimate(
            flops=flops, transcendentals=0, bytes_accessed=bytes_accessed),
    )(x, wsq_k, bsq_k, we1_k, be1_k, we3_k, be3_k)

    # NHWC -> NCHW to match PyTorch output convention.
    return jnp.transpose(out_nhwc, (0, 3, 1, 2))


def fire_reference(x, params):
    """Pure-JAX reference matching the PyTorch Fire module (NCHW)."""
    wsq, bsq, we1, be1, we3, be3 = params
    dn = ('NCHW', 'OIHW', 'NCHW')
    s = jax.lax.conv_general_dilated(x, wsq, (1, 1), 'VALID', dimension_numbers=dn)
    s = jax.nn.relu(s + bsq.reshape(1, -1, 1, 1))
    e1 = jax.lax.conv_general_dilated(s, we1, (1, 1), 'VALID', dimension_numbers=dn)
    e1 = jax.nn.relu(e1 + be1.reshape(1, -1, 1, 1))
    e3 = jax.lax.conv_general_dilated(s, we3, (1, 1), ((1, 1), (1, 1)),
                                      dimension_numbers=dn)
    e3 = jax.nn.relu(e3 + be3.reshape(1, -1, 1, 1))
    return jnp.concatenate([e1, e3], axis=1)


if __name__ == "__main__":
    # Fire(inplanes=8, squeeze_planes=4, expand1x1_planes=8, expand3x3_planes=8)
    N, Cin, H, W = 2, 8, 16, 16
    Csq, Ce1, Ce3 = 4, 8, 8

    key = jax.random.PRNGKey(0)
    ks = jax.random.split(key, 7)
    # deterministic synthetic parameters (PyTorch Conv2d weight shapes: OIHW)
    wsq = jax.random.normal(ks[0], (Csq, Cin, 1, 1), jnp.float32) * 0.2
    bsq = jax.random.normal(ks[1], (Csq,), jnp.float32) * 0.1
    we1 = jax.random.normal(ks[2], (Ce1, Csq, 1, 1), jnp.float32) * 0.2
    be1 = jax.random.normal(ks[3], (Ce1,), jnp.float32) * 0.1
    we3 = jax.random.normal(ks[4], (Ce3, Csq, 3, 3), jnp.float32) * 0.2
    be3 = jax.random.normal(ks[5], (Ce3,), jnp.float32) * 0.1
    params = (wsq, bsq, we1, be1, we3, be3)

    x = jax.random.normal(ks[6], (N, Cin, H, W), jnp.float32)

    out = jax.block_until_ready(fire_forward(x, params))
    ref = jax.block_until_ready(fire_reference(x, params))

    assert out.shape == (N, Ce1 + Ce3, H, W), out.shape
    np.testing.assert_allclose(np.asarray(out), np.asarray(ref), atol=1e-4, rtol=1e-4)
    print("KERNEL_OK")
</pallas_src>

<mosaic_0001>
module attributes {stable_mosaic.version = 11 : i64} {
  func.func @_fire_kernel(%arg0: i32, %arg1: memref<1x16x16x8xf32, #tpu.memory_space<vmem>>, %arg2: memref<8x4xf32, #tpu.memory_space<vmem>>, %arg3: memref<1x4xf32, #tpu.memory_space<vmem>>, %arg4: memref<4x8xf32, #tpu.memory_space<vmem>>, %arg5: memref<1x8xf32, #tpu.memory_space<vmem>>, %arg6: memref<3x12x8xf32, #tpu.memory_space<vmem>>, %arg7: memref<1x8xf32, #tpu.memory_space<vmem>>, %arg8: memref<1x16x16x16xf32, #tpu.memory_space<vmem>>, %arg9: memref<328x4xf32, #tpu.memory_space<vmem>>) attributes {dimension_semantics = [#tpu.dimension_semantics<parallel>], iteration_bounds = array<i64: 2>, scalar_prefetch = 0 : i64, scratch_operands = 1 : i64, tpu.core_type = #tpu.core_type<tc>, window_params = [{transform_indices = @transform_0, window_bounds = array<i64: 1, 16, 16, 8>}, {pipeline_mode = #tpu.pipeline_mode<synchronous>, transform_indices = @transform_1, window_bounds = array<i64: 8, 4>}, {pipeline_mode = #tpu.pipeline_mode<synchronous>, transform_indices = @transform_2, window_bounds = array<i64: 1, 4>}, {pipeline_mode = #tpu.pipeline_mode<synchronous>, transform_indices = @transform_3, window_bounds = array<i64: 4, 8>}, {pipeline_mode = #tpu.pipeline_mode<synchronous>, transform_indices = @transform_4, window_bounds = array<i64: 1, 8>}, {pipeline_mode = #tpu.pipeline_mode<synchronous>, transform_indices = @transform_5, window_bounds = array<i64: 3, 12, 8>}, {pipeline_mode = #tpu.pipeline_mode<synchronous>, transform_indices = @transform_6, window_bounds = array<i64: 1, 8>}, {transform_indices = @transform_7, window_bounds = array<i64: 1, 16, 16, 16>}]} {
    %cst = arith.constant 0.000000e+00 : f32
    %0 = vector.broadcast %cst : f32 to vector<18x4xf32>
    %c0 = arith.constant 0 : index
    %c0_0 = arith.constant 0 : index
    %1 = vector.load %arg9[%c0, %c0_0] : memref<328x4xf32, #tpu.memory_space<vmem>>, vector<18x4xf32>
    tpu.vector_store %arg9[%c0, %c0_0], %0 {strides = array<i32>} : memref<328x4xf32, #tpu.memory_space<vmem>>, vector<18x4xf32>,
    %cst_1 = arith.constant 0.000000e+00 : f32
    %2 = vector.broadcast %cst_1 : f32 to vector<22x4xf32>
    %c306 = arith.constant 306 : index
    %c0_2 = arith.constant 0 : index
    %3 = vector.load %arg9[%c306, %c0_2] : memref<328x4xf32, #tpu.memory_space<vmem>>, vector<22x4xf32>
    tpu.vector_store %arg9[%c306, %c0_2], %2 {strides = array<i32>} : memref<328x4xf32, #tpu.memory_space<vmem>>, vector<22x4xf32>,
    %c0_3 = arith.constant 0 : index
    %c0_4 = arith.constant 0 : index
    %4 = vector.load %arg2[%c0_3, %c0_4] : memref<8x4xf32, #tpu.memory_space<vmem>>, vector<8x4xf32>
    %c0_5 = arith.constant 0 : index
    %c0_6 = arith.constant 0 : index
    %5 = vector.load %arg3[%c0_5, %c0_6] : memref<1x4xf32, #tpu.memory_space<vmem>>, vector<1x4xf32>
    %c0_7 = arith.constant 0 : index
    %c0_8 = arith.constant 0 : index
    %6 = vector.load %arg4[%c0_7, %c0_8] : memref<4x8xf32, #tpu.memory_space<vmem>>, vector<4x8xf32>
    %c0_9 = arith.constant 0 : index
    %c0_10 = arith.constant 0 : index
    %7 = vector.load %arg5[%c0_9, %c0_10] : memref<1x8xf32, #tpu.memory_space<vmem>>, vector<1x8xf32>
    %c0_11 = arith.constant 0 : index
    %c0_12 = arith.constant 0 : index
    %8 = vector.load %arg7[%c0_11, %c0_12] : memref<1x8xf32, #tpu.memory_space<vmem>>, vector<1x8xf32>
    %c0_13 = arith.constant 0 : index
    %c0_14 = arith.constant 0 : index
    %c0_15 = arith.constant 0 : index
    %c0_16 = arith.constant 0 : index
    %9 = vector.load %arg1[%c0_13, %c0_14, %c0_15, %c0_16] : memref<1x16x16x8xf32, #tpu.memory_space<vmem>>, vector<1x16x16x8xf32>
    %10 = vector.shape_cast %9 : vector<1x16x16x8xf32> to vector<16x16x8xf32>
    %11 = vector.shape_cast %10 : vector<16x16x8xf32> to vector<256x8xf32>
    %cst_17 = arith.constant dense<0.000000e+00> : vector<256x4xf32>
    %12 = tpu.matmul %11, %4, %cst_17 {dimension_numbers = #tpu.dot_dimension_numbers<[1], [0], [0], [1], [0, 0, 1, 1], [], []>} : vector<256x8xf32>, vector<8x4xf32>, vector<256x4xf32> -> vector<256x4xf32>
    %13 = vector.broadcast %5 : vector<1x4xf32> to vector<256x4xf32>
    %14 = arith.addf %12, %13 : vector<256x4xf32>
    %cst_18 = arith.constant 0.000000e+00 : f32
    %15 = vector.broadcast %cst_18 : f32 to vector<256x4xf32>
    %16 = arith.maximumf %14, %15 : vector<256x4xf32>
    %cst_19 = arith.constant dense<0.000000e+00> : vector<256x8xf32>
    %17 = tpu.matmul %16, %6, %cst_19 {dimension_numbers = #tpu.dot_dimension_numbers<[1], [0], [0], [1], [0, 0, 1, 1], [], []>} : vector<256x4xf32>, vector<4x8xf32>, vector<256x8xf32> -> vector<256x8xf32>
    %18 = vector.broadcast %7 : vector<1x8xf32> to vector<256x8xf32>
    %19 = arith.addf %17, %18 : vector<256x8xf32>
    %cst_20 = arith.constant 0.000000e+00 : f32
    %20 = vector.broadcast %cst_20 : f32 to vector<256x8xf32>
    %21 = arith.maximumf %19, %20 : vector<256x8xf32>
    %22 = vector.shape_cast %21 : vector<256x8xf32> to vector<16x16x8xf32>
    %cst_21 = arith.constant 0.000000e+00 : f32
    %23 = vector.broadcast %cst_21 : f32 to vector<16x1x4xf32>
    %24 = vector.shape_cast %16 : vector<256x4xf32> to vector<16x16x4xf32>
    %25 = tpu.concatenate %23, %24, %23 in 1 : vector<16x1x4xf32>, vector<16x16x4xf32>, vector<16x1x4xf32> -> vector<16x18x4xf32>
    %26 = vector.shape_cast %25 : vector<16x18x4xf32> to vector<288x4xf32>
    %c18 = arith.constant 18 : index
    %c0_22 = arith.constant 0 : index
    %27 = vector.load %arg9[%c18, %c0_22] : memref<328x4xf32, #tpu.memory_space<vmem>>, vector<288x4xf32>
    tpu.vector_store %arg9[%c18, %c0_22], %26 {strides = array<i32>} : memref<328x4xf32, #tpu.memory_space<vmem>>, vector<288x4xf32>,
    %cst_23 = arith.constant 0.000000e+00 : f32
    %28 = vector.broadcast %cst_23 : f32 to vector<288x8xf32>
    %c0_24 = arith.constant 0 : index
    %c0_25 = arith.constant 0 : index
    %29 = vector.load %arg9[%c0_24, %c0_25] : memref<328x4xf32, #tpu.memory_space<vmem>>, vector<288x4xf32>
    %c1 = arith.constant 1 : index
    %c0_26 = arith.constant 0 : index
    %30 = vector.load %arg9[%c1, %c0_26] : memref<328x4xf32, #tpu.memory_space<vmem>>, vector<288x4xf32>
    %c2 = arith.constant 2 : index
    %c0_27 = arith.constant 0 : index
    %31 = vector.load %arg9[%c2, %c0_27] : memref<328x4xf32, #tpu.memory_space<vmem>>, vector<288x4xf32>
    %32 = tpu.concatenate %29, %30, %31 in 1 : vector<288x4xf32>, vector<288x4xf32>, vector<288x4xf32> -> vector<288x12xf32>
    %c0_28 = arith.constant 0 : index
    %c0_29 = arith.constant 0 : index
    %c0_30 = arith.constant 0 : index
    %33 = vector.load %arg6[%c0_28, %c0_29, %c0_30] : memref<3x12x8xf32, #tpu.memory_space<vmem>>, vector<1x12x8xf32>
    %34 = vector.shape_cast %33 : vector<1x12x8xf32> to vector<12x8xf32>
    %cst_31 = arith.constant dense<0.000000e+00> : vector<288x8xf32>
    %35 = tpu.matmul %32, %34, %cst_31 {dimension_numbers = #tpu.dot_dimension_numbers<[1], [0], [0], [1], [0, 0, 1, 1], [], []>} : vector<288x12xf32>, vector<12x8xf32>, vector<288x8xf32> -> vector<288x8xf32>
    %36 = arith.addf %28, %35 : vector<288x8xf32>
    %c18_32 = arith.constant 18 : index
    %c0_33 = arith.constant 0 : index
    %37 = vector.load %arg9[%c18_32, %c0_33] : memref<328x4xf32, #tpu.memory_space<vmem>>, vector<288x4xf32>
    %c19 = arith.constant 19 : index
    %c0_34 = arith.constant 0 : index
    %38 = vector.load %arg9[%c19, %c0_34] : memref<328x4xf32, #tpu.memory_space<vmem>>, vector<288x4xf32>
    %c20 = arith.constant 20 : index
    %c0_35 = arith.constant 0 : index
    %39 = vector.load %arg9[%c20, %c0_35] : memref<328x4xf32, #tpu.memory_space<vmem>>, vector<288x4xf32>
    %40 = tpu.concatenate %37, %38, %39 in 1 : vector<288x4xf32>, vector<288x4xf32>, vector<288x4xf32> -> vector<288x12xf32>
    %c1_36 = arith.constant 1 : index
    %c0_37 = arith.constant 0 : index
    %c0_38 = arith.constant 0 : index
    %41 = vector.load %arg6[%c1_36, %c0_37, %c0_38] : memref<3x12x8xf32, #tpu.memory_space<vmem>>, vector<1x12x8xf32>
    %42 = vector.shape_cast %41 : vector<1x12x8xf32> to vector<12x8xf32>
    %cst_39 = arith.constant dense<0.000000e+00> : vector<288x8xf32>
    %43 = tpu.matmul %40, %42, %cst_39 {dimension_numbers = #tpu.dot_dimension_numbers<[1], [0], [0], [1], [0, 0, 1, 1], [], []>} : vector<288x12xf32>, vector<12x8xf32>, vector<288x8xf32> -> vector<288x8xf32>
    %44 = arith.addf %36, %43 : vector<288x8xf32>
    %c36 = arith.constant 36 : index
    %c0_40 = arith.constant 0 : index
    %45 = vector.load %arg9[%c36, %c0_40] : memref<328x4xf32, #tpu.memory_space<vmem>>, vector<288x4xf32>
    %c37 = arith.constant 37 : index
    %c0_41 = arith.constant 0 : index
    %46 = vector.load %arg9[%c37, %c0_41] : memref<328x4xf32, #tpu.memory_space<vmem>>, vector<288x4xf32>
    %c38 = arith.constant 38 : index
    %c0_42 = arith.constant 0 : index
    %47 = vector.load %arg9[%c38, %c0_42] : memref<328x4xf32, #tpu.memory_space<vmem>>, vector<288x4xf32>
    %48 = tpu.concatenate %45, %46, %47 in 1 : vector<288x4xf32>, vector<288x4xf32>, vector<288x4xf32> -> vector<288x12xf32>
    %c2_43 = arith.constant 2 : index
    %c0_44 = arith.constant 0 : index
    %c0_45 = arith.constant 0 : index
    %49 = vector.load %arg6[%c2_43, %c0_44, %c0_45] : memref<3x12x8xf32, #tpu.memory_space<vmem>>, vector<1x12x8xf32>
    %50 = vector.shape_cast %49 : vector<1x12x8xf32> to vector<12x8xf32>
    %cst_46 = arith.constant dense<0.000000e+00> : vector<288x8xf32>
    %51 = tpu.matmul %48, %50, %cst_46 {dimension_numbers = #tpu.dot_dimension_numbers<[1], [0], [0], [1], [0, 0, 1, 1], [], []>} : vector<288x12xf32>, vector<12x8xf32>, vector<288x8xf32> -> vector<288x8xf32>
    %52 = arith.addf %44, %51 : vector<288x8xf32>
    %53 = vector.broadcast %8 : vector<1x8xf32> to vector<288x8xf32>
    %54 = arith.addf %52, %53 : vector<288x8xf32>
    %cst_47 = arith.constant 0.000000e+00 : f32
    %55 = vector.broadcast %cst_47 : f32 to vector<288x8xf32>
    %56 = arith.maximumf %54, %55 : vector<288x8xf32>
    %57 = vector.shape_cast %56 : vector<288x8xf32> to vector<16x18x8xf32>
    %58 = vector.extract_strided_slice %57 {offsets = [0, 0, 0], sizes = [16, 16, 8], strides = [1, 1, 1]} : vector<16x18x8xf32> to vector<16x16x8xf32>
    %59 = tpu.concatenate %22, %58 in 2 : vector<16x16x8xf32>, vector<16x16x8xf32> -> vector<16x16x16xf32>
    %c0_48 = arith.constant 0 : index
    %c0_49 = arith.constant 0 : index
    %c0_50 = arith.constant 0 : index
    %c0_51 = arith.constant 0 : index
    %60 = vector.load %arg8[%c0_48, %c0_49, %c0_50, %c0_51] : memref<1x16x16x16xf32, #tpu.memory_space<vmem>>, vector<1x16x16x16xf32>
    %61 = vector.shape_cast %60 : vector<1x16x16x16xf32> to vector<16x16x16xf32>
    %62 = vector.shape_cast %59 : vector<16x16x16xf32> to vector<1x16x16x16xf32>
    tpu.vector_store %arg8[%c0_48, %c0_49, %c0_50, %c0_51], %62 {strides = array<i32>} : memref<1x16x16x16xf32, #tpu.memory_space<vmem>>, vector<1x16x16x16xf32>,
    return
  }
  func.func @transform_0(%arg0: i32) -> (i32, i32, i32, i32) {
    %c0_i32 = arith.constant 0 : i32
    %c0_i32_0 = arith.constant 0 : i32
    %c0_i32_1 = arith.constant 0 : i32
    %c0_i32_2 = arith.constant 0 : i32
    return %arg0, %c0_i32, %c0_i32_0, %c0_i32_1 : i32, i32, i32, i32
  }
  func.func @transform_1(%arg0: i32) -> (i32, i32) {
    %c0_i32 = arith.constant 0 : i32
    %c0_i32_0 = arith.constant 0 : i32
    %c0_i32_1 = arith.constant 0 : i32
    return %c0_i32, %c0_i32_0 : i32, i32
  }
  func.func @transform_2(%arg0: i32) -> (i32, i32) {
    %c0_i32 = arith.constant 0 : i32
    %c0_i32_0 = arith.constant 0 : i32
    %c0_i32_1 = arith.constant 0 : i32
    return %c0_i32, %c0_i32_0 : i32, i32
  }
  func.func @transform_3(%arg0: i32) -> (i32, i32) {
    %c0_i32 = arith.constant 0 : i32
    %c0_i32_0 = arith.constant 0 : i32
    %c0_i32_1 = arith.constant 0 : i32
    return %c0_i32, %c0_i32_0 : i32, i32
  }
  func.func @transform_4(%arg0: i32) -> (i32, i32) {
    %c0_i32 = arith.constant 0 : i32
    %c0_i32_0 = arith.constant 0 : i32
    %c0_i32_1 = arith.constant 0 : i32
    return %c0_i32, %c0_i32_0 : i32, i32
  }
  func.func @transform_5(%arg0: i32) -> (i32, i32, i32) {
    %c0_i32 = arith.constant 0 : i32
    %c0_i32_0 = arith.constant 0 : i32
    %c0_i32_1 = arith.constant 0 : i32
    %c0_i32_2 = arith.constant 0 : i32
    return %c0_i32, %c0_i32_0, %c0_i32_1 : i32, i32, i32
  }
  func.func @transform_6(%arg0: i32) -> (i32, i32) {
    %c0_i32 = arith.constant 0 : i32
    %c0_i32_0 = arith.constant 0 : i32
    %c0_i32_1 = arith.constant 0 : i32
    return %c0_i32, %c0_i32_0 : i32, i32
  }
  func.func @transform_7(%arg0: i32) -> (i32, i32, i32, i32) {
    %c0_i32 = arith.constant 0 : i32
    %c0_i32_0 = arith.constant 0 : i32
    %c0_i32_1 = arith.constant 0 : i32
    %c0_i32_2 = arith.constant 0 : i32
    return %arg0, %c0_i32, %c0_i32_0, %c0_i32_1 : i32, i32, i32, i32
  }
}

</mosaic_0001>

<llo_original>
// kernel: tpu_custom_call.1
$region0: #{tpu_custom_call.1}
  #allocation0 [shape = 'u32[]', space=smem, size = 0x4, offset = 0x4, fixed_abs, tag = 'smem constant byte address 0x4 - core index']
  #allocation1 [shape = 'u32[72,128]{1,0:T(1,128)}', space=vmem, size = 0x9000, scoped, tag = 'internal scratch']
  #allocation2 [shape = 'f32[328,4]{1,0:T(8,128)}', space=vmem, size = 0x29000, scoped, tag = 'scratch operand']
  %s0 = inlined_call_operand.vmem [shape: f32[2,16,16,8], index: 0, kind: input, shape index: {}]
  %s1 = inlined_call_operand.vmem [shape: f32[8,4], index: 1, kind: input, shape index: {}]
  %s2 = inlined_call_operand.vmem [shape: f32[1,4], index: 2, kind: input, shape index: {}]
  %s3 = inlined_call_operand.vmem [shape: f32[4,8], index: 3, kind: input, shape index: {}]
  %s4 = inlined_call_operand.vmem [shape: f32[1,8], index: 4, kind: input, shape index: {}]
  %s5 = inlined_call_operand.vmem [shape: f32[3,12,8], index: 5, kind: input, shape index: {}]
  %s6 = inlined_call_operand.vmem [shape: f32[1,8], index: 6, kind: input, shape index: {}]
  %s7 = inlined_call_operand.hbm [shape: f32[2,16,16,16], index: 7, kind: output, shape index: {}]
  %s8 = sld [smem:[#allocation0]]
  $region61: #{tpu_custom_call.1} parent=0
    _
  %s10 = ssub.s32 1, %s8
  %s11 = scalar_select 0, %s10, %s8
  $region1: #{tpu_custom_call.1} parent=0
    #allocation3 [shape = 'u8[262144]{0}', space=vmem, size = 0x40000, scoped, tag = 'output window, operand 0']
    #allocation4 [shape = 's32[2]{0}', space=sflag, size = 0x8, scoped, tag = 'scoped memory for tpu_custom_call.1']
    %12 = vsyncpa [#allocation4], 0
    %s13 = scalar_lea.sflag [#allocation4], 1
    %14 = vsyncpa %s13, 0
    loop: start=0, step=1, limit=4
    $region2: #{tpu_custom_call.1} parent=1 // loop_pre_header
      _
    $region3: #{tpu_custom_call.1} parent=1 // loop_header
      %s16 = sphi 0, %s20
      %p17 = scmp.ge.s32.totalorder %s16, 4
      %s26 = sphi 0, %s28
      %s29 = sphi 0, %s26
      %s30 = sphi 0, %s29
      %s46 = sphi 0, %s30
      %s50 = sphi 0, %s50
      %s52 = sphi 0, %s50
      %s53 = sphi 0, %s52
      %s67 = sphi 0, %s53
      %s71 = sphi 0, %s71
      %s73 = sphi 0, %s71
      %s74 = sphi 0, %s73
      %s88 = sphi 0, %s74
      %s92 = sphi 0, %s92
      %s94 = sphi 0, %s92
      %s95 = sphi 0, %s94
      %s109 = sphi 0, %s95
      %s113 = sphi 0, %s113
      %s115 = sphi 0, %s113
      %s116 = sphi 0, %s115
      %s130 = sphi 0, %s116
      %s134 = sphi 0, %s134
      %s136 = sphi 0, %s134
      %s137 = sphi 0, %s136
      %s151 = sphi 0, %s137
      %s155 = sphi 0, %s155
      %s157 = sphi 0, %s155
      %s158 = sphi 0, %s157
      %s172 = sphi 0, %s158
      %s178 = sphi 0, %s180
      %s181 = sphi 0, %s178
      %s182 = sphi 0, %s181
      %s198 = sphi 0, %s182
    $region4: #{tpu_custom_call.1} parent=1 // loop_header_branch
      %19 = sbr.rel (%p17) target = $region8
    $region5: #{tpu_custom_call.1} parent=1 // loop_body
      %s21 = ssub.s32 %s16, 1
      %s22 = ssub.s32 %s16, 2
      %s23 = sadd.s32 %s16, 1
      %s24 = ssub.s32 %s16, %s23
      %p25 = scmp.eq.s32.totalorder %s24, 0
      %s27 = sadd.s32 %s26, 1
      %s28 = scalar_select %p25, %s26, %s27
      %p31 = pneg %p25
      %p32 = scmp.eq.s32.totalorder %s16, 1
      %p33 = por %p31, %p32
      %p34 = scmp.ne.s32.totalorder %s26, %s29
      %p35 = scmp.eq.s32.totalorder %s16, 0
      %p36 = por %p34, %p35
      %p37 = scmp.ne.s32.totalorder %s26, %s29
      %p38 = scmp.eq.s32.totalorder %s21, 1
      %p39 = por %p37, %p38
      %p40 = scmp.ne.s32.totalorder %s29, %s30
      %p41 = scmp.eq.s32.totalorder %s21, 0
      %p42 = por %p40, %p41
      %p43 = scmp.ne.s32.totalorder %s29, %s30
      %p44 = scmp.eq.s32.totalorder %s22, 1
      %p45 = por %p43, %p44
      %p47 = scmp.ne.s32.totalorder %s30, %s46
      %p48 = scmp.eq.s32.totalorder %s22, 0
      %p49 = por %p47, %p48
      %s51 = sadd.s32 %s50, 1
      %p54 = scmp.eq.s32.totalorder %s16, 1
      %p55 = scmp.ne.s32.totalorder %s50, %s52
      %p56 = scmp.eq.s32.totalorder %s16, 0
      %p57 = por %p55, %p56
      %p58 = scmp.ne.s32.totalorder %s50, %s52
      %p59 = scmp.eq.s32.totalorder %s21, 1
      %p60 = por %p58, %p59
      %p61 = scmp.ne.s32.totalorder %s52, %s53
      %p62 = scmp.eq.s32.totalorder %s21, 0
      %p63 = por %p61, %p62
      %p64 = scmp.ne.s32.totalorder %s52, %s53
      %p65 = scmp.eq.s32.totalorder %s22, 1
      %p66 = por %p64, %p65
      %p68 = scmp.ne.s32.totalorder %s53, %s67
      %p69 = scmp.eq.s32.totalorder %s22, 0
      %p70 = por %p68, %p69
      %s72 = sadd.s32 %s71, 1
      %p75 = scmp.eq.s32.totalorder %s16, 1
      %p76 = scmp.ne.s32.totalorder %s71, %s73
      %p77 = scmp.eq.s32.totalorder %s16, 0
      %p78 = por %p76, %p77
      %p79 = scmp.ne.s32.totalorder %s71, %s73
      %p80 = scmp.eq.s32.totalorder %s21, 1
      %p81 = por %p79, %p80
      %p82 = scmp.ne.s32.totalorder %s73, %s74
      %p83 = scmp.eq.s32.totalorder %s21, 0
      %p84 = por %p82, %p83
      %p85 = scmp.ne.s32.totalorder %s73, %s74
      %p86 = scmp.eq.s32.totalorder %s22, 1
      %p87 = por %p85, %p86
      %p89 = scmp.ne.s32.totalorder %s74, %s88
      %p90 = scmp.eq.s32.totalorder %s22, 0
      %p91 = por %p89, %p90
      %s93 = sadd.s32 %s92, 1
      %p96 = scmp.eq.s32.totalorder %s16, 1
      %p97 = scmp.ne.s32.totalorder %s92, %s94
      %p98 = scmp.eq.s32.totalorder %s16, 0
      %p99 = por %p97, %p98
      %p100 = scmp.ne.s32.totalorder %s92, %s94
      %p101 = scmp.eq.s32.totalorder %s21, 1
      %p102 = por %p100, %p101
      %p103 = scmp.ne.s32.totalorder %s94, %s95
      %p104 = scmp.eq.s32.totalorder %s21, 0
      %p105 = por %p103, %p104
      %p106 = scmp.ne.s32.totalorder %s94, %s95
      %p107 = scmp.eq.s32.totalorder %s22, 1
      %p108 = por %p106, %p107
      %p110 = scmp.ne.s32.totalorder %s95, %s109
      %p111 = scmp.eq.s32.totalorder %s22, 0
      %p112 = por %p110, %p111
      %s114 = sadd.s32 %s113, 1
      %p117 = scmp.eq.s32.totalorder %s16, 1
      %p118 = scmp.ne.s32.totalorder %s113, %s115
      %p119 = scmp.eq.s32.totalorder %s16, 0
      %p120 = por %p118, %p119
      %p121 = scmp.ne.s32.totalorder %s113, %s115
      %p122 = scmp.eq.s32.totalorder %s21, 1
      %p123 = por %p121, %p122
      %p124 = scmp.ne.s32.totalorder %s115, %s116
      %p125 = scmp.eq.s32.totalorder %s21, 0
      %p126 = por %p124, %p125
      %p127 = scmp.ne.s32.totalorder %s115, %s116
      %p128 = scmp.eq.s32.totalorder %s22, 1
      %p129 = por %p127, %p128
      %p131 = scmp.ne.s32.totalorder %s116, %s130
      %p132 = scmp.eq.s32.totalorder %s22, 0
      %p133 = por %p131, %p132
      %s135 = sadd.s32 %s134, 1
      %p138 = scmp.eq.s32.totalorder %s16, 1
      %p139 = scmp.ne.s32.totalorder %s134, %s136
      %p140 = scmp.eq.s32.totalorder %s16, 0
      %p141 = por %p139, %p140
      %p142 = scmp.ne.s32.totalorder %s134, %s136
      %p143 = scmp.eq.s32.totalorder %s21, 1
      %p144 = por %p142, %p143
      %p145 = scmp.ne.s32.totalorder %s136, %s137
      %p146 = scmp.eq.s32.totalorder %s21, 0
      %p147 = por %p145, %p146
      %p148 = scmp.ne.s32.totalorder %s136, %s137
      %p149 = scmp.eq.s32.totalorder %s22, 1
      %p150 = por %p148, %p149
      %p152 = scmp.ne.s32.totalorder %s137, %s151
      %p153 = scmp.eq.s32.totalorder %s22, 0
      %p154 = por %p152, %p153
      %s156 = sadd.s32 %s155, 1
      %p159 = scmp.eq.s32.totalorder %s16, 1
      %p160 = scmp.ne.s32.totalorder %s155, %s157
      %p161 = scmp.eq.s32.totalorder %s16, 0
      %p162 = por %p160, %p161
      %p163 = scmp.ne.s32.totalorder %s155, %s157
      %p164 = scmp.eq.s32.totalorder %s21, 1
      %p165 = por %p163, %p164
      %p166 = scmp.ne.s32.totalorder %s157, %s158
      %p167 = scmp.eq.s32.totalorder %s21, 0
      %p168 = por %p166, %p167
      %p169 = scmp.ne.s32.totalorder %s157, %s158
      %p170 = scmp.eq.s32.totalorder %s22, 1
      %p171 = por %p169, %p170
      %p173 = scmp.ne.s32.totalorder %s158, %s172
      %p174 = scmp.eq.s32.totalorder %s22, 0
      %p175 = por %p173, %p174
      %s176 = ssub.s32 %s16, %s23
      %p177 = scmp.eq.s32.totalorder %s176, 0
      %s179 = sadd.s32 %s178, 1
      %s180 = scalar_select %p177, %s178, %s179
      %p183 = pneg %p177
      %p184 = scmp.eq.s32.totalorder %s16, 1
      %p185 = por %p183, %p184
      %p186 = scmp.ne.s32.totalorder %s178, %s181
      %p187 = scmp.eq.s32.totalorder %s16, 0
      %p188 = por %p186, %p187
      %p189 = scmp.ne.s32.totalorder %s178, %s181
      %p190 = scmp.eq.s32.totalorder %s21, 1
      %p191 = por %p189, %p190
      %p192 = scmp.ne.s32.totalorder %s181, %s182
      %p193 = scmp.eq.s32.totalorder %s21, 0
      %p194 = por %p192, %p193
      %p195 = scmp.ne.s32.totalorder %s181, %s182
      %p196 = scmp.eq.s32.totalorder %s22, 1
      %p197 = por %p195, %p196
      %p199 = scmp.ne.s32.totalorder %s182, %s198
      %p200 = scmp.eq.s32.totalorder %s22, 0
      %p201 = por %p199, %p200
      %p202 = scmp.le.s32.totalorder 1, %s16
      %p203 = scmp.lt.s32.totalorder %s16, 3
      %p204 = pnand %p202, %p203
      %p205 = pneg %p204
      // Predicated region
      $region9: #{tpu_custom_call.1} parent=5 // pred_check
        _
      $region10: #{tpu_custom_call.1} parent=5 // pred_check_branch
        %207 = sbr.rel (%p204) target = $region12
      $region11: #{tpu_custom_call.1} parent=5 // pred_region
        %s208 = ssub.s32 %s16, 1
        // Predicated region
        $region13: #{tpu_custom_call.1} parent=11 // pred_check
          %p209 = pneg %p63
        $region14: #{tpu_custom_call.1} parent=11 // pred_check_branch
          %211 = sbr.rel (%p209) target = $region16
        $region15: #{tpu_custom_call.1} parent=11 // pred_region
          _
        $region16: #{tpu_custom_call.1} parent=11 // pred_fallthru
          _
        // Predicated region
        $region17: #{tpu_custom_call.1} parent=11 // pred_check
          %p212 = pneg %p84
        $region18: #{tpu_custom_call.1} parent=11 // pred_check_branch
          %214 = sbr.rel (%p212) target = $region20
        $region19: #{tpu_custom_call.1} parent=11 // pred_region
          _
        $region20: #{tpu_custom_call.1} parent=11 // pred_fallthru
          _
        // Predicated region
        $region21: #{tpu_custom_call.1} parent=11 // pred_check
          %p215 = pneg %p105
        $region22: #{tpu_custom_call.1} parent=11 // pred_check_branch
          %217 = sbr.rel (%p215) target = $region24
        $region23: #{tpu_custom_call.1} parent=11 // pred_region
          _
        $region24: #{tpu_custom_call.1} parent=11 // pred_fallthru
          _
        // Predicated region
        $region25: #{tpu_custom_call.1} parent=11 // pred_check
          %p218 = pneg %p126
        $region26: #{tpu_custom_call.1} parent=11 // pred_check_branch
          %220 = sbr.rel (%p218) target = $region28
        $region27: #{tpu_custom_call.1} parent=11 // pred_region
          _
        $region28: #{tpu_custom_call.1} parent=11 // pred_fallthru
          _
        // Predicated region
        $region29: #{tpu_custom_call.1} parent=11 // pred_check
          %p221 = pneg %p147
        $region30: #{tpu_custom_call.1} parent=11 // pred_check_branch
          %223 = sbr.rel (%p221) target = $region32
        $region31: #{tpu_custom_call.1} parent=11 // pred_region
          _
        $region32: #{tpu_custom_call.1} parent=11 // pred_fallthru
          _
        // Predicated region
        $region33: #{tpu_custom_call.1} parent=11 // pred_check
          %p224 = pneg %p168
        $region34: #{tpu_custom_call.1} parent=11 // pred_check_branch
          %226 = sbr.rel (%p224) target = $region36
        $region35: #{tpu_custom_call.1} parent=11 // pred_region
          _
        $region36: #{tpu_custom_call.1} parent=11 // pred_fallthru
          _
      $region12: #{tpu_custom_call.1} parent=5 // pred_fallthru
        _
      %p227 = scmp.lt.s32.totalorder %s16, 2
      // Predicated region
      $region37: #{tpu_custom_call.1} parent=5 // pred_check
        %p228 = pneg %p227
      $region38: #{tpu_custom_call.1} parent=5 // pred_check_branch
        %230 = sbr.rel (%p228) target = $region40
      $region39: #{tpu_custom_call.1} parent=5 // pred_region
        // Predicated region
        $region41: #{tpu_custom_call.1} parent=39 // pred_check
          %p231 = pneg %p36
        $region42: #{tpu_custom_call.1} parent=39 // pred_check_branch
          %233 = sbr.rel (%p231) target = $region44
        $region43: #{tpu_custom_call.1} parent=39 // pred_region
          %p234 = scmp.lt.s32.totalorder %s16, 1
          %s235 = scalar_select %p234, %s16, 1
          %s236 = smul.addr %s235, 32
          %s237 = smul.addr %s236, 8
          %s238 = scalar_lea.vmem %s0, %s237
        $region44: #{tpu_custom_call.1} parent=39 // pred_fallthru
          _
      $region40: #{tpu_custom_call.1} parent=5 // pred_fallthru
        _
      %p239 = scmp.le.s32.totalorder 1, %s16
      %p240 = scmp.lt.s32.totalorder %s16, 3
      %p241 = pnand %p239, %p240
      %p242 = pneg %p241
      // Predicated region
      $region45: #{tpu_custom_call.1} parent=5 // pred_check
        _
      $region46: #{tpu_custom_call.1} parent=5 // pred_check_branch
        %244 = sbr.rel (%p241) target = $region48
      $region47: #{tpu_custom_call.1} parent=5 // pred_region
        %s245 = ssub.s32 %s16, 1
        %p246 = scmp.lt.s32.totalorder %s21, 1
        %s247 = scalar_select %p246, %s21, 1
        %s248 = smul.addr %s247, 32
        %s249 = smul.addr %s248, 8
        %s250 = scalar_lea.vmem %s0, %s249
        %p251 = pneg %p42
        %p252 = pneg %p39
        %p253 = pneg %p63
        %p254 = pneg %p60
        %p255 = pneg %p84
        %p256 = pneg %p81
        %p257 = pneg %p105
        %p258 = pneg %p102
        %p259 = pneg %p126
        %p260 = pneg %p123
        %p261 = pneg %p147
        %p262 = pneg %p144
        %p263 = pneg %p168
        %p264 = pneg %p165
        %p265 = pneg %p194
        %p266 = pneg %p191
        %s267 = sand.u32 %s181, 1
        %s268 = scalar_lea.sflag [#allocation4], %s267
        %s269 = sand.u32 %s181, 1
        %s270 = smul.addr %s269, 256
        %s271 = scalar_lea.vmem [#allocation3], %s270
        %p272 = scmp.lt.s32.totalorder %s21, 1
        %s273 = scalar_select %p272, %s21, 1
        %s274 = smul.addr %s273, 32
        %s275 = smul.addr %s274, 8
        %s276 = scalar_lea.vmem %s0, %s275
        %vm277 = vcmask 31744
        %278 = vst.msk [vmem:[#allocation2] sm:$0xff] %vm277, 0.0
        %279 = vst.msk [vmem:[#allocation2 + $0x8] sm:$0xff] %vm277, 0.0
        %vm280 = vcmask 25600
        %281 = vst.msk [vmem:[#allocation2 + $0x10] sm:$0x3] %vm280, 0.0
        %282 = vst.msk [vmem:[#allocation2 + $0x132] sm:$0xff] %vm277, 0.0
        %283 = vst.msk [vmem:[#allocation2 + $0x13a] sm:$0xff] %vm277, 0.0
        %vm284 = vcmask 29696
        %285 = vst.msk [vmem:[#allocation2 + $0x142] sm:$0x3f] %vm284, 0.0
        %v286 = vld [vmem:[%s1] sm:$0xff]
        %v287 = vld [vmem:[%s2] sm:$0x1]
        %v288 = vld [vmem:[%s3] sm:$0xf]
        %v289 = vld [vmem:[%s4] sm:$0x1]
        %v290 = vld [vmem:[%s6] sm:$0x1]
        %v291 = vld [vmem:[%s276] sm:$0xff]
        %v292 = vld [vmem:[%s276 + $0x8] sm:$0xff]
        %v293 = vld [vmem:[%s276 + $0x10] sm:$0xff]
        %v294 = vld [vmem:[%s276 + $0x18] sm:$0xff]
        %v295 = vld [vmem:[%s276 + $0x20] sm:$0xff]
        %v296 = vld [vmem:[%s276 + $0x28] sm:$0xff]
        %v297 = vld [vmem:[%s276 + $0x30] sm:$0xff]
        %v298 = vld [vmem:[%s276 + $0x38] sm:$0xff]
        %v299 = vld [vmem:[%s276 + $0x40] sm:$0xff]
        %v300 = vld [vmem:[%s276 + $0x48] sm:$0xff]
        %v301 = vld [vmem:[%s276 + $0x50] sm:$0xff]
        %v302 = vld [vmem:[%s276 + $0x58] sm:$0xff]
        %v303 = vld [vmem:[%s276 + $0x60] sm:$0xff]
        %v304 = vld [vmem:[%s276 + $0x68] sm:$0xff]
        %v305 = vld [vmem:[%s276 + $0x70] sm:$0xff]
        %v306 = vld [vmem:[%s276 + $0x78] sm:$0xff]
        %v307 = vld [vmem:[%s276 + $0x80] sm:$0xff]
        %v308 = vld [vmem:[%s276 + $0x88] sm:$0xff]
        %v309 = vld [vmem:[%s276 + $0x90] sm:$0xff]
        %v310 = vld [vmem:[%s276 + $0x98] sm:$0xff]
        %v311 = vld [vmem:[%s276 + $0xa0] sm:$0xff]
        %v312 = vld [vmem:[%s276 + $0xa8] sm:$0xff]
        %v313 = vld [vmem:[%s276 + $0xb0] sm:$0xff]
        %v314 = vld [vmem:[%s276 + $0xb8] sm:$0xff]
        %v315 = vld [vmem:[%s276 + $0xc0] sm:$0xff]
        %v316 = vld [vmem:[%s276 + $0xc8] sm:$0xff]
        %v317 = vld [vmem:[%s276 + $0xd0] sm:$0xff]
        %v318 = vld [vmem:[%s276 + $0xd8] sm:$0xff]
        %v319 = vld [vmem:[%s276 + $0xe0] sm:$0xff]
        %v320 = vld [vmem:[%s276 + $0xe8] sm:$0xff]
        %v321 = vld [vmem:[%s276 + $0xf0] sm:$0xff]
        %v322 = vld [vmem:[%s276 + $0xf8] sm:$0xff]
        %v324 = vperm.slane %v287, 0
        %vm326 = vcmask 64512
        %v328 = vsel %vm326, %v291, 0
        %v331 = vsel %vm326, %v292, 0
        %v334 = vsel %vm326, %v293, 0
        %v337 = vsel %vm326, %v294, 0
        %v340 = vsel %vm326, %v295, 0
        %v343 = vsel %vm326, %v296, 0
        %v346 = vsel %vm326, %v297, 0
        %v349 = vsel %vm326, %v298, 0
        %v352 = vsel %vm326, %v299, 0
        %v355 = vsel %vm326, %v300, 0
        %v358 = vsel %vm326, %v301, 0
        %v361 = vsel %vm326, %v302, 0
        %v364 = vsel %vm326, %v303, 0
        %v367 = vsel %vm326, %v304, 0
        %v370 = vsel %vm326, %v305, 0
        %v373 = vsel %vm326, %v306, 0
        %v376 = vsel %vm326, %v307, 0
        %v379 = vsel %vm326, %v308, 0
        %v382 = vsel %vm326, %v309, 0
        %v385 = vsel %vm326, %v310, 0
        %v388 = vsel %vm326, %v311, 0
        %v391 = vsel %vm326, %v312, 0
        %v394 = vsel %vm326, %v313, 0
        %v397 = vsel %vm326, %v314, 0
        %v400 = vsel %vm326, %v315, 0
        %v403 = vsel %vm326, %v316, 0
        %v406 = vsel %vm326, %v317, 0
        %v409 = vsel %vm326, %v318, 0
        %v412 = vsel %vm326, %v319, 0
        %v415 = vsel %vm326, %v320, 0
        %v418 = vsel %vm326, %v321, 0
        %v421 = vsel %vm326, %v322, 0
        %423 = vmatpush.msra.mxu0 0.0
        %424 = vmatpush.msra.mxu0 0.0
        %425 = vmatpush.msra.mxu0 0.0
        %426 = vmatpush.msra.mxu0 0.0
        %427 = vmatpush.msra.mxu0 0.0
        %428 = vmatpush.msra.mxu0 0.0
        %429 = vmatpush.msra.mxu0 0.0
        %430 = vmatpush.msra.mxu0 0.0
        %431 = vmatpush.msra.mxu0 0.0
        %432 = vmatpush.msra.mxu0 0.0
        %433 = vmatpush.msra.mxu0 0.0
        %434 = vmatpush.msra.mxu0 0.0
        %435 = vmatpush.msra.mxu0 0.0
        %436 = vmatpush.msra.mxu0 0.0
        %437 = vmatpush.msra.mxu0 0.0
        %438 = vmatpush.msra.mxu0 %v286
        %439 = vmatmul.f32.gmra.mxu0 %v328
        %v440 = vpop.f32.mrf.mxu0
        %v441 = vadd.f32 %v324, %v440
        %442 = vmatmul.f32.gmra.mxu0 %v331
        %v443 = vpop.f32.mrf.mxu0
        %v444 = vadd.f32 %v324, %v443
        %445 = vmatmul.f32.gmra.mxu0 %v334
        %v446 = vpop.f32.mrf.mxu0
        %v447 = vadd.f32 %v324, %v446
        %448 = vmatmul.f32.gmra.mxu0 %v337
        %v449 = vpop.f32.mrf.mxu0
        %v450 = vadd.f32 %v324, %v449
        %451 = vmatmul.f32.gmra.mxu0 %v340
        %v452 = vpop.f32.mrf.mxu0
        %v453 = vadd.f32 %v324, %v452
        %454 = vmatmul.f32.gmra.mxu0 %v343
        %v455 = vpop.f32.mrf.mxu0
        %v456 = vadd.f32 %v324, %v455
        %457 = vmatmul.f32.gmra.mxu0 %v346
        %v458 = vpop.f32.mrf.mxu0
        %v459 = vadd.f32 %v324, %v458
        %460 = vmatmul.f32.gmra.mxu0 %v349
        %v461 = vpop.f32.mrf.mxu0
        %v462 = vadd.f32 %v324, %v461
        %463 = vmatmul.f32.gmra.mxu0 %v352
        %v464 = vpop.f32.mrf.mxu0
        %v465 = vadd.f32 %v324, %v464
        %466 = vmatmul.f32.gmra.mxu0 %v355
        %v467 = vpop.f32.mrf.mxu0
        %v468 = vadd.f32 %v324, %v467
        %469 = vmatmul.f32.gmra.mxu0 %v358
        %v470 = vpop.f32.mrf.mxu0
        %v471 = vadd.f32 %v324, %v470
        %472 = vmatmul.f32.gmra.mxu0 %v361
        %v473 = vpop.f32.mrf.mxu0
        %v474 = vadd.f32 %v324, %v473
        %475 = vmatmul.f32.gmra.mxu0 %v364
        %v476 = vpop.f32.mrf.mxu0
        %v477 = vadd.f32 %v324, %v476
        %478 = vmatmul.f32.gmra.mxu0 %v367
        %v479 = vpop.f32.mrf.mxu0
        %v480 = vadd.f32 %v324, %v479
        %481 = vmatmul.f32.gmra.mxu0 %v370
        %v482 = vpop.f32.mrf.mxu0
        %v483 = vadd.f32 %v324, %v482
        %484 = vmatmul.f32.gmra.mxu0 %v373
        %v485 = vpop.f32.mrf.mxu0
        %v486 = vadd.f32 %v324, %v485
        %487 = vmatmul.f32.gmra.mxu0 %v376
        %v488 = vpop.f32.mrf.mxu0
        %v489 = vadd.f32 %v324, %v488
        %490 = vmatmul.f32.gmra.mxu0 %v379
        %v491 = vpop.f32.mrf.mxu0
        %v492 = vadd.f32 %v324, %v491
        %493 = vmatmul.f32.gmra.mxu0 %v382
        %v494 = vpop.f32.mrf.mxu0
        %v495 = vadd.f32 %v324, %v494
        %496 = vmatmul.f32.gmra.mxu0 %v385
        %v497 = vpop.f32.mrf.mxu0
        %v498 = vadd.f32 %v324, %v497
        %499 = vmatmul.f32.gmra.mxu0 %v388
        %v500 = vpop.f32.mrf.mxu0
        %v501 = vadd.f32 %v324, %v500
        %502 = vmatmul.f32.gmra.mxu0 %v391
        %v503 = vpop.f32.mrf.mxu0
        %v504 = vadd.f32 %v324, %v503
        %505 = vmatmul.f32.gmra.mxu0 %v394
        %v506 = vpop.f32.mrf.mxu0
        %v507 = vadd.f32 %v324, %v506
        %508 = vmatmul.f32.gmra.mxu0 %v397
        %v509 = vpop.f32.mrf.mxu0
        %v510 = vadd.f32 %v324, %v509
        %511 = vmatmul.f32.gmra.mxu0 %v400
        %v512 = vpop.f32.mrf.mxu0
        %v513 = vadd.f32 %v324, %v512
        %514 = vmatmul.f32.gmra.mxu0 %v403
        %v515 = vpop.f32.mrf.mxu0
        %v516 = vadd.f32 %v324, %v515
        %517 = vmatmul.f32.gmra.mxu0 %v406
        %v518 = vpop.f32.mrf.mxu0
        %v519 = vadd.f32 %v324, %v518
        %520 = vmatmul.f32.gmra.mxu0 %v409
        %v521 = vpop.f32.mrf.mxu0
        %v522 = vadd.f32 %v324, %v521
        %523 = vmatmul.f32.gmra.mxu0 %v412
        %v524 = vpop.f32.mrf.mxu0
        %v525 = vadd.f32 %v324, %v524
        %526 = vmatmul.f32.gmra.mxu0 %v415
        %v527 = vpop.f32.mrf.mxu0
        %v528 = vadd.f32 %v324, %v527
        %529 = vmatmul.f32.gmra.mxu0 %v418
        %v530 = vpop.f32.mrf.mxu0
        %v531 = vadd.f32 %v324, %v530
        %532 = vmatmul.f32.gmra.mxu0 %v421
        %v533 = vpop.f32.mrf.mxu0
        %v534 = vadd.f32 %v324, %v533
        %535 = vdwg.mxu0
        %v536 = vmax.f32 %v441, 0.0
        %v537 = vmax.f32 %v444, 0.0
        %v538 = vmax.f32 %v447, 0.0
        %v539 = vmax.f32 %v450, 0.0
        %v540 = vmax.f32 %v453, 0.0
        %v541 = vmax.f32 %v456, 0.0
        %v542 = vmax.f32 %v459, 0.0
        %v543 = vmax.f32 %v462, 0.0
        %v544 = vmax.f32 %v465, 0.0
        %v545 = vmax.f32 %v468, 0.0
        %v546 = vmax.f32 %v471, 0.0
        %v547 = vmax.f32 %v474, 0.0
        %v548 = vmax.f32 %v477, 0.0
        %v549 = vmax.f32 %v480, 0.0
        %v550 = vmax.f32 %v483, 0.0
        %v551 = vmax.f32 %v486, 0.0
        %v552 = vmax.f32 %v489, 0.0
        %v553 = vmax.f32 %v492, 0.0
        %v554 = vmax.f32 %v495, 0.0
        %v555 = vmax.f32 %v498, 0.0
        %v556 = vmax.f32 %v501, 0.0
        %v557 = vmax.f32 %v504, 0.0
        %v558 = vmax.f32 %v507, 0.0
        %v559 = vmax.f32 %v510, 0.0
        %v560 = vmax.f32 %v513, 0.0
        %v561 = vmax.f32 %v516, 0.0
        %v562 = vmax.f32 %v519, 0.0
        %v563 = vmax.f32 %v522, 0.0
        %v564 = vmax.f32 %v525, 0.0
        %v565 = vmax.f32 %v528, 0.0
        %v566 = vmax.f32 %v531, 0.0
        %v567 = vmax.f32 %v534, 0.0
        %v569 = vperm.slane %v289, 0
        %v572 = vsel %vm277, %v536, 0
        %v575 = vsel %vm277, %v537, 0
        %v578 = vsel %vm277, %v538, 0
        %v581 = vsel %vm277, %v539, 0
        %v584 = vsel %vm277, %v540, 0
        %v587 = vsel %vm277, %v541, 0
        %v590 = vsel %vm277, %v542, 0
        %v593 = vsel %vm277, %v543, 0
        %v596 = vsel %vm277, %v544, 0
        %v599 = vsel %vm277, %v545, 0
        %v602 = vsel %vm277, %v546, 0
        %v605 = vsel %vm277, %v547, 0
        %v608 = vsel %vm277, %v548, 0
        %v611 = vsel %vm277, %v549, 0
        %v614 = vsel %vm277, %v550, 0
        %v617 = vsel %vm277, %v551, 0
        %v620 = vsel %vm277, %v552, 0
        %v623 = vsel %vm277, %v553, 0
        %v626 = vsel %vm277, %v554, 0
        %v629 = vsel %vm277, %v555, 0
        %v632 = vsel %vm277, %v556, 0
        %v635 = vsel %vm277, %v557, 0
        %v638 = vsel %vm277, %v558, 0
        %v641 = vsel %vm277, %v559, 0
        %v644 = vsel %vm277, %v560, 0
        %v647 = vsel %vm277, %v561, 0
        %v650 = vsel %vm277, %v562, 0
        %v653 = vsel %vm277, %v563, 0
        %v656 = vsel %vm277, %v564, 0
        %v659 = vsel %vm277, %v565, 0
        %v662 = vsel %vm277, %v566, 0
        %v665 = vsel %vm277, %v567, 0
        %vm667 = vcmask 1043456
        %v669 = vsel %vm667, %v288, 0
        %671 = vmatpush.msra.mxu0 0.0
        %672 = vmatpush.msra.mxu0 0.0
        %673 = vmatpush.msra.mxu0 0.0
        %674 = vmatpush.msra.mxu0 0.0
        %675 = vmatpush.msra.mxu0 0.0
        %676 = vmatpush.msra.mxu0 0.0
        %677 = vmatpush.msra.mxu0 0.0
        %678 = vmatpush.msra.mxu0 0.0
        %679 = vmatpush.msra.mxu0 0.0
        %680 = vmatpush.msra.mxu0 0.0
        %681 = vmatpush.msra.mxu0 0.0
        %682 = vmatpush.msra.mxu0 0.0
        %683 = vmatpush.msra.mxu0 0.0
        %684 = vmatpush.msra.mxu0 0.0
        %685 = vmatpush.msra.mxu0 0.0
        %686 = vmatpush.msra.mxu0 %v669
        %687 = vmatmul.f32.gmra.mxu0 %v572
        %v688 = vpop.f32.mrf.mxu0
        %v689 = vadd.f32 %v569, %v688
        %690 = vmatmul.f32.gmra.mxu0 %v575
        %v691 = vpop.f32.mrf.mxu0
        %v692 = vadd.f32 %v569, %v691
        %693 = vmatmul.f32.gmra.mxu0 %v578
        %v694 = vpop.f32.mrf.mxu0
        %v695 = vadd.f32 %v569, %v694
        %696 = vmatmul.f32.gmra.mxu0 %v581
        %v697 = vpop.f32.mrf.mxu0
        %v698 = vadd.f32 %v569, %v697
        %699 = vmatmul.f32.gmra.mxu0 %v584
        %v700 = vpop.f32.mrf.mxu0
        %v701 = vadd.f32 %v569, %v700
        %702 = vmatmul.f32.gmra.mxu0 %v587
        %v703 = vpop.f32.mrf.mxu0
        %v704 = vadd.f32 %v569, %v703
        %705 = vmatmul.f32.gmra.mxu0 %v590
        %v706 = vpop.f32.mrf.mxu0
        %v707 = vadd.f32 %v569, %v706
        %708 = vmatmul.f32.gmra.mxu0 %v593
        %v709 = vpop.f32.mrf.mxu0
        %v710 = vadd.f32 %v569, %v709
        %711 = vmatmul.f32.gmra.mxu0 %v596
        %v712 = vpop.f32.mrf.mxu0
        %v713 = vadd.f32 %v569, %v712
        %714 = vmatmul.f32.gmra.mxu0 %v599
        %v715 = vpop.f32.mrf.mxu0
        %v716 = vadd.f32 %v569, %v715
        %717 = vmatmul.f32.gmra.mxu0 %v602
        %v718 = vpop.f32.mrf.mxu0
        %v719 = vadd.f32 %v569, %v718
        %720 = vmatmul.f32.gmra.mxu0 %v605
        %v721 = vpop.f32.mrf.mxu0
        %v722 = vadd.f32 %v569, %v721
        %723 = vmatmul.f32.gmra.mxu0 %v608
        %v724 = vpop.f32.mrf.mxu0
        %v725 = vadd.f32 %v569, %v724
        %726 = vmatmul.f32.gmra.mxu0 %v611
        %v727 = vpop.f32.mrf.mxu0
        %v728 = vadd.f32 %v569, %v727
        %729 = vmatmul.f32.gmra.mxu0 %v614
        %v730 = vpop.f32.mrf.mxu0
        %v731 = vadd.f32 %v569, %v730
        %732 = vmatmul.f32.gmra.mxu0 %v617
        %v733 = vpop.f32.mrf.mxu0
        %v734 = vadd.f32 %v569, %v733
        %735 = vmatmul.f32.gmra.mxu0 %v620
        %v736 = vpop.f32.mrf.mxu0
        %v737 = vadd.f32 %v569, %v736
        %738 = vmatmul.f32.gmra.mxu0 %v623
        %v739 = vpop.f32.mrf.mxu0
        %v740 = vadd.f32 %v569, %v739
        %741 = vmatmul.f32.gmra.mxu0 %v626
        %v742 = vpop.f32.mrf.mxu0
        %v743 = vadd.f32 %v569, %v742
        %744 = vmatmul.f32.gmra.mxu0 %v629
        %v745 = vpop.f32.mrf.mxu0
        %v746 = vadd.f32 %v569, %v745
        %747 = vmatmul.f32.gmra.mxu0 %v632
        %v748 = vpop.f32.mrf.mxu0
        %v749 = vadd.f32 %v569, %v748
        %750 = vmatmul.f32.gmra.mxu0 %v635
        %v751 = vpop.f32.mrf.mxu0
        %v752 = vadd.f32 %v569, %v751
        %753 = vmatmul.f32.gmra.mxu0 %v638
        %v754 = vpop.f32.mrf.mxu0
        %v755 = vadd.f32 %v569, %v754
        %756 = vmatmul.f32.gmra.mxu0 %v641
        %v757 = vpop.f32.mrf.mxu0
        %v758 = vadd.f32 %v569, %v757
        %759 = vmatmul.f32.gmra.mxu0 %v644
        %v760 = vpop.f32.mrf.mxu0
        %v761 = vadd.f32 %v569, %v760
        %762 = vmatmul.f32.gmra.mxu0 %v647
        %v763 = vpop.f32.mrf.mxu0
        %v764 = vadd.f32 %v569, %v763
        %765 = vmatmul.f32.gmra.mxu0 %v650
        %v766 = vpop.f32.mrf.mxu0
        %v767 = vadd.f32 %v569, %v766
        %768 = vmatmul.f32.gmra.mxu0 %v653
        %v769 = vpop.f32.mrf.mxu0
        %v770 = vadd.f32 %v569, %v769
        %771 = vmatmul.f32.gmra.mxu0 %v656
        %v772 = vpop.f32.mrf.mxu0
        %v773 = vadd.f32 %v569, %v772
        %774 = vmatmul.f32.gmra.mxu0 %v659
        %v775 = vpop.f32.mrf.mxu0
        %v776 = vadd.f32 %v569, %v775
        %777 = vmatmul.f32.gmra.mxu0 %v662
        %v778 = vpop.f32.mrf.mxu0
        %v779 = vadd.f32 %v569, %v778
        %780 = vmatmul.f32.gmra.mxu0 %v665
        %v781 = vpop.f32.mrf.mxu0
        %v782 = vadd.f32 %v569, %v781
        %783 = vdwg.mxu0
        %v784 = vmax.f32 %v689, 0.0
        %v785 = vmax.f32 %v692, 0.0
        %v786 = vmax.f32 %v695, 0.0
        %v787 = vmax.f32 %v698, 0.0
        %v788 = vmax.f32 %v701, 0.0
        %v789 = vmax.f32 %v704, 0.0
        %v790 = vmax.f32 %v707, 0.0
        %v791 = vmax.f32 %v710, 0.0
        %v792 = vmax.f32 %v713, 0.0
        %v793 = vmax.f32 %v716, 0.0
        %v794 = vmax.f32 %v719, 0.0
        %v795 = vmax.f32 %v722, 0.0
        %v796 = vmax.f32 %v725, 0.0
        %v797 = vmax.f32 %v728, 0.0
        %v798 = vmax.f32 %v731, 0.0
        %v799 = vmax.f32 %v734, 0.0
        %v800 = vmax.f32 %v737, 0.0
        %v801 = vmax.f32 %v740, 0.0
        %v802 = vmax.f32 %v743, 0.0
        %v803 = vmax.f32 %v746, 0.0
        %v804 = vmax.f32 %v749, 0.0
        %v805 = vmax.f32 %v752, 0.0
        %v806 = vmax.f32 %v755, 0.0
        %v807 = vmax.f32 %v758, 0.0
        %v808 = vmax.f32 %v761, 0.0
        %v809 = vmax.f32 %v764, 0.0
        %v810 = vmax.f32 %v767, 0.0
        %v811 = vmax.f32 %v770, 0.0
        %v812 = vmax.f32 %v773, 0.0
        %v813 = vmax.f32 %v776, 0.0
        %v814 = vmax.f32 %v779, 0.0
        %v815 = vmax.f32 %v782, 0.0
        %vm816 = vcmask 1040384
        %v817 = vrot.slane %v536, 7
        %v818 = vrot.slane %v537, 7
        %v819 = vsel %vm816, %v817, %v818
        %v820 = vrot.slane %v538, 7
        %v821 = vrot.slane %v539, 7
        %v822 = vsel %vm816, %v820, %v821
        %v823 = vrot.slane %v540, 7
        %v824 = vrot.slane %v541, 7
        %v825 = vsel %vm816, %v823, %v824
        %v826 = vrot.slane %v542, 7
        %v827 = vrot.slane %v543, 7
        %v828 = vsel %vm816, %v826, %v827
        %v829 = vrot.slane %v544, 7
        %v830 = vrot.slane %v545, 7
        %v831 = vsel %vm816, %v829, %v830
        %v832 = vrot.slane %v546, 7
        %v833 = vrot.slane %v547, 7
        %v834 = vsel %vm816, %v832, %v833
        %v835 = vrot.slane %v548, 7
        %v836 = vrot.slane %v549, 7
        %v837 = vsel %vm816, %v835, %v836
        %v838 = vrot.slane %v550, 7
        %v839 = vrot.slane %v551, 7
        %v840 = vsel %vm816, %v838, %v839
        %v841 = vrot.slane %v552, 7
        %v842 = vrot.slane %v553, 7
        %v843 = vsel %vm816, %v841, %v842
        %v844 = vrot.slane %v554, 7
        %v845 = vrot.slane %v555, 7
        %v846 = vsel %vm816, %v844, %v845
        %v847 = vrot.slane %v556, 7
        %v848 = vrot.slane %v557, 7
        %v849 = vsel %vm816, %v847, %v848
        %v850 = vrot.slane %v558, 7
        %v851 = vrot.slane %v559, 7
        %v852 = vsel %vm816, %v850, %v851
        %v853 = vrot.slane %v560, 7
        %v854 = vrot.slane %v561, 7
        %v855 = vsel %vm816, %v853, %v854
        %v856 = vrot.slane %v562, 7
        %v857 = vrot.slane %v563, 7
        %v858 = vsel %vm816, %v856, %v857
        %v859 = vrot.slane %v564, 7
        %v860 = vrot.slane %v565, 7
        %v861 = vsel %vm816, %v859, %v860
        %v862 = vrot.slane %v566, 7
        %v863 = vrot.slane %v567, 7
        %v864 = vsel %vm816, %v862, %v863
        %v897 = vsel %vm816, 0.0, %v817
        %v898 = vsel %vm816, 0.0, %v820
        %v899 = vsel %vm816, 0.0, %v823
        %v900 = vsel %vm816, 0.0, %v826
        %v901 = vsel %vm816, 0.0, %v829
        %v902 = vsel %vm816, 0.0, %v832
        %v903 = vsel %vm816, 0.0, %v835
        %v904 = vsel %vm816, 0.0, %v838
        %v905 = vsel %vm816, 0.0, %v841
        %v906 = vsel %vm816, 0.0, %v844
        %v907 = vsel %vm816, 0.0, %v847
        %v908 = vsel %vm816, 0.0, %v850
        %v909 = vsel %vm816, 0.0, %v853
        %v910 = vsel %vm816, 0.0, %v856
        %v911 = vsel %vm816, 0.0, %v859
        %v912 = vsel %vm816, 0.0, %v862
        %v913 = vsel %vm816, %v818, 0.0
        %v914 = vsel %vm816, %v821, 0.0
        %v915 = vsel %vm816, %v824, 0.0
        %v916 = vsel %vm816, %v827, 0.0
        %v917 = vsel %vm816, %v830, 0.0
        %v918 = vsel %vm816, %v833, 0.0
        %v919 = vsel %vm816, %v836, 0.0
        %v920 = vsel %vm816, %v839, 0.0
        %v921 = vsel %vm816, %v842, 0.0
        %v922 = vsel %vm816, %v845, 0.0
        %v923 = vsel %vm816, %v848, 0.0
        %v924 = vsel %vm816, %v851, 0.0
        %v925 = vsel %vm816, %v854, 0.0
        %v926 = vsel %vm816, %v857, 0.0
        %v927 = vsel %vm816, %v860, 0.0
        %v928 = vsel %vm816, %v863, 0.0
        %v961 = vrot.slane %v897, 2
        %v962 = vrot.slane %v897, 4
        %v963 = vrot.slane %v897, 6
        %v964 = vrot.slane %v819, 2
        %v965 = vrot.slane %v819, 4
        %v966 = vrot.slane %v819, 6
        %v967 = vrot.slane %v898, 2
        %v968 = vrot.slane %v898, 4
        %v969 = vrot.slane %v898, 6
        %v970 = vrot.slane %v822, 2
        %v971 = vrot.slane %v822, 4
        %v972 = vrot.slane %v822, 6
        %v973 = vrot.slane %v899, 2
        %v974 = vrot.slane %v899, 4
        %v975 = vrot.slane %v899, 6
        %v976 = vrot.slane %v825, 2
        %v977 = vrot.slane %v825, 4
        %v978 = vrot.slane %v825, 6
        %v979 = vrot.slane %v900, 2
        %v980 = vrot.slane %v900, 4
        %v981 = vrot.slane %v900, 6
        %v982 = vrot.slane %v828, 2
        %v983 = vrot.slane %v828, 4
        %v984 = vrot.slane %v828, 6
        %v985 = vrot.slane %v901, 2
        %v986 = vrot.slane %v901, 4
        %v987 = vrot.slane %v901, 6
        %v988 = vrot.slane %v831, 2
        %v989 = vrot.slane %v831, 4
        %v990 = vrot.slane %v831, 6
        %v991 = vrot.slane %v902, 2
        %v992 = vrot.slane %v902, 4
        %v993 = vrot.slane %v902, 6
        %v994 = vrot.slane %v834, 2
        %v995 = vrot.slane %v834, 4
        %v996 = vrot.slane %v834, 6
        %v997 = vrot.slane %v903, 2
        %v998 = vrot.slane %v903, 4
        %v999 = vrot.slane %v903, 6
        %v1000 = vrot.slane %v837, 2
        %v1001 = vrot.slane %v837, 4
        %v1002 = vrot.slane %v837, 6
        %v1003 = vrot.slane %v904, 2
        %v1004 = vrot.slane %v904, 4
        %v1005 = vrot.slane %v904, 6
        %v1006 = vrot.slane %v840, 2
        %v1007 = vrot.slane %v840, 4
        %v1008 = vrot.slane %v840, 6
        %v1009 = vrot.slane %v905, 2
        %v1010 = vrot.slane %v905, 4
        %v1011 = vrot.slane %v905, 6
        %v1012 = vrot.slane %v843, 2
        %v1013 = vrot.slane %v843, 4
        %v1014 = vrot.slane %v843, 6
        %v1015 = vrot.slane %v906, 2
        %v1016 = vrot.slane %v906, 4
        %v1017 = vrot.slane %v906, 6
        %v1018 = vrot.slane %v846, 2
        %v1019 = vrot.slane %v846, 4
        %v1020 = vrot.slane %v846, 6
        %v1021 = vrot.slane %v907, 2
        %v1022 = vrot.slane %v907, 4
        %v1023 = vrot.slane %v907, 6
        %v1024 = vrot.slane %v849, 2
        %v1025 = vrot.slane %v849, 4
        %v1026 = vrot.slane %v849, 6
        %v1027 = vrot.slane %v908, 2
        %v1028 = vrot.slane %v908, 4
        %v1029 = vrot.slane %v908, 6
        %v1030 = vrot.slane %v852, 2
        %v1031 = vrot.slane %v852, 4
        %v1032 = vrot.slane %v852, 6
        %v1033 = vrot.slane %v909, 2
        %v1034 = vrot.slane %v909, 4
        %v1035 = vrot.slane %v909, 6
        %v1036 = vrot.slane %v855, 2
        %v1037 = vrot.slane %v855, 4
        %v1038 = vrot.slane %v855, 6
        %v1039 = vrot.slane %v910, 2
        %v1040 = vrot.slane %v910, 4
        %v1041 = vrot.slane %v910, 6
        %v1042 = vrot.slane %v858, 2
        %v1043 = vrot.slane %v858, 4
        %v1044 = vrot.slane %v858, 6
        %v1045 = vrot.slane %v911, 2
        %v1046 = vrot.slane %v911, 4
        %v1047 = vrot.slane %v911, 6
        %v1048 = vrot.slane %v861, 2
        %v1049 = vrot.slane %v861, 4
        %v1050 = vrot.slane %v861, 6
        %v1051 = vrot.slane %v912, 2
        %v1052 = vrot.slane %v912, 4
        %v1053 = vrot.slane %v912, 6
        %v1054 = vrot.slane %v864, 2
        %v1055 = vrot.slane %v864, 4
        %v1056 = vrot.slane %v864, 6
        %1057 = vst [vmem:[#allocation1] ss:$4 sm:$0xff] %v897
        %s1058 = scalar_lea.vmem [#allocation1], 1
        %1059 = vst [vmem:[%s1058] ss:$4 sm:$0xff] %v961
        %s1060 = scalar_lea.vmem [#allocation1], 2
        %1061 = vst [vmem:[%s1060] ss:$4 sm:$0xff] %v962
        %s1062 = scalar_lea.vmem [#allocation1], 3
        %1063 = vst [vmem:[%s1062] ss:$4 sm:$0xff] %v963
        %s1064 = scalar_lea.vmem [#allocation1], 32
        %1065 = vst [vmem:[%s1064] ss:$4 sm:$0xff] %v819
        %s1066 = scalar_lea.vmem [#allocation1], 33
        %1067 = vst [vmem:[%s1066] ss:$4 sm:$0xff] %v964
        %s1068 = scalar_lea.vmem [#allocation1], 34
        %1069 = vst [vmem:[%s1068] ss:$4 sm:$0xff] %v965
        %s1070 = scalar_lea.vmem [#allocation1], 35
        %1071 = vst [vmem:[%s1070] ss:$4 sm:$0xff] %v966
        %v1072 = vld.sshfl [vmem:[#allocation1] sm:$0xff pattern:$0x73625140]
        %v1073 = vld.sshfl [vmem:[#allocation1 + $0x20] sm:$0xff pattern:$0x73625140]
        %1074 = vst [vmem:[#allocation1] ss:$4 sm:$0xff] %v913
        %1075 = vst [vmem:[%s1058] ss:$4 sm:$0xff] %v898
        %1076 = vst [vmem:[%s1060] ss:$4 sm:$0xff] %v967
        %1077 = vst [vmem:[%s1062] ss:$4 sm:$0xff] %v968
        %1078 = vst [vmem:[%s1064] ss:$4 sm:$0xff] %v969
        %1079 = vst [vmem:[%s1066] ss:$4 sm:$0xff] %v822
        %1080 = vst [vmem:[%s1068] ss:$4 sm:$0xff] %v970
        %1081 = vst [vmem:[%s1070] ss:$4 sm:$0xff] %v971
        %v1082 = vld.sshfl [vmem:[#allocation1] sm:$0xff pattern:$0x73625140]
        %v1083 = vld.sshfl [vmem:[#allocation1 + $0x20] sm:$0xff pattern:$0x73625140]
        %1084 = vst [vmem:[#allocation1] ss:$4 sm:$0xff] %v972
        %1085 = vst [vmem:[%s1058] ss:$4 sm:$0xff] %v914
        %1086 = vst [vmem:[%s1060] ss:$4 sm:$0xff] %v899
        %1087 = vst [vmem:[%s1062] ss:$4 sm:$0xff] %v973
        %1088 = vst [vmem:[%s1064] ss:$4 sm:$0xff] %v974
        %1089 = vst [vmem:[%s1066] ss:$4 sm:$0xff] %v975
        %1090 = vst [vmem:[%s1068] ss:$4 sm:$0xff] %v825
        %1091 = vst [vmem:[%s1070] ss:$4 sm:$0xff] %v976
        %v1092 = vld.sshfl [vmem:[#allocation1] sm:$0xff pattern:$0x73625140]
        %v1093 = vld.sshfl [vmem:[#allocation1 + $0x20] sm:$0xff pattern:$0x73625140]
        %1094 = vst [vmem:[#allocation1] ss:$4 sm:$0xff] %v977
        %1095 = vst [vmem:[%s1058] ss:$4 sm:$0xff] %v978
        %1096 = vst [vmem:[%s1060] ss:$4 sm:$0xff] %v915
        %1097 = vst [vmem:[%s1062] ss:$4 sm:$0xff] %v900
        %1098 = vst [vmem:[%s1064] ss:$4 sm:$0xff] %v979
        %1099 = vst [vmem:[%s1066] ss:$4 sm:$0xff] %v980
        %1100 = vst [vmem:[%s1068] ss:$4 sm:$0xff] %v981
        %1101 = vst [vmem:[%s1070] ss:$4 sm:$0xff] %v828
        %v1102 = vld.sshfl [vmem:[#allocation1] sm:$0xff pattern:$0x73625140]
        %v1103 = vld.sshfl [vmem:[#allocation1 + $0x20] sm:$0xff pattern:$0x73625140]
        %1104 = vst [vmem:[#allocation1] ss:$4 sm:$0xff] %v982
        %1105 = vst [vmem:[%s1058] ss:$4 sm:$0xff] %v983
        %1106 = vst [vmem:[%s1060] ss:$4 sm:$0xff] %v984
        %1107 = vst [vmem:[%s1062] ss:$4 sm:$0xff] %v916
        %1108 = vst [vmem:[%s1064] ss:$4 sm:$0xff] %v901
        %1109 = vst [vmem:[%s1066] ss:$4 sm:$0xff] %v985
        %1110 = vst [vmem:[%s1068] ss:$4 sm:$0xff] %v986
        %1111 = vst [vmem:[%s1070] ss:$4 sm:$0xff] %v987
        %v1112 = vld.sshfl [vmem:[#allocation1] sm:$0xff pattern:$0x73625140]
        %v1113 = vld.sshfl [vmem:[#allocation1 + $0x20] sm:$0xff pattern:$0x73625140]
        %1114 = vst [vmem:[#allocation1] ss:$4 sm:$0xff] %v831
        %1115 = vst [vmem:[%s1058] ss:$4 sm:$0xff] %v988
        %1116 = vst [vmem:[%s1060] ss:$4 sm:$0xff] %v989
        %1117 = vst [vmem:[%s1062] ss:$4 sm:$0xff] %v990
        %1118 = vst [vmem:[%s1064] ss:$4 sm:$0xff] %v917
        %1119 = vst [vmem:[%s1066] ss:$4 sm:$0xff] %v902
        %1120 = vst [vmem:[%s1068] ss:$4 sm:$0xff] %v991
        %1121 = vst [vmem:[%s1070] ss:$4 sm:$0xff] %v992
        %v1122 = vld.sshfl [vmem:[#allocation1] sm:$0xff pattern:$0x73625140]
        %v1123 = vld.sshfl [vmem:[#allocation1 + $0x20] sm:$0xff pattern:$0x73625140]
        %1124 = vst [vmem:[#allocation1] ss:$4 sm:$0xff] %v993
        %1125 = vst [vmem:[%s1058] ss:$4 sm:$0xff] %v834
        %1126 = vst [vmem:[%s1060] ss:$4 sm:$0xff] %v994
        %1127 = vst [vmem:[%s1062] ss:$4 sm:$0xff] %v995
        %1128 = vst [vmem:[%s1064] ss:$4 sm:$0xff] %v996
        %1129 = vst [vmem:[%s1066] ss:$4 sm:$0xff] %v918
        %1130 = vst [vmem:[%s1068] ss:$4 sm:$0xff] %v903
        %1131 = vst [vmem:[%s1070] ss:$4 sm:$0xff] %v997
        %v1132 = vld.sshfl [vmem:[#allocation1] sm:$0xff pattern:$0x73625140]
        %v1133 = vld.sshfl [vmem:[#allocation1 + $0x20] sm:$0xff pattern:$0x73625140]
        %1134 = vst [vmem:[#allocation1] ss:$4 sm:$0xff] %v998
        %1135 = vst [vmem:[%s1058] ss:$4 sm:$0xff] %v999
        %1136 = vst [vmem:[%s1060] ss:$4 sm:$0xff] %v837
        %1137 = vst [vmem:[%s1062] ss:$4 sm:$0xff] %v1000
        %1138 = vst [vmem:[%s1064] ss:$4 sm:$0xff] %v1001
        %1139 = vst [vmem:[%s1066] ss:$4 sm:$0xff] %v1002
        %1140 = vst [vmem:[%s1068] ss:$4 sm:$0xff] %v919
        %1141 = vst [vmem:[%s1070] ss:$4 sm:$0xff] %v904
        %v1142 = vld.sshfl [vmem:[#allocation1] sm:$0xff pattern:$0x73625140]
        %v1143 = vld.sshfl [vmem:[#allocation1 + $0x20] sm:$0xff pattern:$0x73625140]
        %1144 = vst [vmem:[#allocation1] ss:$4 sm:$0xff] %v1003
        %1145 = vst [vmem:[%s1058] ss:$4 sm:$0xff] %v1004
        %1146 = vst [vmem:[%s1060] ss:$4 sm:$0xff] %v1005
        %1147 = vst [vmem:[%s1062] ss:$4 sm:$0xff] %v840
        %1148 = vst [vmem:[%s1064] ss:$4 sm:$0xff] %v1006
        %1149 = vst [vmem:[%s1066] ss:$4 sm:$0xff] %v1007
        %1150 = vst [vmem:[%s1068] ss:$4 sm:$0xff] %v1008
        %1151 = vst [vmem:[%s1070] ss:$4 sm:$0xff] %v920
        %v1152 = vld.sshfl [vmem:[#allocation1] sm:$0xff pattern:$0x73625140]
        %v1153 = vld.sshfl [vmem:[#allocation1 + $0x20] sm:$0xff pattern:$0x73625140]
        %1154 = vst [vmem:[#allocation1] ss:$4 sm:$0xff] %v905
        %1155 = vst [vmem:[%s1058] ss:$4 sm:$0xff] %v1009
        %1156 = vst [vmem:[%s1060] ss:$4 sm:$0xff] %v1010
        %1157 = vst [vmem:[%s1062] ss:$4 sm:$0xff] %v1011
        %1158 = vst [vmem:[%s1064] ss:$4 sm:$0xff] %v843
        %1159 = vst [vmem:[%s1066] ss:$4 sm:$0xff] %v1012
        %1160 = vst [vmem:[%s1068] ss:$4 sm:$0xff] %v1013
        %1161 = vst [vmem:[%s1070] ss:$4 sm:$0xff] %v1014
        %v1162 = vld.sshfl [vmem:[#allocation1] sm:$0xff pattern:$0x73625140]
        %v1163 = vld.sshfl [vmem:[#allocation1 + $0x20] sm:$0xff pattern:$0x73625140]
        %1164 = vst [vmem:[#allocation1] ss:$4 sm:$0xff] %v921
        %1165 = vst [vmem:[%s1058] ss:$4 sm:$0xff] %v906
        %1166 = vst [vmem:[%s1060] ss:$4 sm:$0xff] %v1015
        %1167 = vst [vmem:[%s1062] ss:$4 sm:$0xff] %v1016
        %1168 = vst [vmem:[%s1064] ss:$4 sm:$0xff] %v1017
        %1169 = vst [vmem:[%s1066] ss:$4 sm:$0xff] %v846
        %1170 = vst [vmem:[%s1068] ss:$4 sm:$0xff] %v1018
        %1171 = vst [vmem:[%s1070] ss:$4 sm:$0xff] %v1019
        %v1172 = vld.sshfl [vmem:[#allocation1] sm:$0xff pattern:$0x73625140]
        %v1173 = vld.sshfl [vmem:[#allocation1 + $0x20] sm:$0xff pattern:$0x73625140]
        %1174 = vst [vmem:[#allocation1] ss:$4 sm:$0xff] %v1020
        %1175 = vst [vmem:[%s1058] ss:$4 sm:$0xff] %v922
        %1176 = vst [vmem:[%s1060] ss:$4 sm:$0xff] %v907
        %1177 = vst [vmem:[%s1062] ss:$4 sm:$0xff] %v1021
        %1178 = vst [vmem:[%s1064] ss:$4 sm:$0xff] %v1022
        %1179 = vst [vmem:[%s1066] ss:$4 sm:$0xff] %v1023
        %1180 = vst [vmem:[%s1068] ss:$4 sm:$0xff] %v849
        %1181 = vst [vmem:[%s1070] ss:$4 sm:$0xff] %v1024
        %v1182 = vld.sshfl [vmem:[#allocation1] sm:$0xff pattern:$0x73625140]
        %v1183 = vld.sshfl [vmem:[#allocation1 + $0x20] sm:$0xff pattern:$0x73625140]
        %1184 = vst [vmem:[#allocation1] ss:$4 sm:$0xff] %v1025
        %1185 = vst [vmem:[%s1058] ss:$4 sm:$0xff] %v1026
        %1186 = vst [vmem:[%s1060] ss:$4 sm:$0xff] %v923
        %1187 = vst [vmem:[%s1062] ss:$4 sm:$0xff] %v908
        %1188 = vst [vmem:[%s1064] ss:$4 sm:$0xff] %v1027
        %1189 = vst [vmem:[%s1066] ss:$4 sm:$0xff] %v1028
        %1190 = vst [vmem:[%s1068] ss:$4 sm:$0xff] %v1029
        %1191 = vst [vmem:[%s1070] ss:$4 sm:$0xff] %v852
        %v1192 = vld.sshfl [vmem:[#allocation1] sm:$0xff pattern:$0x73625140]
        %v1193 = vld.sshfl [vmem:[#allocation1 + $0x20] sm:$0xff pattern:$0x73625140]
        %1194 = vst [vmem:[#allocation1] ss:$4 sm:$0xff] %v1030
        %1195 = vst [vmem:[%s1058] ss:$4 sm:$0xff] %v1031
        %1196 = vst [vmem:[%s1060] ss:$4 sm:$0xff] %v1032
        %1197 = vst [vmem:[%s1062] ss:$4 sm:$0xff] %v924
        %1198 = vst [vmem:[%s1064] ss:$4 sm:$0xff] %v909
        %1199 = vst [vmem:[%s1066] ss:$4 sm:$0xff] %v1033
        %1200 = vst [vmem:[%s1068] ss:$4 sm:$0xff] %v1034
        %1201 = vst [vmem:[%s1070] ss:$4 sm:$0xff] %v1035
        %v1202 = vld.sshfl [vmem:[#allocation1] sm:$0xff pattern:$0x73625140]
        %v1203 = vld.sshfl [vmem:[#allocation1 + $0x20] sm:$0xff pattern:$0x73625140]
        %1204 = vst [vmem:[#allocation1] ss:$4 sm:$0xff] %v855
        %1205 = vst [vmem:[%s1058] ss:$4 sm:$0xff] %v1036
        %1206 = vst [vmem:[%s1060] ss:$4 sm:$0xff] %v1037
        %1207 = vst [vmem:[%s1062] ss:$4 sm:$0xff] %v1038
        %1208 = vst [vmem:[%s1064] ss:$4 sm:$0xff] %v925
        %1209 = vst [vmem:[%s1066] ss:$4 sm:$0xff] %v910
        %1210 = vst [vmem:[%s1068] ss:$4 sm:$0xff] %v1039
        %1211 = vst [vmem:[%s1070] ss:$4 sm:$0xff] %v1040
        %v1212 = vld.sshfl [vmem:[#allocation1] sm:$0xff pattern:$0x73625140]
        %v1213 = vld.sshfl [vmem:[#allocation1 + $0x20] sm:$0xff pattern:$0x73625140]
        %1214 = vst [vmem:[#allocation1] ss:$4 sm:$0xff] %v1041
        %1215 = vst [vmem:[%s1058] ss:$4 sm:$0xff] %v858
        %1216 = vst [vmem:[%s1060] ss:$4 sm:$0xff] %v1042
        %1217 = vst [vmem:[%s1062] ss:$4 sm:$0xff] %v1043
        %1218 = vst [vmem:[%s1064] ss:$4 sm:$0xff] %v1044
        %1219 = vst [vmem:[%s1066] ss:$4 sm:$0xff] %v926
        %1220 = vst [vmem:[%s1068] ss:$4 sm:$0xff] %v911
        %1221 = vst [vmem:[%s1070] ss:$4 sm:$0xff] %v1045
        %v1222 = vld.sshfl [vmem:[#allocation1] sm:$0xff pattern:$0x73625140]
        %v1223 = vld.sshfl [vmem:[#allocation1 + $0x20] sm:$0xff pattern:$0x73625140]
        %1224 = vst [vmem:[#allocation1] ss:$4 sm:$0xff] %v1046
        %1225 = vst [vmem:[%s1058] ss:$4 sm:$0xff] %v1047
        %1226 = vst [vmem:[%s1060] ss:$4 sm:$0xff] %v861
        %1227 = vst [vmem:[%s1062] ss:$4 sm:$0xff] %v1048
        %1228 = vst [vmem:[%s1064] ss:$4 sm:$0xff] %v1049
        %1229 = vst [vmem:[%s1066] ss:$4 sm:$0xff] %v1050
        %1230 = vst [vmem:[%s1068] ss:$4 sm:$0xff] %v927
        %1231 = vst [vmem:[%s1070] ss:$4 sm:$0xff] %v912
        %v1232 = vld.sshfl [vmem:[#allocation1] sm:$0xff pattern:$0x73625140]
        %v1233 = vld.sshfl [vmem:[#allocation1 + $0x20] sm:$0xff pattern:$0x73625140]
        %1234 = vst [vmem:[#allocation1] ss:$4 sm:$0xff] %v1051
        %1235 = vst [vmem:[%s1058] ss:$4 sm:$0xff] %v1052
        %1236 = vst [vmem:[%s1060] ss:$4 sm:$0xff] %v1053
        %1237 = vst [vmem:[%s1062] ss:$4 sm:$0xff] %v864
        %1238 = vst [vmem:[%s1064] ss:$4 sm:$0xff] %v1054
        %1239 = vst [vmem:[%s1066] ss:$4 sm:$0xff] %v1055
        %1240 = vst [vmem:[%s1068] ss:$4 sm:$0xff] %v1056
        %1241 = vst [vmem:[%s1070] ss:$4 sm:$0xff] %v928
        %v1242 = vld.sshfl [vmem:[#allocation1] sm:$0xff pattern:$0x73625140]
        %v1243 = vld.sshfl [vmem:[#allocation1 + $0x20] sm:$0xff pattern:$0x73625140]
        %1280 = vst.msk [vmem:[#allocation2 + $0x12] sm:$0xff] %vm277, %v1072
        %1281 = vst.msk [vmem:[#allocation2 + $0x1a] sm:$0xff] %vm277, %v1073
        %1282 = vst.msk [vmem:[#allocation2 + $0x22] sm:$0xff] %vm277, %v1082
        %1283 = vst.msk [vmem:[#allocation2 + $0x2a] sm:$0xff] %vm277, %v1083
        %1284 = vst.msk [vmem:[#allocation2 + $0x32] sm:$0xff] %vm277, %v1092
        %1285 = vst.msk [vmem:[#allocation2 + $0x3a] sm:$0xff] %vm277, %v1093
        %1286 = vst.msk [vmem:[#allocation2 + $0x42] sm:$0xff] %vm277, %v1102
        %1287 = vst.msk [vmem:[#allocation2 + $0x4a] sm:$0xff] %vm277, %v1103
        %1288 = vst.msk [vmem:[#allocation2 + $0x52] sm:$0xff] %vm277, %v1112
        %1289 = vst.msk [vmem:[#allocation2 + $0x5a] sm:$0xff] %vm277, %v1113
        %1290 = vst.msk [vmem:[#allocation2 + $0x62] sm:$0xff] %vm277, %v1122
        %1291 = vst.msk [vmem:[#allocation2 + $0x6a] sm:$0xff] %vm277, %v1123
        %1292 = vst.msk [vmem:[#allocation2 + $0x72] sm:$0xff] %vm277, %v1132
        %1293 = vst.msk [vmem:[#allocation2 + $0x7a] sm:$0xff] %vm277, %v1133
        %1294 = vst.msk [vmem:[#allocation2 + $0x82] sm:$0xff] %vm277, %v1142
        %1295 = vst.msk [vmem:[#allocation2 + $0x8a] sm:$0xff] %vm277, %v1143
        %1296 = vst.msk [vmem:[#allocation2 + $0x92] sm:$0xff] %vm277, %v1152
        %1297 = vst.msk [vmem:[#allocation2 + $0x9a] sm:$0xff] %vm277, %v1153
        %1298 = vst.msk [vmem:[#allocation2 + $0xa2] sm:$0xff] %vm277, %v1162
        %1299 = vst.msk [vmem:[#allocation2 + $0xaa] sm:$0xff] %vm277, %v1163
        %1300 = vst.msk [vmem:[#allocation2 + $0xb2] sm:$0xff] %vm277, %v1172
        %1301 = vst.msk [vmem:[#allocation2 + $0xba] sm:$0xff] %vm277, %v1173
        %1302 = vst.msk [vmem:[#allocation2 + $0xc2] sm:$0xff] %vm277, %v1182
        %1303 = vst.msk [vmem:[#allocation2 + $0xca] sm:$0xff] %vm277, %v1183
        %1304 = vst.msk [vmem:[#allocation2 + $0xd2] sm:$0xff] %vm277, %v1192
        %1305 = vst.msk [vmem:[#allocation2 + $0xda] sm:$0xff] %vm277, %v1193
        %1306 = vst.msk [vmem:[#allocation2 + $0xe2] sm:$0xff] %vm277, %v1202
        %1307 = vst.msk [vmem:[#allocation2 + $0xea] sm:$0xff] %vm277, %v1203
        %1308 = vst.msk [vmem:[#allocation2 + $0xf2] sm:$0xff] %vm277, %v1212
        %1309 = vst.msk [vmem:[#allocation2 + $0xfa] sm:$0xff] %vm277, %v1213
        %1310 = vst.msk [vmem:[#allocation2 + $0x102] sm:$0xff] %vm277, %v1222
        %1311 = vst.msk [vmem:[#allocation2 + $0x10a] sm:$0xff] %vm277, %v1223
        %1312 = vst.msk [vmem:[#allocation2 + $0x112] sm:$0xff] %vm277, %v1232
        %1313 = vst.msk [vmem:[#allocation2 + $0x11a] sm:$0xff] %vm277, %v1233
        %1314 = vst.msk [vmem:[#allocation2 + $0x122] sm:$0xff] %vm277, %v1242
        %1315 = vst.msk [vmem:[#allocation2 + $0x12a] sm:$0xff] %vm277, %v1243
        %v1316 = vld [vmem:[#allocation2] sm:$0xff]
        %v1317 = vld [vmem:[#allocation2 + $0x8] sm:$0xff]
        %v1318 = vld [vmem:[#allocation2 + $0x10] sm:$0xff]
        %v1319 = vld [vmem:[#allocation2 + $0x18] sm:$0xff]
        %v1320 = vld [vmem:[#allocation2 + $0x20] sm:$0xff]
        %v1321 = vld [vmem:[#allocation2 + $0x28] sm:$0xff]
        %v1322 = vld [vmem:[#allocation2 + $0x30] sm:$0xff]
        %v1323 = vld [vmem:[#allocation2 + $0x38] sm:$0xff]
        %v1324 = vld [vmem:[#allocation2 + $0x40] sm:$0xff]
        %v1325 = vld [vmem:[#allocation2 + $0x48] sm:$0xff]
        %v1326 = vld [vmem:[#allocation2 + $0x50] sm:$0xff]
        %v1327 = vld [vmem:[#allocation2 + $0x58] sm:$0xff]
        %v1328 = vld [vmem:[#allocation2 + $0x60] sm:$0xff]
        %v1329 = vld [vmem:[#allocation2 + $0x68] sm:$0xff]
        %v1330 = vld [vmem:[#allocation2 + $0x70] sm:$0xff]
        %v1331 = vld [vmem:[#allocation2 + $0x78] sm:$0xff]
        %v1332 = vld [vmem:[#allocation2 + $0x80] sm:$0xff]
        %v1333 = vld [vmem:[#allocation2 + $0x88] sm:$0xff]
        %v1334 = vld [vmem:[#allocation2 + $0x90] sm:$0xff]
        %v1335 = vld [vmem:[#allocation2 + $0x98] sm:$0xff]
        %v1336 = vld [vmem:[#allocation2 + $0xa0] sm:$0xff]
        %v1337 = vld [vmem:[#allocation2 + $0xa8] sm:$0xff]
        %v1338 = vld [vmem:[#allocation2 + $0xb0] sm:$0xff]
        %v1339 = vld [vmem:[#allocation2 + $0xb8] sm:$0xff]
        %v1340 = vld [vmem:[#allocation2 + $0xc0] sm:$0xff]
        %v1341 = vld [vmem:[#allocation2 + $0xc8] sm:$0xff]
        %v1342 = vld [vmem:[#allocation2 + $0xd0] sm:$0xff]
        %v1343 = vld [vmem:[#allocation2 + $0xd8] sm:$0xff]
        %v1344 = vld [vmem:[#allocation2 + $0xe0] sm:$0xff]
        %v1345 = vld [vmem:[#allocation2 + $0xe8] sm:$0xff]
        %v1346 = vld [vmem:[#allocation2 + $0xf0] sm:$0xff]
        %v1347 = vld [vmem:[#allocation2 + $0xf8] sm:$0xff]
        %v1348 = vld [vmem:[#allocation2 + $0x100] sm:$0xff]
        %v1349 = vld [vmem:[#allocation2 + $0x108] sm:$0xff]
        %v1350 = vld [vmem:[#allocation2 + $0x110] sm:$0xff]
        %v1351 = vld [vmem:[#allocation2 + $0x118] sm:$0xff]
        %v1352 = vld [vmem:[#allocation2 + $0x1] sm:$0xff]
        %v1353 = vld [vmem:[#allocation2 + $0x9] sm:$0xff]
        %v1354 = vld [vmem:[#allocation2 + $0x11] sm:$0xff]
        %v1355 = vld [vmem:[#allocation2 + $0x19] sm:$0xff]
        %v1356 = vld [vmem:[#allocation2 + $0x21] sm:$0xff]
        %v1357 = vld [vmem:[#allocation2 + $0x29] sm:$0xff]
        %v1358 = vld [vmem:[#allocation2 + $0x31] sm:$0xff]
        %v1359 = vld [vmem:[#allocation2 + $0x39] sm:$0xff]
        %v1360 = vld [vmem:[#allocation2 + $0x41] sm:$0xff]
        %v1361 = vld [vmem:[#allocation2 + $0x49] sm:$0xff]
        %v1362 = vld [vmem:[#allocation2 + $0x51] sm:$0xff]
        %v1363 = vld [vmem:[#allocation2 + $0x59] sm:$0xff]
        %v1364 = vld [vmem:[#allocation2 + $0x61] sm:$0xff]
        %v1365 = vld [vmem:[#allocation2 + $0x69] sm:$0xff]
        %v1366 = vld [vmem:[#allocation2 + $0x71] sm:$0xff]
        %v1367 = vld [vmem:[#allocation2 + $0x79] sm:$0xff]
        %v1368 = vld [vmem:[#allocation2 + $0x81] sm:$0xff]
        %v1369 = vld [vmem:[#allocation2 + $0x89] sm:$0xff]
        %v1370 = vld [vmem:[#allocation2 + $0x91] sm:$0xff]
        %v1371 = vld [vmem:[#allocation2 + $0x99] sm:$0xff]
        %v1372 = vld [vmem:[#allocation2 + $0xa1] sm:$0xff]
        %v1373 = vld [vmem:[#allocation2 + $0xa9] sm:$0xff]
        %v1374 = vld [vmem:[#allocation2 + $0xb1] sm:$0xff]
        %v1375 = vld [vmem:[#allocation2 + $0xb9] sm:$0xff]
        %v1376 = vld [vmem:[#allocation2 + $0xc1] sm:$0xff]
        %v1377 = vld [vmem:[#allocation2 + $0xc9] sm:$0xff]
        %v1378 = vld [vmem:[#allocation2 + $0xd1] sm:$0xff]
        %v1379 = vld [vmem:[#allocation2 + $0xd9] sm:$0xff]
        %v1380 = vld [vmem:[#allocation2 + $0xe1] sm:$0xff]
        %v1381 = vld [vmem:[#allocation2 + $0xe9] sm:$0xff]
        %v1382 = vld [vmem:[#allocation2 + $0xf1] sm:$0xff]
        %v1383 = vld [vmem:[#allocation2 + $0xf9] sm:$0xff]
        %v1384 = vld [vmem:[#allocation2 + $0x101] sm:$0xff]
        %v1385 = vld [vmem:[#allocation2 + $0x109] sm:$0xff]
        %v1386 = vld [vmem:[#allocation2 + $0x111] sm:$0xff]
        %v1387 = vld [vmem:[#allocation2 + $0x119] sm:$0xff]
        %v1388 = vld [vmem:[#allocation2 + $0x2] sm:$0xff]
        %v1389 = vld [vmem:[#allocation2 + $0xa] sm:$0xff]
        %v1390 = vld [vmem:[#allocation2 + $0x12] sm:$0xff]
        %v1391 = vld [vmem:[#allocation2 + $0x1a] sm:$0xff]
        %v1392 = vld [vmem:[#allocation2 + $0x22] sm:$0xff]
        %v1393 = vld [vmem:[#allocation2 + $0x2a] sm:$0xff]
        %v1394 = vld [vmem:[#allocation2 + $0x32] sm:$0xff]
        %v1395 = vld [vmem:[#allocation2 + $0x3a] sm:$0xff]
        %v1396 = vld [vmem:[#allocation2 + $0x42] sm:$0xff]
        %v1397 = vld [vmem:[#allocation2 + $0x4a] sm:$0xff]
        %v1398 = vld [vmem:[#allocation2 + $0x52] sm:$0xff]
        %v1399 = vld [vmem:[#allocation2 + $0x5a] sm:$0xff]
        %v1400 = vld [vmem:[#allocation2 + $0x62] sm:$0xff]
        %v1401 = vld [vmem:[#allocation2 + $0x6a] sm:$0xff]
        %v1402 = vld [vmem:[#allocation2 + $0x72] sm:$0xff]
        %v1403 = vld [vmem:[#allocation2 + $0x7a] sm:$0xff]
        %v1404 = vld [vmem:[#allocation2 + $0x82] sm:$0xff]
        %v1405 = vld [vmem:[#allocation2 + $0x8a] sm:$0xff]
        %v1406 = vld [vmem:[#allocation2 + $0x92] sm:$0xff]
        %v1407 = vld [vmem:[#allocation2 + $0x9a] sm:$0xff]
        %v1408 = vld [vmem:[#allocation2 + $0xa2] sm:$0xff]
        %v1409 = vld [vmem:[#allocation2 + $0xaa] sm:$0xff]
        %v1410 = vld [vmem:[#allocation2 + $0xb2] sm:$0xff]
        %v1411 = vld [vmem:[#allocation2 + $0xba] sm:$0xff]
        %v1412 = vld [vmem:[#allocation2 + $0xc2] sm:$0xff]
        %v1413 = vld [vmem:[#allocation2 + $0xca] sm:$0xff]
        %v1414 = vld [vmem:[#allocation2 + $0xd2] sm:$0xff]
        %v1415 = vld [vmem:[#allocation2 + $0xda] sm:$0xff]
        %v1416 = vld [vmem:[#allocation2 + $0xe2] sm:$0xff]
        %v1417 = vld [vmem:[#allocation2 + $0xea] sm:$0xff]
        %v1418 = vld [vmem:[#allocation2 + $0xf2] sm:$0xff]
        %v1419 = vld [vmem:[#allocation2 + $0xfa] sm:$0xff]
        %v1420 = vld [vmem:[#allocation2 + $0x102] sm:$0xff]
        %v1421 = vld [vmem:[#allocation2 + $0x10a] sm:$0xff]
        %v1422 = vld [vmem:[#allocation2 + $0x112] sm:$0xff]
        %v1423 = vld [vmem:[#allocation2 + $0x11a] sm:$0xff]
        %1460 = vrot.lane.b32.xlu0 %v1352, 4
        %v1461 = vpop.permute.xlu0 %1460
        %1462 = vrot.lane.b32.xlu0 %v1353, 4
        %v1463 = vpop.permute.xlu0 %1462
        %1464 = vrot.lane.b32.xlu0 %v1354, 4
        %v1465 = vpop.permute.xlu0 %1464
        %1466 = vrot.lane.b32.xlu0 %v1355, 4
        %v1467 = vpop.permute.xlu0 %1466
        %1468 = vrot.lane.b32.xlu0 %v1356, 4
        %v1469 = vpop.permute.xlu0 %1468
        %1470 = vrot.lane.b32.xlu0 %v1357, 4
        %v1471 = vpop.permute.xlu0 %1470
        %1472 = vrot.lane.b32.xlu0 %v1358, 4
        %v1473 = vpop.permute.xlu0 %1472
        %1474 = vrot.lane.b32.xlu0 %v1359, 4
        %v1475 = vpop.permute.xlu0 %1474
        %1476 = vrot.lane.b32.xlu0 %v1360, 4
        %v1477 = vpop.permute.xlu0 %1476
        %1478 = vrot.lane.b32.xlu0 %v1361, 4
        %v1479 = vpop.permute.xlu0 %1478
        %1480 = vrot.lane.b32.xlu0 %v1362, 4
        %v1481 = vpop.permute.xlu0 %1480
        %1482 = vrot.lane.b32.xlu0 %v1363, 4
        %v1483 = vpop.permute.xlu0 %1482
        %1484 = vrot.lane.b32.xlu0 %v1364, 4
        %v1485 = vpop.permute.xlu0 %1484
        %1486 = vrot.lane.b32.xlu0 %v1365, 4
        %v1487 = vpop.permute.xlu0 %1486
        %1488 = vrot.lane.b32.xlu0 %v1366, 4
        %v1489 = vpop.permute.xlu0 %1488
        %1490 = vrot.lane.b32.xlu0 %v1367, 4
        %v1491 = vpop.permute.xlu0 %1490
        %1492 = vrot.lane.b32.xlu0 %v1368, 4
        %v1493 = vpop.permute.xlu0 %1492
        %1494 = vrot.lane.b32.xlu0 %v1369, 4
        %v1495 = vpop.permute.xlu0 %1494
        %1496 = vrot.lane.b32.xlu0 %v1370, 4
        %v1497 = vpop.permute.xlu0 %1496
        %1498 = vrot.lane.b32.xlu0 %v1371, 4
        %v1499 = vpop.permute.xlu0 %1498
        %1500 = vrot.lane.b32.xlu0 %v1372, 4
        %v1501 = vpop.permute.xlu0 %1500
        %1502 = vrot.lane.b32.xlu0 %v1373, 4
        %v1503 = vpop.permute.xlu0 %1502
        %1504 = vrot.lane.b32.xlu0 %v1374, 4
        %v1505 = vpop.permute.xlu0 %1504
        %1506 = vrot.lane.b32.xlu0 %v1375, 4
        %v1507 = vpop.permute.xlu0 %1506
        %1508 = vrot.lane.b32.xlu0 %v1376, 4
        %v1509 = vpop.permute.xlu0 %1508
        %1510 = vrot.lane.b32.xlu0 %v1377, 4
        %v1511 = vpop.permute.xlu0 %1510
        %1512 = vrot.lane.b32.xlu0 %v1378, 4
        %v1513 = vpop.permute.xlu0 %1512
        %1514 = vrot.lane.b32.xlu0 %v1379, 4
        %v1515 = vpop.permute.xlu0 %1514
        %1516 = vrot.lane.b32.xlu0 %v1380, 4
        %v1517 = vpop.permute.xlu0 %1516
        %1518 = vrot.lane.b32.xlu0 %v1381, 4
        %v1519 = vpop.permute.xlu0 %1518
        %1520 = vrot.lane.b32.xlu0 %v1382, 4
        %v1521 = vpop.permute.xlu0 %1520
        %1522 = vrot.lane.b32.xlu0 %v1383, 4
        %v1523 = vpop.permute.xlu0 %1522
        %1524 = vrot.lane.b32.xlu0 %v1384, 4
        %v1525 = vpop.permute.xlu0 %1524
        %1526 = vrot.lane.b32.xlu0 %v1385, 4
        %v1527 = vpop.permute.xlu0 %1526
        %1528 = vrot.lane.b32.xlu0 %v1386, 4
        %v1529 = vpop.permute.xlu0 %1528
        %1530 = vrot.lane.b32.xlu0 %v1387, 4
        %v1531 = vpop.permute.xlu0 %1530
        %1604 = vrot.lane.b32.xlu0 %v1388, 8
        %v1605 = vpop.permute.xlu0 %1604
        %1606 = vrot.lane.b32.xlu0 %v1389, 8
        %v1607 = vpop.permute.xlu0 %1606
        %1608 = vrot.lane.b32.xlu0 %v1390, 8
        %v1609 = vpop.permute.xlu0 %1608
        %1610 = vrot.lane.b32.xlu0 %v1391, 8
        %v1611 = vpop.permute.xlu0 %1610
        %1612 = vrot.lane.b32.xlu0 %v1392, 8
        %v1613 = vpop.permute.xlu0 %1612
        %1614 = vrot.lane.b32.xlu0 %v1393, 8
        %v1615 = vpop.permute.xlu0 %1614
        %1616 = vrot.lane.b32.xlu0 %v1394, 8
        %v1617 = vpop.permute.xlu0 %1616
        %1618 = vrot.lane.b32.xlu0 %v1395, 8
        %v1619 = vpop.permute.xlu0 %1618
        %1620 = vrot.lane.b32.xlu0 %v1396, 8
        %v1621 = vpop.permute.xlu0 %1620
        %1622 = vrot.lane.b32.xlu0 %v1397, 8
        %v1623 = vpop.permute.xlu0 %1622
        %1624 = vrot.lane.b32.xlu0 %v1398, 8
        %v1625 = vpop.permute.xlu0 %1624
        %1626 = vrot.lane.b32.xlu0 %v1399, 8
        %v1627 = vpop.permute.xlu0 %1626
        %1628 = vrot.lane.b32.xlu0 %v1400, 8
        %v1629 = vpop.permute.xlu0 %1628
        %1630 = vrot.lane.b32.xlu0 %v1401, 8
        %v1631 = vpop.permute.xlu0 %1630
        %1632 = vrot.lane.b32.xlu0 %v1402, 8
        %v1633 = vpop.permute.xlu0 %1632
        %1634 = vrot.lane.b32.xlu0 %v1403, 8
        %v1635 = vpop.permute.xlu0 %1634
        %1636 = vrot.lane.b32.xlu0 %v1404, 8
        %v1637 = vpop.permute.xlu0 %1636
        %1638 = vrot.lane.b32.xlu0 %v1405, 8
        %v1639 = vpop.permute.xlu0 %1638
        %1640 = vrot.lane.b32.xlu0 %v1406, 8
        %v1641 = vpop.permute.xlu0 %1640
        %1642 = vrot.lane.b32.xlu0 %v1407, 8
        %v1643 = vpop.permute.xlu0 %1642
        %1644 = vrot.lane.b32.xlu0 %v1408, 8
        %v1645 = vpop.permute.xlu0 %1644
        %1646 = vrot.lane.b32.xlu0 %v1409, 8
        %v1647 = vpop.permute.xlu0 %1646
        %1648 = vrot.lane.b32.xlu0 %v1410, 8
        %v1649 = vpop.permute.xlu0 %1648
        %1650 = vrot.lane.b32.xlu0 %v1411, 8
        %v1651 = vpop.permute.xlu0 %1650
        %1652 = vrot.lane.b32.xlu0 %v1412, 8
        %v1653 = vpop.permute.xlu0 %1652
        %1654 = vrot.lane.b32.xlu0 %v1413, 8
        %v1655 = vpop.permute.xlu0 %1654
        %1656 = vrot.lane.b32.xlu0 %v1414, 8
        %v1657 = vpop.permute.xlu0 %1656
        %1658 = vrot.lane.b32.xlu0 %v1415, 8
        %v1659 = vpop.permute.xlu0 %1658
        %1660 = vrot.lane.b32.xlu0 %v1416, 8
        %v1661 = vpop.permute.xlu0 %1660
        %1662 = vrot.lane.b32.xlu0 %v1417, 8
        %v1663 = vpop.permute.xlu0 %1662
        %1664 = vrot.lane.b32.xlu0 %v1418, 8
        %v1665 = vpop.permute.xlu0 %1664
        %1666 = vrot.lane.b32.xlu0 %v1419, 8
        %v1667 = vpop.permute.xlu0 %1666
        %1668 = vrot.lane.b32.xlu0 %v1420, 8
        %v1669 = vpop.permute.xlu0 %1668
        %1670 = vrot.lane.b32.xlu0 %v1421, 8
        %v1671 = vpop.permute.xlu0 %1670
        %1672 = vrot.lane.b32.xlu0 %v1422, 8
        %v1673 = vpop.permute.xlu0 %1672
        %1674 = vrot.lane.b32.xlu0 %v1423, 8
        %v1675 = vpop.permute.xlu0 %1674
        %v1712 = vsel %vm277, %v1316, %v1461
        %v1713 = vsel %vm277, %v1317, %v1463
        %v1714 = vsel %vm277, %v1318, %v1465
        %v1715 = vsel %vm277, %v1319, %v1467
        %v1716 = vsel %vm277, %v1320, %v1469
        %v1717 = vsel %vm277, %v1321, %v1471
        %v1718 = vsel %vm277, %v1322, %v1473
        %v1719 = vsel %vm277, %v1323, %v1475
        %v1720 = vsel %vm277, %v1324, %v1477
        %v1721 = vsel %vm277, %v1325, %v1479
        %v1722 = vsel %vm277, %v1326, %v1481
        %v1723 = vsel %vm277, %v1327, %v1483
        %v1724 = vsel %vm277, %v1328, %v1485
        %v1725 = vsel %vm277, %v1329, %v1487
        %v1726 = vsel %vm277, %v1330, %v1489
        %v1727 = vsel %vm277, %v1331, %v1491
        %v1728 = vsel %vm277, %v1332, %v1493
        %v1729 = vsel %vm277, %v1333, %v1495
        %v1730 = vsel %vm277, %v1334, %v1497
        %v1731 = vsel %vm277, %v1335, %v1499
        %v1732 = vsel %vm277, %v1336, %v1501
        %v1733 = vsel %vm277, %v1337, %v1503
        %v1734 = vsel %vm277, %v1338, %v1505
        %v1735 = vsel %vm277, %v1339, %v1507
        %v1736 = vsel %vm277, %v1340, %v1509
        %v1737 = vsel %vm277, %v1341, %v1511
        %v1738 = vsel %vm277, %v1342, %v1513
        %v1739 = vsel %vm277, %v1343, %v1515
        %v1740 = vsel %vm277, %v1344, %v1517
        %v1741 = vsel %vm277, %v1345, %v1519
        %v1742 = vsel %vm277, %v1346, %v1521
        %v1743 = vsel %vm277, %v1347, %v1523
        %v1744 = vsel %vm277, %v1348, %v1525
        %v1745 = vsel %vm277, %v1349, %v1527
        %v1746 = vsel %vm277, %v1350, %v1529
        %v1747 = vsel %vm277, %v1351, %v1531
        %v1748 = vsel %vm326, %v1712, %v1605
        %v1749 = vsel %vm326, %v1713, %v1607
        %v1750 = vsel %vm326, %v1714, %v1609
        %v1751 = vsel %vm326, %v1715, %v1611
        %v1752 = vsel %vm326, %v1716, %v1613
        %v1753 = vsel %vm326, %v1717, %v1615
        %v1754 = vsel %vm326, %v1718, %v1617
        %v1755 = vsel %vm326, %v1719, %v1619
        %v1756 = vsel %vm326, %v1720, %v1621
        %v1757 = vsel %vm326, %v1721, %v1623
        %v1758 = vsel %vm326, %v1722, %v1625
        %v1759 = vsel %vm326, %v1723, %v1627
        %v1760 = vsel %vm326, %v1724, %v1629
        %v1761 = vsel %vm326, %v1725, %v1631
        %v1762 = vsel %vm326, %v1726, %v1633
        %v1763 = vsel %vm326, %v1727, %v1635
        %v1764 = vsel %vm326, %v1728, %v1637
        %v1765 = vsel %vm326, %v1729, %v1639
        %v1766 = vsel %vm326, %v1730, %v1641
        %v1767 = vsel %vm326, %v1731, %v1643
        %v1768 = vsel %vm326, %v1732, %v1645
        %v1769 = vsel %vm326, %v1733, %v1647
        %v1770 = vsel %vm326, %v1734, %v1649
        %v1771 = vsel %vm326, %v1735, %v1651
        %v1772 = vsel %vm326, %v1736, %v1653
        %v1773 = vsel %vm326, %v1737, %v1655
        %v1774 = vsel %vm326, %v1738, %v1657
        %v1775 = vsel %vm326, %v1739, %v1659
        %v1776 = vsel %vm326, %v1740, %v1661
        %v1777 = vsel %vm326, %v1741, %v1663
        %v1778 = vsel %vm326, %v1742, %v1665
        %v1779 = vsel %vm326, %v1743, %v1667
        %v1780 = vsel %vm326, %v1744, %v1669
        %v1781 = vsel %vm326, %v1745, %v1671
        %v1782 = vsel %vm326, %v1746, %v1673
        %v1783 = vsel %vm326, %v1747, %v1675
        %v1784 = vld [vmem:[%s5] sm:$0xff]
        %v1785 = vld [vmem:[%s5 + $0x8] sm:$0xf]
        %v1786 = vld [vmem:[#allocation2 + $0x122] sm:$0xff]
        %v1787 = vld [vmem:[#allocation2 + $0x12a] sm:$0xff]
        %v1788 = vld [vmem:[#allocation2 + $0x13] sm:$0xff]
        %v1789 = vld [vmem:[#allocation2 + $0x1b] sm:$0xff]
        %v1790 = vld [vmem:[#allocation2 + $0x23] sm:$0xff]
        %v1791 = vld [vmem:[#allocation2 + $0x2b] sm:$0xff]
        %v1792 = vld [vmem:[#allocation2 + $0x33] sm:$0xff]
        %v1793 = vld [vmem:[#allocation2 + $0x3b] sm:$0xff]
        %v1794 = vld [vmem:[#allocation2 + $0x43] sm:$0xff]
        %v1795 = vld [vmem:[#allocation2 + $0x4b] sm:$0xff]
        %v1796 = vld [vmem:[#allocation2 + $0x53] sm:$0xff]
        %v1797 = vld [vmem:[#allocation2 + $0x5b] sm:$0xff]
        %v1798 = vld [vmem:[#allocation2 + $0x63] sm:$0xff]
        %v1799 = vld [vmem:[#allocation2 + $0x6b] sm:$0xff]
        %v1800 = vld [vmem:[#allocation2 + $0x73] sm:$0xff]
        %v1801 = vld [vmem:[#allocation2 + $0x7b] sm:$0xff]
        %v1802 = vld [vmem:[#allocation2 + $0x83] sm:$0xff]
        %v1803 = vld [vmem:[#allocation2 + $0x8b] sm:$0xff]
        %v1804 = vld [vmem:[#allocation2 + $0x93] sm:$0xff]
        %v1805 = vld [vmem:[#allocation2 + $0x9b] sm:$0xff]
        %v1806 = vld [vmem:[#allocation2 + $0xa3] sm:$0xff]
        %v1807 = vld [vmem:[#allocation2 + $0xab] sm:$0xff]
        %v1808 = vld [vmem:[#allocation2 + $0xb3] sm:$0xff]
        %v1809 = vld [vmem:[#allocation2 + $0xbb] sm:$0xff]
        %v1810 = vld [vmem:[#allocation2 + $0xc3] sm:$0xff]
        %v1811 = vld [vmem:[#allocation2 + $0xcb] sm:$0xff]
        %v1812 = vld [vmem:[#allocation2 + $0xd3] sm:$0xff]
        %v1813 = vld [vmem:[#allocation2 + $0xdb] sm:$0xff]
        %v1814 = vld [vmem:[#allocation2 + $0xe3] sm:$0xff]
        %v1815 = vld [vmem:[#allocation2 + $0xeb] sm:$0xff]
        %v1816 = vld [vmem:[#allocation2 + $0xf3] sm:$0xff]
        %v1817 = vld [vmem:[#allocation2 + $0xfb] sm:$0xff]
        %v1818 = vld [vmem:[#allocation2 + $0x103] sm:$0xff]
        %v1819 = vld [vmem:[#allocation2 + $0x10b] sm:$0xff]
        %v1820 = vld [vmem:[#allocation2 + $0x113] sm:$0xff]
        %v1821 = vld [vmem:[#allocation2 + $0x11b] sm:$0xff]
        %v1822 = vld [vmem:[#allocation2 + $0x123] sm:$0xff]
        %v1823 = vld [vmem:[#allocation2 + $0x12b] sm:$0xff]
        %v1824 = vld [vmem:[#allocation2 + $0x14] sm:$0xff]
        %v1825 = vld [vmem:[#allocation2 + $0x1c] sm:$0xff]
        %v1826 = vld [vmem:[#allocation2 + $0x24] sm:$0xff]
        %v1827 = vld [vmem:[#allocation2 + $0x2c] sm:$0xff]
        %v1828 = vld [vmem:[#allocation2 + $0x34] sm:$0xff]
        %v1829 = vld [vmem:[#allocation2 + $0x3c] sm:$0xff]
        %v1830 = vld [vmem:[#allocation2 + $0x44] sm:$0xff]
        %v1831 = vld [vmem:[#allocation2 + $0x4c] sm:$0xff]
        %v1832 = vld [vmem:[#allocation2 + $0x54] sm:$0xff]
        %v1833 = vld [vmem:[#allocation2 + $0x5c] sm:$0xff]
        %v1834 = vld [vmem:[#allocation2 + $0x64] sm:$0xff]
        %v1835 = vld [vmem:[#allocation2 + $0x6c] sm:$0xff]
        %v1836 = vld [vmem:[#allocation2 + $0x74] sm:$0xff]
        %v1837 = vld [vmem:[#allocation2 + $0x7c] sm:$0xff]
        %v1838 = vld [vmem:[#allocation2 + $0x84] sm:$0xff]
        %v1839 = vld [vmem:[#allocation2 + $0x8c] sm:$0xff]
        %v1840 = vld [vmem:[#allocation2 + $0x94] sm:$0xff]
        %v1841 = vld [vmem:[#allocation2 + $0x9c] sm:$0xff]
        %v1842 = vld [vmem:[#allocation2 + $0xa4] sm:$0xff]
        %v1843 = vld [vmem:[#allocation2 + $0xac] sm:$0xff]
        %v1844 = vld [vmem:[#allocation2 + $0xb4] sm:$0xff]
        %v1845 = vld [vmem:[#allocation2 + $0xbc] sm:$0xff]
        %v1846 = vld [vmem:[#allocation2 + $0xc4] sm:$0xff]
        %v1847 = vld [vmem:[#allocation2 + $0xcc] sm:$0xff]
        %v1848 = vld [vmem:[#allocation2 + $0xd4] sm:$0xff]
        %v1849 = vld [vmem:[#allocation2 + $0xdc] sm:$0xff]
        %v1850 = vld [vmem:[#allocation2 + $0xe4] sm:$0xff]
        %v1851 = vld [vmem:[#allocation2 + $0xec] sm:$0xff]
        %v1852 = vld [vmem:[#allocation2 + $0xf4] sm:$0xff]
        %v1853 = vld [vmem:[#allocation2 + $0xfc] sm:$0xff]
        %v1854 = vld [vmem:[#allocation2 + $0x104] sm:$0xff]
        %v1855 = vld [vmem:[#allocation2 + $0x10c] sm:$0xff]
        %v1856 = vld [vmem:[#allocation2 + $0x114] sm:$0xff]
        %v1857 = vld [vmem:[#allocation2 + $0x11c] sm:$0xff]
        %v1858 = vld [vmem:[#allocation2 + $0x124] sm:$0xff]
        %v1859 = vld [vmem:[#allocation2 + $0x12c] sm:$0xff]
        %1896 = vrot.lane.b32.xlu0 %v1788, 4
        %v1897 = vpop.permute.xlu0 %1896
        %1898 = vrot.lane.b32.xlu0 %v1789, 4
        %v1899 = vpop.permute.xlu0 %1898
        %1900 = vrot.lane.b32.xlu0 %v1790, 4
        %v1901 = vpop.permute.xlu0 %1900
        %1902 = vrot.lane.b32.xlu0 %v1791, 4
        %v1903 = vpop.permute.xlu0 %1902
        %1904 = vrot.lane.b32.xlu0 %v1792, 4
        %v1905 = vpop.permute.xlu0 %1904
        %1906 = vrot.lane.b32.xlu0 %v1793, 4
        %v1907 = vpop.permute.xlu0 %1906
        %1908 = vrot.lane.b32.xlu0 %v1794, 4
        %v1909 = vpop.permute.xlu0 %1908
        %1910 = vrot.lane.b32.xlu0 %v1795, 4
        %v1911 = vpop.permute.xlu0 %1910
        %1912 = vrot.lane.b32.xlu0 %v1796, 4
        %v1913 = vpop.permute.xlu0 %1912
        %1914 = vrot.lane.b32.xlu0 %v1797, 4
        %v1915 = vpop.permute.xlu0 %1914
        %1916 = vrot.lane.b32.xlu0 %v1798, 4
        %v1917 = vpop.permute.xlu0 %1916
        %1918 = vrot.lane.b32.xlu0 %v1799, 4
        %v1919 = vpop.permute.xlu0 %1918
        %1920 = vrot.lane.b32.xlu0 %v1800, 4
        %v1921 = vpop.permute.xlu0 %1920
        %1922 = vrot.lane.b32.xlu0 %v1801, 4
        %v1923 = vpop.permute.xlu0 %1922
        %1924 = vrot.lane.b32.xlu0 %v1802, 4
        %v1925 = vpop.permute.xlu0 %1924
        %1926 = vrot.lane.b32.xlu0 %v1803, 4
        %v1927 = vpop.permute.xlu0 %1926
        %1928 = vrot.lane.b32.xlu0 %v1804, 4
        %v1929 = vpop.permute.xlu0 %1928
        %1930 = vrot.lane.b32.xlu0 %v1805, 4
        %v1931 = vpop.permute.xlu0 %1930
        %1932 = vrot.lane.b32.xlu0 %v1806, 4
        %v1933 = vpop.permute.xlu0 %1932
        %1934 = vrot.lane.b32.xlu0 %v1807, 4
        %v1935 = vpop.permute.xlu0 %1934
        %1936 = vrot.lane.b32.xlu0 %v1808, 4
        %v1937 = vpop.permute.xlu0 %1936
        %1938 = vrot.lane.b32.xlu0 %v1809, 4
        %v1939 = vpop.permute.xlu0 %1938
        %1940 = vrot.lane.b32.xlu0 %v1810, 4
        %v1941 = vpop.permute.xlu0 %1940
        %1942 = vrot.lane.b32.xlu0 %v1811, 4
        %v1943 = vpop.permute.xlu0 %1942
        %1944 = vrot.lane.b32.xlu0 %v1812, 4
        %v1945 = vpop.permute.xlu0 %1944
        %1946 = vrot.lane.b32.xlu0 %v1813, 4
        %v1947 = vpop.permute.xlu0 %1946
        %1948 = vrot.lane.b32.xlu0 %v1814, 4
        %v1949 = vpop.permute.xlu0 %1948
        %1950 = vrot.lane.b32.xlu0 %v1815, 4
        %v1951 = vpop.permute.xlu0 %1950
        %1952 = vrot.lane.b32.xlu0 %v1816, 4
        %v1953 = vpop.permute.xlu0 %1952
        %1954 = vrot.lane.b32.xlu0 %v1817, 4
        %v1955 = vpop.permute.xlu0 %1954
        %1956 = vrot.lane.b32.xlu0 %v1818, 4
        %v1957 = vpop.permute.xlu0 %1956
        %1958 = vrot.lane.b32.xlu0 %v1819, 4
        %v1959 = vpop.permute.xlu0 %1958
        %1960 = vrot.lane.b32.xlu0 %v1820, 4
        %v1961 = vpop.permute.xlu0 %1960
        %1962 = vrot.lane.b32.xlu0 %v1821, 4
        %v1963 = vpop.permute.xlu0 %1962
        %1964 = vrot.lane.b32.xlu0 %v1822, 4
        %v1965 = vpop.permute.xlu0 %1964
        %1966 = vrot.lane.b32.xlu0 %v1823, 4
        %v1967 = vpop.permute.xlu0 %1966
        %2040 = vrot.lane.b32.xlu0 %v1824, 8
        %v2041 = vpop.permute.xlu0 %2040
        %2042 = vrot.lane.b32.xlu0 %v1825, 8
        %v2043 = vpop.permute.xlu0 %2042
        %2044 = vrot.lane.b32.xlu0 %v1826, 8
        %v2045 = vpop.permute.xlu0 %2044
        %2046 = vrot.lane.b32.xlu0 %v1827, 8
        %v2047 = vpop.permute.xlu0 %2046
        %2048 = vrot.lane.b32.xlu0 %v1828, 8
        %v2049 = vpop.permute.xlu0 %2048
        %2050 = vrot.lane.b32.xlu0 %v1829, 8
        %v2051 = vpop.permute.xlu0 %2050
        %2052 = vrot.lane.b32.xlu0 %v1830, 8
        %v2053 = vpop.permute.xlu0 %2052
        %2054 = vrot.lane.b32.xlu0 %v1831, 8
        %v2055 = vpop.permute.xlu0 %2054
        %2056 = vrot.lane.b32.xlu0 %v1832, 8
        %v2057 = vpop.permute.xlu0 %2056
        %2058 = vrot.lane.b32.xlu0 %v1833, 8
        %v2059 = vpop.permute.xlu0 %2058
        %2060 = vrot.lane.b32.xlu0 %v1834, 8
        %v2061 = vpop.permute.xlu0 %2060
        %2062 = vrot.lane.b32.xlu0 %v1835, 8
        %v2063 = vpop.permute.xlu0 %2062
        %2064 = vrot.lane.b32.xlu0 %v1836, 8
        %v2065 = vpop.permute.xlu0 %2064
        %2066 = vrot.lane.b32.xlu0 %v1837, 8
        %v2067 = vpop.permute.xlu0 %2066
        %2068 = vrot.lane.b32.xlu0 %v1838, 8
        %v2069 = vpop.permute.xlu0 %2068
        %2070 = vrot.lane.b32.xlu0 %v1839, 8
        %v2071 = vpop.permute.xlu0 %2070
        %2072 = vrot.lane.b32.xlu0 %v1840, 8
        %v2073 = vpop.permute.xlu0 %2072
        %2074 = vrot.lane.b32.xlu0 %v1841, 8
        %v2075 = vpop.permute.xlu0 %2074
        %2076 = vrot.lane.b32.xlu0 %v1842, 8
        %v2077 = vpop.permute.xlu0 %2076
        %2078 = vrot.lane.b32.xlu0 %v1843, 8
        %v2079 = vpop.permute.xlu0 %2078
        %2080 = vrot.lane.b32.xlu0 %v1844, 8
        %v2081 = vpop.permute.xlu0 %2080
        %2082 = vrot.lane.b32.xlu0 %v1845, 8
        %v2083 = vpop.permute.xlu0 %2082
        %2084 = vrot.lane.b32.xlu0 %v1846, 8
        %v2085 = vpop.permute.xlu0 %2084
        %2086 = vrot.lane.b32.xlu0 %v1847, 8
        %v2087 = vpop.permute.xlu0 %2086
        %2088 = vrot.lane.b32.xlu0 %v1848, 8
        %v2089 = vpop.permute.xlu0 %2088
        %2090 = vrot.lane.b32.xlu0 %v1849, 8
        %v2091 = vpop.permute.xlu0 %2090
        %2092 = vrot.lane.b32.xlu0 %v1850, 8
        %v2093 = vpop.permute.xlu0 %2092
        %2094 = vrot.lane.b32.xlu0 %v1851, 8
        %v2095 = vpop.permute.xlu0 %2094
        %2096 = vrot.lane.b32.xlu0 %v1852, 8
        %v2097 = vpop.permute.xlu0 %2096
        %2098 = vrot.lane.b32.xlu0 %v1853, 8
        %v2099 = vpop.permute.xlu0 %2098
        %2100 = vrot.lane.b32.xlu0 %v1854, 8
        %v2101 = vpop.permute.xlu0 %2100
        %2102 = vrot.lane.b32.xlu0 %v1855, 8
        %v2103 = vpop.permute.xlu0 %2102
        %2104 = vrot.lane.b32.xlu0 %v1856, 8
        %v2105 = vpop.permute.xlu0 %2104
        %2106 = vrot.lane.b32.xlu0 %v1857, 8
        %v2107 = vpop.permute.xlu0 %2106
        %2108 = vrot.lane.b32.xlu0 %v1858, 8
        %v2109 = vpop.permute.xlu0 %2108
        %2110 = vrot.lane.b32.xlu0 %v1859, 8
        %v2111 = vpop.permute.xlu0 %2110
        %v2148 = vsel %vm277, %v1390, %v1897
        %v2149 = vsel %vm277, %v1391, %v1899
        %v2150 = vsel %vm277, %v1392, %v1901
        %v2151 = vsel %vm277, %v1393, %v1903
        %v2152 = vsel %vm277, %v1394, %v1905
        %v2153 = vsel %vm277, %v1395, %v1907
        %v2154 = vsel %vm277, %v1396, %v1909
        %v2155 = vsel %vm277, %v1397, %v1911
        %v2156 = vsel %vm277, %v1398, %v1913
        %v2157 = vsel %vm277, %v1399, %v1915
        %v2158 = vsel %vm277, %v1400, %v1917
        %v2159 = vsel %vm277, %v1401, %v1919
        %v2160 = vsel %vm277, %v1402, %v1921
        %v2161 = vsel %vm277, %v1403, %v1923
        %v2162 = vsel %vm277, %v1404, %v1925
        %v2163 = vsel %vm277, %v1405, %v1927
        %v2164 = vsel %vm277, %v1406, %v1929
        %v2165 = vsel %vm277, %v1407, %v1931
        %v2166 = vsel %vm277, %v1408, %v1933
        %v2167 = vsel %vm277, %v1409, %v1935
        %v2168 = vsel %vm277, %v1410, %v1937
        %v2169 = vsel %vm277, %v1411, %v1939
        %v2170 = vsel %vm277, %v1412, %v1941
        %v2171 = vsel %vm277, %v1413, %v1943
        %v2172 = vsel %vm277, %v1414, %v1945
        %v2173 = vsel %vm277, %v1415, %v1947
        %v2174 = vsel %vm277, %v1416, %v1949
        %v2175 = vsel %vm277, %v1417, %v1951
        %v2176 = vsel %vm277, %v1418, %v1953
        %v2177 = vsel %vm277, %v1419, %v1955
        %v2178 = vsel %vm277, %v1420, %v1957
        %v2179 = vsel %vm277, %v1421, %v1959
        %v2180 = vsel %vm277, %v1422, %v1961
        %v2181 = vsel %vm277, %v1423, %v1963
        %v2182 = vsel %vm277, %v1786, %v1965
        %v2183 = vsel %vm277, %v1787, %v1967
        %v2184 = vsel %vm326, %v2148, %v2041
        %v2185 = vsel %vm326, %v2149, %v2043
        %v2186 = vsel %vm326, %v2150, %v2045
        %v2187 = vsel %vm326, %v2151, %v2047
        %v2188 = vsel %vm326, %v2152, %v2049
        %v2189 = vsel %vm326, %v2153, %v2051
        %v2190 = vsel %vm326, %v2154, %v2053
        %v2191 = vsel %vm326, %v2155, %v2055
        %v2192 = vsel %vm326, %v2156, %v2057
        %v2193 = vsel %vm326, %v2157, %v2059
        %v2194 = vsel %vm326, %v2158, %v2061
        %v2195 = vsel %vm326, %v2159, %v2063
        %v2196 = vsel %vm326, %v2160, %v2065
        %v2197 = vsel %vm326, %v2161, %v2067
        %v2198 = vsel %vm326, %v2162, %v2069
        %v2199 = vsel %vm326, %v2163, %v2071
        %v2200 = vsel %vm326, %v2164, %v2073
        %v2201 = vsel %vm326, %v2165, %v2075
        %v2202 = vsel %vm326, %v2166, %v2077
        %v2203 = vsel %vm326, %v2167, %v2079
        %v2204 = vsel %vm326, %v2168, %v2081
        %v2205 = vsel %vm326, %v2169, %v2083
        %v2206 = vsel %vm326, %v2170, %v2085
        %v2207 = vsel %vm326, %v2171, %v2087
        %v2208 = vsel %vm326, %v2172, %v2089
        %v2209 = vsel %vm326, %v2173, %v2091
        %v2210 = vsel %vm326, %v2174, %v2093
        %v2211 = vsel %vm326, %v2175, %v2095
        %v2212 = vsel %vm326, %v2176, %v2097
        %v2213 = vsel %vm326, %v2177, %v2099
        %v2214 = vsel %vm326, %v2178, %v2101
        %v2215 = vsel %vm326, %v2179, %v2103
        %v2216 = vsel %vm326, %v2180, %v2105
        %v2217 = vsel %vm326, %v2181, %v2107
        %v2218 = vsel %vm326, %v2182, %v2109
        %v2219 = vsel %vm326, %v2183, %v2111
        %s2220 = scalar_lea.vmem %s5, 16
        %v2221 = vld [vmem:[%s2220] sm:$0xff]
        %v2222 = vld [vmem:[%s2220 + $0x8] sm:$0xf]
        %vm2223 = vcmask 97280
        %v2225 = vsel %vm2223, %v2184, 0
        %v2228 = vsel %vm2223, %v2185, 0
        %v2231 = vsel %vm2223, %v2186, 0
        %v2234 = vsel %vm2223, %v2187, 0
        %v2237 = vsel %vm2223, %v2188, 0
        %v2240 = vsel %vm2223, %v2189, 0
        %v2243 = vsel %vm2223, %v2190, 0
        %v2246 = vsel %vm2223, %v2191, 0
        %v2249 = vsel %vm2223, %v2192, 0
        %v2252 = vsel %vm2223, %v2193, 0
        %v2255 = vsel %vm2223, %v2194, 0
        %v2258 = vsel %vm2223, %v2195, 0
        %v2261 = vsel %vm2223, %v2196, 0
        %v2264 = vsel %vm2223, %v2197, 0
        %v2267 = vsel %vm2223, %v2198, 0
        %v2270 = vsel %vm2223, %v2199, 0
        %v2273 = vsel %vm2223, %v2200, 0
        %v2276 = vsel %vm2223, %v2201, 0
        %v2279 = vsel %vm2223, %v2202, 0
        %v2282 = vsel %vm2223, %v2203, 0
        %v2285 = vsel %vm2223, %v2204, 0
        %v2288 = vsel %vm2223, %v2205, 0
        %v2291 = vsel %vm2223, %v2206, 0
        %v2294 = vsel %vm2223, %v2207, 0
        %v2297 = vsel %vm2223, %v2208, 0
        %v2300 = vsel %vm2223, %v2209, 0
        %v2303 = vsel %vm2223, %v2210, 0
        %v2306 = vsel %vm2223, %v2211, 0
        %v2309 = vsel %vm2223, %v2212, 0
        %v2312 = vsel %vm2223, %v2213, 0
        %v2315 = vsel %vm2223, %v2214, 0
        %v2318 = vsel %vm2223, %v2215, 0
        %v2321 = vsel %vm2223, %v2216, 0
        %v2324 = vsel %vm2223, %v2217, 0
        %v2327 = vsel %vm2223, %v2218, 0
        %v2330 = vsel %vm2223, %v2219, 0
        %v2333 = vsel %vm667, %v2222, 0
        %2335 = vmatpush.msra.mxu0 0.0
        %2336 = vmatpush.msra.mxu0 0.0
        %2337 = vmatpush.msra.mxu0 0.0
        %2338 = vmatpush.msra.mxu0 0.0
        %2339 = vmatpush.msra.mxu0 0.0
        %2340 = vmatpush.msra.mxu0 0.0
        %2341 = vmatpush.msra.mxu0 0.0
        %2342 = vmatpush.msra.mxu0 0.0
        %2343 = vmatpush.msra.mxu0 0.0
        %2344 = vmatpush.msra.mxu0 0.0
        %2345 = vmatpush.msra.mxu0 0.0
        %2346 = vmatpush.msra.mxu0 0.0
        %2347 = vmatpush.msra.mxu0 0.0
        %2348 = vmatpush.msra.mxu0 0.0
        %2349 = vmatpush.msra.mxu0 %v2333
        %2350 = vmatpush.msra.mxu0 %v2221
        %2351 = vmatmul.f32.gmra.mxu0 %v2225
        %v2352 = vpop.f32.mrf.mxu0
        %v2353 = vadd.f32 0.0, %v2352
        %2354 = vmatmul.f32.gmra.mxu0 %v2228
        %v2355 = vpop.f32.mrf.mxu0
        %v2356 = vadd.f32 0.0, %v2355
        %2357 = vmatmul.f32.gmra.mxu0 %v2231
        %v2358 = vpop.f32.mrf.mxu0
        %v2359 = vadd.f32 0.0, %v2358
        %2360 = vmatmul.f32.gmra.mxu0 %v2234
        %v2361 = vpop.f32.mrf.mxu0
        %v2362 = vadd.f32 0.0, %v2361
        %2363 = vmatmul.f32.gmra.mxu0 %v2237
        %v2364 = vpop.f32.mrf.mxu0
        %v2365 = vadd.f32 0.0, %v2364
        %2366 = vmatmul.f32.gmra.mxu0 %v2240
        %v2367 = vpop.f32.mrf.mxu0
        %v2368 = vadd.f32 0.0, %v2367
        %2369 = vmatmul.f32.gmra.mxu0 %v2243
        %v2370 = vpop.f32.mrf.mxu0
        %v2371 = vadd.f32 0.0, %v2370
        %2372 = vmatmul.f32.gmra.mxu0 %v2246
        %v2373 = vpop.f32.mrf.mxu0
        %v2374 = vadd.f32 0.0, %v2373
        %2375 = vmatmul.f32.gmra.mxu0 %v2249
        %v2376 = vpop.f32.mrf.mxu0
        %v2377 = vadd.f32 0.0, %v2376
        %2378 = vmatmul.f32.gmra.mxu0 %v2252
        %v2379 = vpop.f32.mrf.mxu0
        %v2380 = vadd.f32 0.0, %v2379
        %2381 = vmatmul.f32.gmra.mxu0 %v2255
        %v2382 = vpop.f32.mrf.mxu0
        %v2383 = vadd.f32 0.0, %v2382
        %2384 = vmatmul.f32.gmra.mxu0 %v2258
        %v2385 = vpop.f32.mrf.mxu0
        %v2386 = vadd.f32 0.0, %v2385
        %2387 = vmatmul.f32.gmra.mxu0 %v2261
        %v2388 = vpop.f32.mrf.mxu0
        %v2389 = vadd.f32 0.0, %v2388
        %2390 = vmatmul.f32.gmra.mxu0 %v2264
        %v2391 = vpop.f32.mrf.mxu0
        %v2392 = vadd.f32 0.0, %v2391
        %2393 = vmatmul.f32.gmra.mxu0 %v2267
        %v2394 = vpop.f32.mrf.mxu0
        %v2395 = vadd.f32 0.0, %v2394
        %2396 = vmatmul.f32.gmra.mxu0 %v2270
        %v2397 = vpop.f32.mrf.mxu0
        %v2398 = vadd.f32 0.0, %v2397
        %2399 = vmatmul.f32.gmra.mxu0 %v2273
        %v2400 = vpop.f32.mrf.mxu0
        %v2401 = vadd.f32 0.0, %v2400
        %2402 = vmatmul.f32.gmra.mxu0 %v2276
        %v2403 = vpop.f32.mrf.mxu0
        %v2404 = vadd.f32 0.0, %v2403
        %2405 = vmatmul.f32.gmra.mxu0 %v2279
        %v2406 = vpop.f32.mrf.mxu0
        %v2407 = vadd.f32 0.0, %v2406
        %2408 = vmatmul.f32.gmra.mxu0 %v2282
        %v2409 = vpop.f32.mrf.mxu0
        %v2410 = vadd.f32 0.0, %v2409
        %2411 = vmatmul.f32.gmra.mxu0 %v2285
        %v2412 = vpop.f32.mrf.mxu0
        %v2413 = vadd.f32 0.0, %v2412
        %2414 = vmatmul.f32.gmra.mxu0 %v2288
        %v2415 = vpop.f32.mrf.mxu0
        %v2416 = vadd.f32 0.0, %v2415
        %2417 = vmatmul.f32.gmra.mxu0 %v2291
        %v2418 = vpop.f32.mrf.mxu0
        %v2419 = vadd.f32 0.0, %v2418
        %2420 = vmatmul.f32.gmra.mxu0 %v2294
        %v2421 = vpop.f32.mrf.mxu0
        %v2422 = vadd.f32 0.0, %v2421
        %2423 = vmatmul.f32.gmra.mxu0 %v2297
        %v2424 = vpop.f32.mrf.mxu0
        %v2425 = vadd.f32 0.0, %v2424
        %2426 = vmatmul.f32.gmra.mxu0 %v2300
        %v2427 = vpop.f32.mrf.mxu0
        %v2428 = vadd.f32 0.0, %v2427
        %2429 = vmatmul.f32.gmra.mxu0 %v2303
        %v2430 = vpop.f32.mrf.mxu0
        %v2431 = vadd.f32 0.0, %v2430
        %2432 = vmatmul.f32.gmra.mxu0 %v2306
        %v2433 = vpop.f32.mrf.mxu0
        %v2434 = vadd.f32 0.0, %v2433
        %2435 = vmatmul.f32.gmra.mxu0 %v2309
        %v2436 = vpop.f32.mrf.mxu0
        %v2437 = vadd.f32 0.0, %v2436
        %2438 = vmatmul.f32.gmra.mxu0 %v2312
        %v2439 = vpop.f32.mrf.mxu0
        %v2440 = vadd.f32 0.0, %v2439
        %2441 = vmatmul.f32.gmra.mxu0 %v2315
        %v2442 = vpop.f32.mrf.mxu0
        %v2443 = vadd.f32 0.0, %v2442
        %2444 = vmatmul.f32.gmra.mxu0 %v2318
        %v2445 = vpop.f32.mrf.mxu0
        %v2446 = vadd.f32 0.0, %v2445
        %2447 = vmatmul.f32.gmra.mxu0 %v2321
        %v2448 = vpop.f32.mrf.mxu0
        %v2449 = vadd.f32 0.0, %v2448
        %2450 = vmatmul.f32.gmra.mxu0 %v2324
        %v2451 = vpop.f32.mrf.mxu0
        %v2452 = vadd.f32 0.0, %v2451
        %2453 = vmatmul.f32.gmra.mxu0 %v2327
        %v2454 = vpop.f32.mrf.mxu0
        %v2455 = vadd.f32 0.0, %v2454
        %2456 = vmatmul.f32.gmra.mxu0 %v2330
        %v2457 = vpop.f32.mrf.mxu0
        %v2458 = vadd.f32 0.0, %v2457
        %2459 = vdwg.mxu0
        %v2461 = vsel %vm2223, %v1748, 0
        %v2464 = vsel %vm2223, %v1749, 0
        %v2467 = vsel %vm2223, %v1750, 0
        %v2470 = vsel %vm2223, %v1751, 0
        %v2473 = vsel %vm2223, %v1752, 0
        %v2476 = vsel %vm2223, %v1753, 0
        %v2479 = vsel %vm2223, %v1754, 0
        %v2482 = vsel %vm2223, %v1755, 0
        %v2485 = vsel %vm2223, %v1756, 0
        %v2488 = vsel %vm2223, %v1757, 0
        %v2491 = vsel %vm2223, %v1758, 0
        %v2494 = vsel %vm2223, %v1759, 0
        %v2497 = vsel %vm2223, %v1760, 0
        %v2500 = vsel %vm2223, %v1761, 0
        %v2503 = vsel %vm2223, %v1762, 0
        %v2506 = vsel %vm2223, %v1763, 0
        %v2509 = vsel %vm2223, %v1764, 0
        %v2512 = vsel %vm2223, %v1765, 0
        %v2515 = vsel %vm2223, %v1766, 0
        %v2518 = vsel %vm2223, %v1767, 0
        %v2521 = vsel %vm2223, %v1768, 0
        %v2524 = vsel %vm2223, %v1769, 0
        %v2527 = vsel %vm2223, %v1770, 0
        %v2530 = vsel %vm2223, %v1771, 0
        %v2533 = vsel %vm2223, %v1772, 0
        %v2536 = vsel %vm2223, %v1773, 0
        %v2539 = vsel %vm2223, %v1774, 0
        %v2542 = vsel %vm2223, %v1775, 0
        %v2545 = vsel %vm2223, %v1776, 0
        %v2548 = vsel %vm2223, %v1777, 0
        %v2551 = vsel %vm2223, %v1778, 0
        %v2554 = vsel %vm2223, %v1779, 0
        %v2557 = vsel %vm2223, %v1780, 0
        %v2560 = vsel %vm2223, %v1781, 0
        %v2563 = vsel %vm2223, %v1782, 0
        %v2566 = vsel %vm2223, %v1783, 0
        %v2569 = vsel %vm667, %v1785, 0
        %2571 = vmatpush.msra.mxu0 0.0
        %2572 = vmatpush.msra.mxu0 0.0
        %2573 = vmatpush.msra.mxu0 0.0
        %2574 = vmatpush.msra.mxu0 0.0
        %2575 = vmatpush.msra.mxu0 0.0
        %2576 = vmatpush.msra.mxu0 0.0
        %2577 = vmatpush.msra.mxu0 0.0
        %2578 = vmatpush.msra.mxu0 0.0
        %2579 = vmatpush.msra.mxu0 0.0
        %2580 = vmatpush.msra.mxu0 0.0
        %2581 = vmatpush.msra.mxu0 0.0
        %2582 = vmatpush.msra.mxu0 0.0
        %2583 = vmatpush.msra.mxu0 0.0
        %2584 = vmatpush.msra.mxu0 0.0
        %2585 = vmatpush.msra.mxu0 %v2569
        %2586 = vmatpush.msra.mxu0 %v1784
        %2587 = vmatmul.f32.gmra.mxu0 %v2461
        %v2588 = vpop.f32.mrf.mxu0
        %v2589 = vadd.f32 %v2353, %v2588
        %2590 = vmatmul.f32.gmra.mxu0 %v2464
        %v2591 = vpop.f32.mrf.mxu0
        %v2592 = vadd.f32 %v2356, %v2591
        %2593 = vmatmul.f32.gmra.mxu0 %v2467
        %v2594 = vpop.f32.mrf.mxu0
        %v2595 = vadd.f32 %v2359, %v2594
        %2596 = vmatmul.f32.gmra.mxu0 %v2470
        %v2597 = vpop.f32.mrf.mxu0
        %v2598 = vadd.f32 %v2362, %v2597
        %2599 = vmatmul.f32.gmra.mxu0 %v2473
        %v2600 = vpop.f32.mrf.mxu0
        %v2601 = vadd.f32 %v2365, %v2600
        %2602 = vmatmul.f32.gmra.mxu0 %v2476
        %v2603 = vpop.f32.mrf.mxu0
        %v2604 = vadd.f32 %v2368, %v2603
        %2605 = vmatmul.f32.gmra.mxu0 %v2479
        %v2606 = vpop.f32.mrf.mxu0
        %v2607 = vadd.f32 %v2371, %v2606
        %2608 = vmatmul.f32.gmra.mxu0 %v2482
        %v2609 = vpop.f32.mrf.mxu0
        %v2610 = vadd.f32 %v2374, %v2609
        %2611 = vmatmul.f32.gmra.mxu0 %v2485
        %v2612 = vpop.f32.mrf.mxu0
        %v2613 = vadd.f32 %v2377, %v2612
        %2614 = vmatmul.f32.gmra.mxu0 %v2488
        %v2615 = vpop.f32.mrf.mxu0
        %v2616 = vadd.f32 %v2380, %v2615
        %2617 = vmatmul.f32.gmra.mxu0 %v2491
        %v2618 = vpop.f32.mrf.mxu0
        %v2619 = vadd.f32 %v2383, %v2618
        %2620 = vmatmul.f32.gmra.mxu0 %v2494
        %v2621 = vpop.f32.mrf.mxu0
        %v2622 = vadd.f32 %v2386, %v2621
        %2623 = vmatmul.f32.gmra.mxu0 %v2497
        %v2624 = vpop.f32.mrf.mxu0
        %v2625 = vadd.f32 %v2389, %v2624
        %2626 = vmatmul.f32.gmra.mxu0 %v2500
        %v2627 = vpop.f32.mrf.mxu0
        %v2628 = vadd.f32 %v2392, %v2627
        %2629 = vmatmul.f32.gmra.mxu0 %v2503
        %v2630 = vpop.f32.mrf.mxu0
        %v2631 = vadd.f32 %v2395, %v2630
        %2632 = vmatmul.f32.gmra.mxu0 %v2506
        %v2633 = vpop.f32.mrf.mxu0
        %v2634 = vadd.f32 %v2398, %v2633
        %2635 = vmatmul.f32.gmra.mxu0 %v2509
        %v2636 = vpop.f32.mrf.mxu0
        %v2637 = vadd.f32 %v2401, %v2636
        %2638 = vmatmul.f32.gmra.mxu0 %v2512
        %v2639 = vpop.f32.mrf.mxu0
        %v2640 = vadd.f32 %v2404, %v2639
        %2641 = vmatmul.f32.gmra.mxu0 %v2515
        %v2642 = vpop.f32.mrf.mxu0
        %v2643 = vadd.f32 %v2407, %v2642
        %2644 = vmatmul.f32.gmra.mxu0 %v2518
        %v2645 = vpop.f32.mrf.mxu0
        %v2646 = vadd.f32 %v2410, %v2645
        %2647 = vmatmul.f32.gmra.mxu0 %v2521
        %v2648 = vpop.f32.mrf.mxu0
        %v2649 = vadd.f32 %v2413, %v2648
        %2650 = vmatmul.f32.gmra.mxu0 %v2524
        %v2651 = vpop.f32.mrf.mxu0
        %v2652 = vadd.f32 %v2416, %v2651
        %2653 = vmatmul.f32.gmra.mxu0 %v2527
        %v2654 = vpop.f32.mrf.mxu0
        %v2655 = vadd.f32 %v2419, %v2654
        %2656 = vmatmul.f32.gmra.mxu0 %v2530
        %v2657 = vpop.f32.mrf.mxu0
        %v2658 = vadd.f32 %v2422, %v2657
        %2659 = vmatmul.f32.gmra.mxu0 %v2533
        %v2660 = vpop.f32.mrf.mxu0
        %v2661 = vadd.f32 %v2425, %v2660
        %2662 = vmatmul.f32.gmra.mxu0 %v2536
        %v2663 = vpop.f32.mrf.mxu0
        %v2664 = vadd.f32 %v2428, %v2663
        %2665 = vmatmul.f32.gmra.mxu0 %v2539
        %v2666 = vpop.f32.mrf.mxu0
        %v2667 = vadd.f32 %v2431, %v2666
        %2668 = vmatmul.f32.gmra.mxu0 %v2542
        %v2669 = vpop.f32.mrf.mxu0
        %v2670 = vadd.f32 %v2434, %v2669
        %2671 = vmatmul.f32.gmra.mxu0 %v2545
        %v2672 = vpop.f32.mrf.mxu0
        %v2673 = vadd.f32 %v2437, %v2672
        %2674 = vmatmul.f32.gmra.mxu0 %v2548
        %v2675 = vpop.f32.mrf.mxu0
        %v2676 = vadd.f32 %v2440, %v2675
        %2677 = vmatmul.f32.gmra.mxu0 %v2551
        %v2678 = vpop.f32.mrf.mxu0
        %v2679 = vadd.f32 %v2443, %v2678
        %2680 = vmatmul.f32.gmra.mxu0 %v2554
        %v2681 = vpop.f32.mrf.mxu0
        %v2682 = vadd.f32 %v2446, %v2681
        %2683 = vmatmul.f32.gmra.mxu0 %v2557
        %v2684 = vpop.f32.mrf.mxu0
        %v2685 = vadd.f32 %v2449, %v2684
        %2686 = vmatmul.f32.gmra.mxu0 %v2560
        %v2687 = vpop.f32.mrf.mxu0
        %v2688 = vadd.f32 %v2452, %v2687
        %2689 = vmatmul.f32.gmra.mxu0 %v2563
        %v2690 = vpop.f32.mrf.mxu0
        %v2691 = vadd.f32 %v2455, %v2690
        %2692 = vmatmul.f32.gmra.mxu0 %v2566
        %v2693 = vpop.f32.mrf.mxu0
        %v2694 = vadd.f32 %v2458, %v2693
        %2695 = vdwg.mxu0
        %v2696 = vld [vmem:[#allocation2 + $0x24] sm:$0xff]
        %v2697 = vld [vmem:[#allocation2 + $0x2c] sm:$0xff]
        %v2698 = vld [vmem:[#allocation2 + $0x34] sm:$0xff]
        %v2699 = vld [vmem:[#allocation2 + $0x3c] sm:$0xff]
        %v2700 = vld [vmem:[#allocation2 + $0x44] sm:$0xff]
        %v2701 = vld [vmem:[#allocation2 + $0x4c] sm:$0xff]
        %v2702 = vld [vmem:[#allocation2 + $0x54] sm:$0xff]
        %v2703 = vld [vmem:[#allocation2 + $0x5c] sm:$0xff]
        %v2704 = vld [vmem:[#allocation2 + $0x64] sm:$0xff]
        %v2705 = vld [vmem:[#allocation2 + $0x6c] sm:$0xff]
        %v2706 = vld [vmem:[#allocation2 + $0x74] sm:$0xff]
        %v2707 = vld [vmem:[#allocation2 + $0x7c] sm:$0xff]
        %v2708 = vld [vmem:[#allocation2 + $0x84] sm:$0xff]
        %v2709 = vld [vmem:[#allocation2 + $0x8c] sm:$0xff]
        %v2710 = vld [vmem:[#allocation2 + $0x94] sm:$0xff]
        %v2711 = vld [vmem:[#allocation2 + $0x9c] sm:$0xff]
        %v2712 = vld [vmem:[#allocation2 + $0xa4] sm:$0xff]
        %v2713 = vld [vmem:[#allocation2 + $0xac] sm:$0xff]
        %v2714 = vld [vmem:[#allocation2 + $0xb4] sm:$0xff]
        %v2715 = vld [vmem:[#allocation2 + $0xbc] sm:$0xff]
        %v2716 = vld [vmem:[#allocation2 + $0xc4] sm:$0xff]
        %v2717 = vld [vmem:[#allocation2 + $0xcc] sm:$0xff]
        %v2718 = vld [vmem:[#allocation2 + $0xd4] sm:$0xff]
        %v2719 = vld [vmem:[#allocation2 + $0xdc] sm:$0xff]
        %v2720 = vld [vmem:[#allocation2 + $0xe4] sm:$0xff]
        %v2721 = vld [vmem:[#allocation2 + $0xec] sm:$0xff]
        %v2722 = vld [vmem:[#allocation2 + $0xf4] sm:$0xff]
        %v2723 = vld [vmem:[#allocation2 + $0xfc] sm:$0xff]
        %v2724 = vld [vmem:[#allocation2 + $0x104] sm:$0xff]
        %v2725 = vld [vmem:[#allocation2 + $0x10c] sm:$0xff]
        %v2726 = vld [vmem:[#allocation2 + $0x114] sm:$0xff]
        %v2727 = vld [vmem:[#allocation2 + $0x11c] sm:$0xff]
        %v2728 = vld [vmem:[#allocation2 + $0x124] sm:$0xff]
        %v2729 = vld [vmem:[#allocation2 + $0x12c] sm:$0xff]
        %v2730 = vld [vmem:[#allocation2 + $0x134] sm:$0xff]
        %v2731 = vld [vmem:[#allocation2 + $0x13c] sm:$0xff]
        %v2732 = vld [vmem:[#allocation2 + $0x25] sm:$0xff]
        %v2733 = vld [vmem:[#allocation2 + $0x2d] sm:$0xff]
        %v2734 = vld [vmem:[#allocation2 + $0x35] sm:$0xff]
        %v2735 = vld [vmem:[#allocation2 + $0x3d] sm:$0xff]
        %v2736 = vld [vmem:[#allocation2 + $0x45] sm:$0xff]
        %v2737 = vld [vmem:[#allocation2 + $0x4d] sm:$0xff]
        %v2738 = vld [vmem:[#allocation2 + $0x55] sm:$0xff]
        %v2739 = vld [vmem:[#allocation2 + $0x5d] sm:$0xff]
        %v2740 = vld [vmem:[#allocation2 + $0x65] sm:$0xff]
        %v2741 = vld [vmem:[#allocation2 + $0x6d] sm:$0xff]
        %v2742 = vld [vmem:[#allocation2 + $0x75] sm:$0xff]
        %v2743 = vld [vmem:[#allocation2 + $0x7d] sm:$0xff]
        %v2744 = vld [vmem:[#allocation2 + $0x85] sm:$0xff]
        %v2745 = vld [vmem:[#allocation2 + $0x8d] sm:$0xff]
        %v2746 = vld [vmem:[#allocation2 + $0x95] sm:$0xff]
        %v2747 = vld [vmem:[#allocation2 + $0x9d] sm:$0xff]
        %v2748 = vld [vmem:[#allocation2 + $0xa5] sm:$0xff]
        %v2749 = vld [vmem:[#allocation2 + $0xad] sm:$0xff]
        %v2750 = vld [vmem:[#allocation2 + $0xb5] sm:$0xff]
        %v2751 = vld [vmem:[#allocation2 + $0xbd] sm:$0xff]
        %v2752 = vld [vmem:[#allocation2 + $0xc5] sm:$0xff]
        %v2753 = vld [vmem:[#allocation2 + $0xcd] sm:$0xff]
        %v2754 = vld [vmem:[#allocation2 + $0xd5] sm:$0xff]
        %v2755 = vld [vmem:[#allocation2 + $0xdd] sm:$0xff]
        %v2756 = vld [vmem:[#allocation2 + $0xe5] sm:$0xff]
        %v2757 = vld [vmem:[#allocation2 + $0xed] sm:$0xff]
        %v2758 = vld [vmem:[#allocation2 + $0xf5] sm:$0xff]
        %v2759 = vld [vmem:[#allocation2 + $0xfd] sm:$0xff]
        %v2760 = vld [vmem:[#allocation2 + $0x105] sm:$0xff]
        %v2761 = vld [vmem:[#allocation2 + $0x10d] sm:$0xff]
        %v2762 = vld [vmem:[#allocation2 + $0x115] sm:$0xff]
        %v2763 = vld [vmem:[#allocation2 + $0x11d] sm:$0xff]
        %v2764 = vld [vmem:[#allocation2 + $0x125] sm:$0xff]
        %v2765 = vld [vmem:[#allocation2 + $0x12d] sm:$0xff]
        %v2766 = vld [vmem:[#allocation2 + $0x135] sm:$0xff]
        %v2767 = vld [vmem:[#allocation2 + $0x13d] sm:$0xff]
        %v2768 = vld [vmem:[#allocation2 + $0x26] sm:$0xff]
        %v2769 = vld [vmem:[#allocation2 + $0x2e] sm:$0xff]
        %v2770 = vld [vmem:[#allocation2 + $0x36] sm:$0xff]
        %v2771 = vld [vmem:[#allocation2 + $0x3e] sm:$0xff]
        %v2772 = vld [vmem:[#allocation2 + $0x46] sm:$0xff]
        %v2773 = vld [vmem:[#allocation2 + $0x4e] sm:$0xff]
        %v2774 = vld [vmem:[#allocation2 + $0x56] sm:$0xff]
        %v2775 = vld [vmem:[#allocation2 + $0x5e] sm:$0xff]
        %v2776 = vld [vmem:[#allocation2 + $0x66] sm:$0xff]
        %v2777 = vld [vmem:[#allocation2 + $0x6e] sm:$0xff]
        %v2778 = vld [vmem:[#allocation2 + $0x76] sm:$0xff]
        %v2779 = vld [vmem:[#allocation2 + $0x7e] sm:$0xff]
        %v2780 = vld [vmem:[#allocation2 + $0x86] sm:$0xff]
        %v2781 = vld [vmem:[#allocation2 + $0x8e] sm:$0xff]
        %v2782 = vld [vmem:[#allocation2 + $0x96] sm:$0xff]
        %v2783 = vld [vmem:[#allocation2 + $0x9e] sm:$0xff]
        %v2784 = vld [vmem:[#allocation2 + $0xa6] sm:$0xff]
        %v2785 = vld [vmem:[#allocation2 + $0xae] sm:$0xff]
        %v2786 = vld [vmem:[#allocation2 + $0xb6] sm:$0xff]
        %v2787 = vld [vmem:[#allocation2 + $0xbe] sm:$0xff]
        %v2788 = vld [vmem:[#allocation2 + $0xc6] sm:$0xff]
        %v2789 = vld [vmem:[#allocation2 + $0xce] sm:$0xff]
        %v2790 = vld [vmem:[#allocation2 + $0xd6] sm:$0xff]
        %v2791 = vld [vmem:[#allocation2 + $0xde] sm:$0xff]
        %v2792 = vld [vmem:[#allocation2 + $0xe6] sm:$0xff]
        %v2793 = vld [vmem:[#allocation2 + $0xee] sm:$0xff]
        %v2794 = vld [vmem:[#allocation2 + $0xf6] sm:$0xff]
        %v2795 = vld [vmem:[#allocation2 + $0xfe] sm:$0xff]
        %v2796 = vld [vmem:[#allocation2 + $0x106] sm:$0xff]
        %v2797 = vld [vmem:[#allocation2 + $0x10e] sm:$0xff]
        %v2798 = vld [vmem:[#allocation2 + $0x116] sm:$0xff]
        %v2799 = vld [vmem:[#allocation2 + $0x11e] sm:$0xff]
        %v2800 = vld [vmem:[#allocation2 + $0x126] sm:$0xff]
        %v2801 = vld [vmem:[#allocation2 + $0x12e] sm:$0xff]
        %v2802 = vld [vmem:[#allocation2 + $0x136] sm:$0xff]
        %v2803 = vld [vmem:[#allocation2 + $0x13e] sm:$0xff]
        %2840 = vrot.lane.b32.xlu0 %v2732, 4
        %v2841 = vpop.permute.xlu0 %2840
        %2842 = vrot.lane.b32.xlu0 %v2733, 4
        %v2843 = vpop.permute.xlu0 %2842
        %2844 = vrot.lane.b32.xlu0 %v2734, 4
        %v2845 = vpop.permute.xlu0 %2844
        %2846 = vrot.lane.b32.xlu0 %v2735, 4
        %v2847 = vpop.permute.xlu0 %2846
        %2848 = vrot.lane.b32.xlu0 %v2736, 4
        %v2849 = vpop.permute.xlu0 %2848
        %2850 = vrot.lane.b32.xlu0 %v2737, 4
        %v2851 = vpop.permute.xlu0 %2850
        %2852 = vrot.lane.b32.xlu0 %v2738, 4
        %v2853 = vpop.permute.xlu0 %2852
        %2854 = vrot.lane.b32.xlu0 %v2739, 4
        %v2855 = vpop.permute.xlu0 %2854
        %2856 = vrot.lane.b32.xlu0 %v2740, 4
        %v2857 = vpop.permute.xlu0 %2856
        %2858 = vrot.lane.b32.xlu0 %v2741, 4
        %v2859 = vpop.permute.xlu0 %2858
        %2860 = vrot.lane.b32.xlu0 %v2742, 4
        %v2861 = vpop.permute.xlu0 %2860
        %2862 = vrot.lane.b32.xlu0 %v2743, 4
        %v2863 = vpop.permute.xlu0 %2862
        %2864 = vrot.lane.b32.xlu0 %v2744, 4
        %v2865 = vpop.permute.xlu0 %2864
        %2866 = vrot.lane.b32.xlu0 %v2745, 4
        %v2867 = vpop.permute.xlu0 %2866
        %2868 = vrot.lane.b32.xlu0 %v2746, 4
        %v2869 = vpop.permute.xlu0 %2868
        %2870 = vrot.lane.b32.xlu0 %v2747, 4
        %v2871 = vpop.permute.xlu0 %2870
        %2872 = vrot.lane.b32.xlu0 %v2748, 4
        %v2873 = vpop.permute.xlu0 %2872
        %2874 = vrot.lane.b32.xlu0 %v2749, 4
        %v2875 = vpop.permute.xlu0 %2874
        %2876 = vrot.lane.b32.xlu0 %v2750, 4
        %v2877 = vpop.permute.xlu0 %2876
        %2878 = vrot.lane.b32.xlu0 %v2751, 4
        %v2879 = vpop.permute.xlu0 %2878
        %2880 = vrot.lane.b32.xlu0 %v2752, 4
        %v2881 = vpop.permute.xlu0 %2880
        %2882 = vrot.lane.b32.xlu0 %v2753, 4
        %v2883 = vpop.permute.xlu0 %2882
        %2884 = vrot.lane.b32.xlu0 %v2754, 4
        %v2885 = vpop.permute.xlu0 %2884
        %2886 = vrot.lane.b32.xlu0 %v2755, 4
        %v2887 = vpop.permute.xlu0 %2886
        %2888 = vrot.lane.b32.xlu0 %v2756, 4
        %v2889 = vpop.permute.xlu0 %2888
        %2890 = vrot.lane.b32.xlu0 %v2757, 4
        %v2891 = vpop.permute.xlu0 %2890
        %2892 = vrot.lane.b32.xlu0 %v2758, 4
        %v2893 = vpop.permute.xlu0 %2892
        %2894 = vrot.lane.b32.xlu0 %v2759, 4
        %v2895 = vpop.permute.xlu0 %2894
        %2896 = vrot.lane.b32.xlu0 %v2760, 4
        %v2897 = vpop.permute.xlu0 %2896
        %2898 = vrot.lane.b32.xlu0 %v2761, 4
        %v2899 = vpop.permute.xlu0 %2898
        %2900 = vrot.lane.b32.xlu0 %v2762, 4
        %v2901 = vpop.permute.xlu0 %2900
        %2902 = vrot.lane.b32.xlu0 %v2763, 4
        %v2903 = vpop.permute.xlu0 %2902
        %2904 = vrot.lane.b32.xlu0 %v2764, 4
        %v2905 = vpop.permute.xlu0 %2904
        %2906 = vrot.lane.b32.xlu0 %v2765, 4
        %v2907 = vpop.permute.xlu0 %2906
        %2908 = vrot.lane.b32.xlu0 %v2766, 4
        %v2909 = vpop.permute.xlu0 %2908
        %2910 = vrot.lane.b32.xlu0 %v2767, 4
        %v2911 = vpop.permute.xlu0 %2910
        %2984 = vrot.lane.b32.xlu0 %v2768, 8
        %v2985 = vpop.permute.xlu0 %2984
        %2986 = vrot.lane.b32.xlu0 %v2769, 8
        %v2987 = vpop.permute.xlu0 %2986
        %2988 = vrot.lane.b32.xlu0 %v2770, 8
        %v2989 = vpop.permute.xlu0 %2988
        %2990 = vrot.lane.b32.xlu0 %v2771, 8
        %v2991 = vpop.permute.xlu0 %2990
        %2992 = vrot.lane.b32.xlu0 %v2772, 8
        %v2993 = vpop.permute.xlu0 %2992
        %2994 = vrot.lane.b32.xlu0 %v2773, 8
        %v2995 = vpop.permute.xlu0 %2994
        %2996 = vrot.lane.b32.xlu0 %v2774, 8
        %v2997 = vpop.permute.xlu0 %2996
        %2998 = vrot.lane.b32.xlu0 %v2775, 8
        %v2999 = vpop.permute.xlu0 %2998
        %3000 = vrot.lane.b32.xlu0 %v2776, 8
        %v3001 = vpop.permute.xlu0 %3000
        %3002 = vrot.lane.b32.xlu0 %v2777, 8
        %v3003 = vpop.permute.xlu0 %3002
        %3004 = vrot.lane.b32.xlu0 %v2778, 8
        %v3005 = vpop.permute.xlu0 %3004
        %3006 = vrot.lane.b32.xlu0 %v2779, 8
        %v3007 = vpop.permute.xlu0 %3006
        %3008 = vrot.lane.b32.xlu0 %v2780, 8
        %v3009 = vpop.permute.xlu0 %3008
        %3010 = vrot.lane.b32.xlu0 %v2781, 8
        %v3011 = vpop.permute.xlu0 %3010
        %3012 = vrot.lane.b32.xlu0 %v2782, 8
        %v3013 = vpop.permute.xlu0 %3012
        %3014 = vrot.lane.b32.xlu0 %v2783, 8
        %v3015 = vpop.permute.xlu0 %3014
        %3016 = vrot.lane.b32.xlu0 %v2784, 8
        %v3017 = vpop.permute.xlu0 %3016
        %3018 = vrot.lane.b32.xlu0 %v2785, 8
        %v3019 = vpop.permute.xlu0 %3018
        %3020 = vrot.lane.b32.xlu0 %v2786, 8
        %v3021 = vpop.permute.xlu0 %3020
        %3022 = vrot.lane.b32.xlu0 %v2787, 8
        %v3023 = vpop.permute.xlu0 %3022
        %3024 = vrot.lane.b32.xlu0 %v2788, 8
        %v3025 = vpop.permute.xlu0 %3024
        %3026 = vrot.lane.b32.xlu0 %v2789, 8
        %v3027 = vpop.permute.xlu0 %3026
        %3028 = vrot.lane.b32.xlu0 %v2790, 8
        %v3029 = vpop.permute.xlu0 %3028
        %3030 = vrot.lane.b32.xlu0 %v2791, 8
        %v3031 = vpop.permute.xlu0 %3030
        %3032 = vrot.lane.b32.xlu0 %v2792, 8
        %v3033 = vpop.permute.xlu0 %3032
        %3034 = vrot.lane.b32.xlu0 %v2793, 8
        %v3035 = vpop.permute.xlu0 %3034
        %3036 = vrot.lane.b32.xlu0 %v2794, 8
        %v3037 = vpop.permute.xlu0 %3036
        %3038 = vrot.lane.b32.xlu0 %v2795, 8
        %v3039 = vpop.permute.xlu0 %3038
        %3040 = vrot.lane.b32.xlu0 %v2796, 8
        %v3041 = vpop.permute.xlu0 %3040
        %3042 = vrot.lane.b32.xlu0 %v2797, 8
        %v3043 = vpop.permute.xlu0 %3042
        %3044 = vrot.lane.b32.xlu0 %v2798, 8
        %v3045 = vpop.permute.xlu0 %3044
        %3046 = vrot.lane.b32.xlu0 %v2799, 8
        %v3047 = vpop.permute.xlu0 %3046
        %3048 = vrot.lane.b32.xlu0 %v2800, 8
        %v3049 = vpop.permute.xlu0 %3048
        %3050 = vrot.lane.b32.xlu0 %v2801, 8
        %v3051 = vpop.permute.xlu0 %3050
        %3052 = vrot.lane.b32.xlu0 %v2802, 8
        %v3053 = vpop.permute.xlu0 %3052
        %3054 = vrot.lane.b32.xlu0 %v2803, 8
        %v3055 = vpop.permute.xlu0 %3054
        %v3092 = vsel %vm277, %v2696, %v2841
        %v3093 = vsel %vm277, %v2697, %v2843
        %v3094 = vsel %vm277, %v2698, %v2845
        %v3095 = vsel %vm277, %v2699, %v2847
        %v3096 = vsel %vm277, %v2700, %v2849
        %v3097 = vsel %vm277, %v2701, %v2851
        %v3098 = vsel %vm277, %v2702, %v2853
        %v3099 = vsel %vm277, %v2703, %v2855
        %v3100 = vsel %vm277, %v2704, %v2857
        %v3101 = vsel %vm277, %v2705, %v2859
        %v3102 = vsel %vm277, %v2706, %v2861
        %v3103 = vsel %vm277, %v2707, %v2863
        %v3104 = vsel %vm277, %v2708, %v2865
        %v3105 = vsel %vm277, %v2709, %v2867
        %v3106 = vsel %vm277, %v2710, %v2869
        %v3107 = vsel %vm277, %v2711, %v2871
        %v3108 = vsel %vm277, %v2712, %v2873
        %v3109 = vsel %vm277, %v2713, %v2875
        %v3110 = vsel %vm277, %v2714, %v2877
        %v3111 = vsel %vm277, %v2715, %v2879
        %v3112 = vsel %vm277, %v2716, %v2881
        %v3113 = vsel %vm277, %v2717, %v2883
        %v3114 = vsel %vm277, %v2718, %v2885
        %v3115 = vsel %vm277, %v2719, %v2887
        %v3116 = vsel %vm277, %v2720, %v2889
        %v3117 = vsel %vm277, %v2721, %v2891
        %v3118 = vsel %vm277, %v2722, %v2893
        %v3119 = vsel %vm277, %v2723, %v2895
        %v3120 = vsel %vm277, %v2724, %v2897
        %v3121 = vsel %vm277, %v2725, %v2899
        %v3122 = vsel %vm277, %v2726, %v2901
        %v3123 = vsel %vm277, %v2727, %v2903
        %v3124 = vsel %vm277, %v2728, %v2905
        %v3125 = vsel %vm277, %v2729, %v2907
        %v3126 = vsel %vm277, %v2730, %v2909
        %v3127 = vsel %vm277, %v2731, %v2911
        %v3128 = vsel %vm326, %v3092, %v2985
        %v3129 = vsel %vm326, %v3093, %v2987
        %v3130 = vsel %vm326, %v3094, %v2989
        %v3131 = vsel %vm326, %v3095, %v2991
        %v3132 = vsel %vm326, %v3096, %v2993
        %v3133 = vsel %vm326, %v3097, %v2995
        %v3134 = vsel %vm326, %v3098, %v2997
        %v3135 = vsel %vm326, %v3099, %v2999
        %v3136 = vsel %vm326, %v3100, %v3001
        %v3137 = vsel %vm326, %v3101, %v3003
        %v3138 = vsel %vm326, %v3102, %v3005
        %v3139 = vsel %vm326, %v3103, %v3007
        %v3140 = vsel %vm326, %v3104, %v3009
        %v3141 = vsel %vm326, %v3105, %v3011
        %v3142 = vsel %vm326, %v3106, %v3013
        %v3143 = vsel %vm326, %v3107, %v3015
        %v3144 = vsel %vm326, %v3108, %v3017
        %v3145 = vsel %vm326, %v3109, %v3019
        %v3146 = vsel %vm326, %v3110, %v3021
        %v3147 = vsel %vm326, %v3111, %v3023
        %v3148 = vsel %vm326, %v3112, %v3025
        %v3149 = vsel %vm326, %v3113, %v3027
        %v3150 = vsel %vm326, %v3114, %v3029
        %v3151 = vsel %vm326, %v3115, %v3031
        %v3152 = vsel %vm326, %v3116, %v3033
        %v3153 = vsel %vm326, %v3117, %v3035
        %v3154 = vsel %vm326, %v3118, %v3037
        %v3155 = vsel %vm326, %v3119, %v3039
        %v3156 = vsel %vm326, %v3120, %v3041
        %v3157 = vsel %vm326, %v3121, %v3043
        %v3158 = vsel %vm326, %v3122, %v3045
        %v3159 = vsel %vm326, %v3123, %v3047
        %v3160 = vsel %vm326, %v3124, %v3049
        %v3161 = vsel %vm326, %v3125, %v3051
        %v3162 = vsel %vm326, %v3126, %v3053
        %v3163 = vsel %vm326, %v3127, %v3055
        %s3164 = scalar_lea.vmem %s5, 32
        %v3165 = vld [vmem:[%s3164] sm:$0xff]
        %v3166 = vld [vmem:[%s3164 + $0x8] sm:$0xf]
        %v3168 = vsel %vm2223, %v3128, 0
        %v3171 = vsel %vm2223, %v3129, 0
        %v3174 = vsel %vm2223, %v3130, 0
        %v3177 = vsel %vm2223, %v3131, 0
        %v3180 = vsel %vm2223, %v3132, 0
        %v3183 = vsel %vm2223, %v3133, 0
        %v3186 = vsel %vm2223, %v3134, 0
        %v3189 = vsel %vm2223, %v3135, 0
        %v3192 = vsel %vm2223, %v3136, 0
        %v3195 = vsel %vm2223, %v3137, 0
        %v3198 = vsel %vm2223, %v3138, 0
        %v3201 = vsel %vm2223, %v3139, 0
        %v3204 = vsel %vm2223, %v3140, 0
        %v3207 = vsel %vm2223, %v3141, 0
        %v3210 = vsel %vm2223, %v3142, 0
        %v3213 = vsel %vm2223, %v3143, 0
        %v3216 = vsel %vm2223, %v3144, 0
        %v3219 = vsel %vm2223, %v3145, 0
        %v3222 = vsel %vm2223, %v3146, 0
        %v3225 = vsel %vm2223, %v3147, 0
        %v3228 = vsel %vm2223, %v3148, 0
        %v3231 = vsel %vm2223, %v3149, 0
        %v3234 = vsel %vm2223, %v3150, 0
        %v3237 = vsel %vm2223, %v3151, 0
        %v3240 = vsel %vm2223, %v3152, 0
        %v3243 = vsel %vm2223, %v3153, 0
        %v3246 = vsel %vm2223, %v3154, 0
        %v3249 = vsel %vm2223, %v3155, 0
        %v3252 = vsel %vm2223, %v3156, 0
        %v3255 = vsel %vm2223, %v3157, 0
        %v3258 = vsel %vm2223, %v3158, 0
        %v3261 = vsel %vm2223, %v3159, 0
        %v3264 = vsel %vm2223, %v3160, 0
        %v3267 = vsel %vm2223, %v3161, 0
        %v3270 = vsel %vm2223, %v3162, 0
        %v3273 = vsel %vm2223, %v3163, 0
        %v3276 = vsel %vm667, %v3166, 0
        %3278 = vmatpush.msra.mxu0 0.0
        %3279 = vmatpush.msra.mxu0 0.0
        %3280 = vmatpush.msra.mxu0 0.0
        %3281 = vmatpush.msra.mxu0 0.0
        %3282 = vmatpush.msra.mxu0 0.0
        %3283 = vmatpush.msra.mxu0 0.0
        %3284 = vmatpush.msra.mxu0 0.0
        %3285 = vmatpush.msra.mxu0 0.0
        %3286 = vmatpush.msra.mxu0 0.0
        %3287 = vmatpush.msra.mxu0 0.0
        %3288 = vmatpush.msra.mxu0 0.0
        %3289 = vmatpush.msra.mxu0 0.0
        %3290 = vmatpush.msra.mxu0 0.0
        %3291 = vmatpush.msra.mxu0 0.0
        %3292 = vmatpush.msra.mxu0 %v3276
        %3293 = vmatpush.msra.mxu0 %v3165
        %3294 = vmatmul.f32.gmra.mxu0 %v3168
        %v3295 = vpop.f32.mrf.mxu0
        %v3296 = vadd.f32 0.0, %v3295
        %3297 = vmatmul.f32.gmra.mxu0 %v3171
        %v3298 = vpop.f32.mrf.mxu0
        %v3299 = vadd.f32 0.0, %v3298
        %3300 = vmatmul.f32.gmra.mxu0 %v3174
        %v3301 = vpop.f32.mrf.mxu0
        %v3302 = vadd.f32 0.0, %v3301
        %3303 = vmatmul.f32.gmra.mxu0 %v3177
        %v3304 = vpop.f32.mrf.mxu0
        %v3305 = vadd.f32 0.0, %v3304
        %3306 = vmatmul.f32.gmra.mxu0 %v3180
        %v3307 = vpop.f32.mrf.mxu0
        %v3308 = vadd.f32 0.0, %v3307
        %3309 = vmatmul.f32.gmra.mxu0 %v3183
        %v3310 = vpop.f32.mrf.mxu0
        %v3311 = vadd.f32 0.0, %v3310
        %3312 = vmatmul.f32.gmra.mxu0 %v3186
        %v3313 = vpop.f32.mrf.mxu0
        %v3314 = vadd.f32 0.0, %v3313
        %3315 = vmatmul.f32.gmra.mxu0 %v3189
        %v3316 = vpop.f32.mrf.mxu0
        %v3317 = vadd.f32 0.0, %v3316
        %3318 = vmatmul.f32.gmra.mxu0 %v3192
        %v3319 = vpop.f32.mrf.mxu0
        %v3320 = vadd.f32 0.0, %v3319
        %3321 = vmatmul.f32.gmra.mxu0 %v3195
        %v3322 = vpop.f32.mrf.mxu0
        %v3323 = vadd.f32 0.0, %v3322
        %3324 = vmatmul.f32.gmra.mxu0 %v3198
        %v3325 = vpop.f32.mrf.mxu0
        %v3326 = vadd.f32 0.0, %v3325
        %3327 = vmatmul.f32.gmra.mxu0 %v3201
        %v3328 = vpop.f32.mrf.mxu0
        %v3329 = vadd.f32 0.0, %v3328
        %3330 = vmatmul.f32.gmra.mxu0 %v3204
        %v3331 = vpop.f32.mrf.mxu0
        %v3332 = vadd.f32 0.0, %v3331
        %3333 = vmatmul.f32.gmra.mxu0 %v3207
        %v3334 = vpop.f32.mrf.mxu0
        %v3335 = vadd.f32 0.0, %v3334
        %3336 = vmatmul.f32.gmra.mxu0 %v3210
        %v3337 = vpop.f32.mrf.mxu0
        %v3338 = vadd.f32 0.0, %v3337
        %3339 = vmatmul.f32.gmra.mxu0 %v3213
        %v3340 = vpop.f32.mrf.mxu0
        %v3341 = vadd.f32 0.0, %v3340
        %3342 = vmatmul.f32.gmra.mxu0 %v3216
        %v3343 = vpop.f32.mrf.mxu0
        %v3344 = vadd.f32 0.0, %v3343
        %3345 = vmatmul.f32.gmra.mxu0 %v3219
        %v3346 = vpop.f32.mrf.mxu0
        %v3347 = vadd.f32 0.0, %v3346
        %3348 = vmatmul.f32.gmra.mxu0 %v3222
        %v3349 = vpop.f32.mrf.mxu0
        %v3350 = vadd.f32 0.0, %v3349
        %3351 = vmatmul.f32.gmra.mxu0 %v3225
        %v3352 = vpop.f32.mrf.mxu0
        %v3353 = vadd.f32 0.0, %v3352
        %3354 = vmatmul.f32.gmra.mxu0 %v3228
        %v3355 = vpop.f32.mrf.mxu0
        %v3356 = vadd.f32 0.0, %v3355
        %3357 = vmatmul.f32.gmra.mxu0 %v3231
        %v3358 = vpop.f32.mrf.mxu0
        %v3359 = vadd.f32 0.0, %v3358
        %3360 = vmatmul.f32.gmra.mxu0 %v3234
        %v3361 = vpop.f32.mrf.mxu0
        %v3362 = vadd.f32 0.0, %v3361
        %3363 = vmatmul.f32.gmra.mxu0 %v3237
        %v3364 = vpop.f32.mrf.mxu0
        %v3365 = vadd.f32 0.0, %v3364
        %3366 = vmatmul.f32.gmra.mxu0 %v3240
        %v3367 = vpop.f32.mrf.mxu0
        %v3368 = vadd.f32 0.0, %v3367
        %3369 = vmatmul.f32.gmra.mxu0 %v3243
        %v3370 = vpop.f32.mrf.mxu0
        %v3371 = vadd.f32 0.0, %v3370
        %3372 = vmatmul.f32.gmra.mxu0 %v3246
        %v3373 = vpop.f32.mrf.mxu0
        %v3374 = vadd.f32 0.0, %v3373
        %3375 = vmatmul.f32.gmra.mxu0 %v3249
        %v3376 = vpop.f32.mrf.mxu0
        %v3377 = vadd.f32 0.0, %v3376
        %3378 = vmatmul.f32.gmra.mxu0 %v3252
        %v3379 = vpop.f32.mrf.mxu0
        %v3380 = vadd.f32 0.0, %v3379
        %3381 = vmatmul.f32.gmra.mxu0 %v3255
        %v3382 = vpop.f32.mrf.mxu0
        %v3383 = vadd.f32 0.0, %v3382
        %3384 = vmatmul.f32.gmra.mxu0 %v3258
        %v3385 = vpop.f32.mrf.mxu0
        %v3386 = vadd.f32 0.0, %v3385
        %3387 = vmatmul.f32.gmra.mxu0 %v3261
        %v3388 = vpop.f32.mrf.mxu0
        %v3389 = vadd.f32 0.0, %v3388
        %3390 = vmatmul.f32.gmra.mxu0 %v3264
        %v3391 = vpop.f32.mrf.mxu0
        %v3392 = vadd.f32 0.0, %v3391
        %3393 = vmatmul.f32.gmra.mxu0 %v3267
        %v3394 = vpop.f32.mrf.mxu0
        %v3395 = vadd.f32 0.0, %v3394
        %3396 = vmatmul.f32.gmra.mxu0 %v3270
        %v3397 = vpop.f32.mrf.mxu0
        %v3398 = vadd.f32 0.0, %v3397
        %3399 = vmatmul.f32.gmra.mxu0 %v3273
        %v3400 = vpop.f32.mrf.mxu0
        %v3401 = vadd.f32 0.0, %v3400
        %3402 = vdwg.mxu0
        %v3403 = vadd.f32 %v2589, %v3296
        %v3404 = vadd.f32 %v2592, %v3299
        %v3405 = vadd.f32 %v2595, %v3302
        %v3406 = vadd.f32 %v2598, %v3305
        %v3407 = vadd.f32 %v2601, %v3308
        %v3408 = vadd.f32 %v2604, %v3311
        %v3409 = vadd.f32 %v2607, %v3314
        %v3410 = vadd.f32 %v2610, %v3317
        %v3411 = vadd.f32 %v2613, %v3320
        %v3412 = vadd.f32 %v2616, %v3323
        %v3413 = vadd.f32 %v2619, %v3326
        %v3414 = vadd.f32 %v2622, %v3329
        %v3415 = vadd.f32 %v2625, %v3332
        %v3416 = vadd.f32 %v2628, %v3335
        %v3417 = vadd.f32 %v2631, %v3338
        %v3418 = vadd.f32 %v2634, %v3341
        %v3419 = vadd.f32 %v2637, %v3344
        %v3420 = vadd.f32 %v2640, %v3347
        %v3421 = vadd.f32 %v2643, %v3350
        %v3422 = vadd.f32 %v2646, %v3353
        %v3423 = vadd.f32 %v2649, %v3356
        %v3424 = vadd.f32 %v2652, %v3359
        %v3425 = vadd.f32 %v2655, %v3362
        %v3426 = vadd.f32 %v2658, %v3365
        %v3427 = vadd.f32 %v2661, %v3368
        %v3428 = vadd.f32 %v2664, %v3371
        %v3429 = vadd.f32 %v2667, %v3374
        %v3430 = vadd.f32 %v2670, %v3377
        %v3431 = vadd.f32 %v2673, %v3380
        %v3432 = vadd.f32 %v2676, %v3383
        %v3433 = vadd.f32 %v2679, %v3386
        %v3434 = vadd.f32 %v2682, %v3389
        %v3435 = vadd.f32 %v2685, %v3392
        %v3436 = vadd.f32 %v2688, %v3395
        %v3437 = vadd.f32 %v2691, %v3398
        %v3438 = vadd.f32 %v2694, %v3401
        %v3440 = vperm.slane %v290, 0
        %v3442 = vadd.f32 %v3403, %v3440
        %v3443 = vadd.f32 %v3404, %v3440
        %v3444 = vadd.f32 %v3405, %v3440
        %v3445 = vadd.f32 %v3406, %v3440
        %v3446 = vadd.f32 %v3407, %v3440
        %v3447 = vadd.f32 %v3408, %v3440
        %v3448 = vadd.f32 %v3409, %v3440
        %v3449 = vadd.f32 %v3410, %v3440
        %v3450 = vadd.f32 %v3411, %v3440
        %v3451 = vadd.f32 %v3412, %v3440
        %v3452 = vadd.f32 %v3413, %v3440
        %v3453 = vadd.f32 %v3414, %v3440
        %v3454 = vadd.f32 %v3415, %v3440
        %v3455 = vadd.f32 %v3416, %v3440
        %v3456 = vadd.f32 %v3417, %v3440
        %v3457 = vadd.f32 %v3418, %v3440
        %v3458 = vadd.f32 %v3419, %v3440
        %v3459 = vadd.f32 %v3420, %v3440
        %v3460 = vadd.f32 %v3421, %v3440
        %v3461 = vadd.f32 %v3422, %v3440
        %v3462 = vadd.f32 %v3423, %v3440
        %v3463 = vadd.f32 %v3424, %v3440
        %v3464 = vadd.f32 %v3425, %v3440
        %v3465 = vadd.f32 %v3426, %v3440
        %v3466 = vadd.f32 %v3427, %v3440
        %v3467 = vadd.f32 %v3428, %v3440
        %v3468 = vadd.f32 %v3429, %v3440
        %v3469 = vadd.f32 %v3430, %v3440
        %v3470 = vadd.f32 %v3431, %v3440
        %v3471 = vadd.f32 %v3432, %v3440
        %v3472 = vadd.f32 %v3433, %v3440
        %v3473 = vadd.f32 %v3434, %v3440
        %v3474 = vadd.f32 %v3435, %v3440
        %v3475 = vadd.f32 %v3436, %v3440
        %v3476 = vadd.f32 %v3437, %v3440
        %v3477 = vadd.f32 %v3438, %v3440
        %v3478 = vmax.f32 %v3442, 0.0
        %v3479 = vmax.f32 %v3443, 0.0
        %v3480 = vmax.f32 %v3444, 0.0
        %v3481 = vmax.f32 %v3445, 0.0
        %v3482 = vmax.f32 %v3446, 0.0
        %v3483 = vmax.f32 %v3447, 0.0
        %v3484 = vmax.f32 %v3448, 0.0
        %v3485 = vmax.f32 %v3449, 0.0
        %v3486 = vmax.f32 %v3450, 0.0
        %v3487 = vmax.f32 %v3451, 0.0
        %v3488 = vmax.f32 %v3452, 0.0
        %v3489 = vmax.f32 %v3453, 0.0
        %v3490 = vmax.f32 %v3454, 0.0
        %v3491 = vmax.f32 %v3455, 0.0
        %v3492 = vmax.f32 %v3456, 0.0
        %v3493 = vmax.f32 %v3457, 0.0
        %v3494 = vmax.f32 %v3458, 0.0
        %v3495 = vmax.f32 %v3459, 0.0
        %v3496 = vmax.f32 %v3460, 0.0
        %v3497 = vmax.f32 %v3461, 0.0
        %v3498 = vmax.f32 %v3462, 0.0
        %v3499 = vmax.f32 %v3463, 0.0
        %v3500 = vmax.f32 %v3464, 0.0
        %v3501 = vmax.f32 %v3465, 0.0
        %v3502 = vmax.f32 %v3466, 0.0
        %v3503 = vmax.f32 %v3467, 0.0
        %v3504 = vmax.f32 %v3468, 0.0
        %v3505 = vmax.f32 %v3469, 0.0
        %v3506 = vmax.f32 %v3470, 0.0
        %v3507 = vmax.f32 %v3471, 0.0
        %v3508 = vmax.f32 %v3472, 0.0
        %v3509 = vmax.f32 %v3473, 0.0
        %v3510 = vmax.f32 %v3474, 0.0
        %v3511 = vmax.f32 %v3475, 0.0
        %v3512 = vmax.f32 %v3476, 0.0
        %v3513 = vmax.f32 %v3477, 0.0
        %v3550 = vrot.slane %v3478, 2
        %v3551 = vrot.slane %v3478, 4
        %v3552 = vrot.slane %v3478, 6
        %v3553 = vrot.slane %v3479, 2
        %v3554 = vrot.slane %v3479, 4
        %v3555 = vrot.slane %v3479, 6
        %v3556 = vrot.slane %v3480, 2
        %v3557 = vrot.slane %v3480, 4
        %v3558 = vrot.slane %v3480, 6
        %v3559 = vrot.slane %v3481, 2
        %v3560 = vrot.slane %v3481, 4
        %v3561 = vrot.slane %v3481, 6
        %v3562 = vrot.slane %v3482, 4
        %v3563 = vrot.slane %v3482, 6
        %v3564 = vrot.slane %v3483, 2
        %v3565 = vrot.slane %v3483, 4
        %v3566 = vrot.slane %v3483, 6
        %v3567 = vrot.slane %v3484, 2
        %v3568 = vrot.slane %v3484, 6
        %v3569 = vrot.slane %v3485, 2
        %v3570 = vrot.slane %v3485, 4
        %v3571 = vrot.slane %v3485, 6
        %v3572 = vrot.slane %v3486, 2
        %v3573 = vrot.slane %v3486, 4
        %v3574 = vrot.slane %v3487, 2
        %v3575 = vrot.slane %v3487, 4
        %v3576 = vrot.slane %v3487, 6
        %v3577 = vrot.slane %v3488, 2
        %v3578 = vrot.slane %v3488, 4
        %v3579 = vrot.slane %v3488, 6
        %v3580 = vrot.slane %v3489, 2
        %v3581 = vrot.slane %v3489, 4
        %v3582 = vrot.slane %v3489, 6
        %v3583 = vrot.slane %v3490, 2
        %v3584 = vrot.slane %v3490, 4
        %v3585 = vrot.slane %v3490, 6
        %v3586 = vrot.slane %v3491, 4
        %v3587 = vrot.slane %v3491, 6
        %v3588 = vrot.slane %v3492, 2
        %v3589 = vrot.slane %v3492, 4
        %v3590 = vrot.slane %v3492, 6
        %v3591 = vrot.slane %v3493, 2
        %v3592 = vrot.slane %v3493, 6
        %v3593 = vrot.slane %v3494, 2
        %v3594 = vrot.slane %v3494, 4
        %v3595 = vrot.slane %v3494, 6
        %v3596 = vrot.slane %v3495, 2
        %v3597 = vrot.slane %v3495, 4
        %v3598 = vrot.slane %v3496, 2
        %v3599 = vrot.slane %v3496, 4
        %v3600 = vrot.slane %v3496, 6
        %v3601 = vrot.slane %v3497, 2
        %v3602 = vrot.slane %v3497, 4
        %v3603 = vrot.slane %v3497, 6
        %v3604 = vrot.slane %v3498, 2
        %v3605 = vrot.slane %v3498, 4
        %v3606 = vrot.slane %v3498, 6
        %v3607 = vrot.slane %v3499, 2
        %v3608 = vrot.slane %v3499, 4
        %v3609 = vrot.slane %v3499, 6
        %v3610 = vrot.slane %v3500, 4
        %v3611 = vrot.slane %v3500, 6
        %v3612 = vrot.slane %v3501, 2
        %v3613 = vrot.slane %v3501, 4
        %v3614 = vrot.slane %v3501, 6
        %v3615 = vrot.slane %v3502, 2
        %v3616 = vrot.slane %v3502, 6
        %v3617 = vrot.slane %v3503, 2
        %v3618 = vrot.slane %v3503, 4
        %v3619 = vrot.slane %v3503, 6
        %v3620 = vrot.slane %v3504, 2
        %v3621 = vrot.slane %v3504, 4
        %v3622 = vrot.slane %v3505, 2
        %v3623 = vrot.slane %v3505, 4
        %v3624 = vrot.slane %v3505, 6
        %v3625 = vrot.slane %v3506, 2
        %v3626 = vrot.slane %v3506, 4
        %v3627 = vrot.slane %v3506, 6
        %v3628 = vrot.slane %v3507, 2
        %v3629 = vrot.slane %v3507, 4
        %v3630 = vrot.slane %v3507, 6
        %v3631 = vrot.slane %v3508, 2
        %v3632 = vrot.slane %v3508, 4
        %v3633 = vrot.slane %v3508, 6
        %v3634 = vrot.slane %v3509, 4
        %v3635 = vrot.slane %v3509, 6
        %v3636 = vrot.slane %v3510, 2
        %v3637 = vrot.slane %v3510, 4
        %v3638 = vrot.slane %v3510, 6
        %v3639 = vrot.slane %v3511, 2
        %v3640 = vrot.slane %v3511, 6
        %v3641 = vrot.slane %v3512, 2
        %v3642 = vrot.slane %v3512, 4
        %v3643 = vrot.slane %v3512, 6
        %v3644 = vrot.slane %v3513, 2
        %v3645 = vrot.slane %v3513, 4
        %3646 = vst [vmem:[#allocation1] ss:$4 sm:$0xff] %v3478
        %s3647 = scalar_lea.vmem [#allocation1], 1
        %3648 = vst [vmem:[%s3647] ss:$4 sm:$0xff] %v3550
        %s3649 = scalar_lea.vmem [#allocation1], 2
        %3650 = vst [vmem:[%s3649] ss:$4 sm:$0xff] %v3551
        %s3651 = scalar_lea.vmem [#allocation1], 3
        %3652 = vst [vmem:[%s3651] ss:$4 sm:$0xff] %v3552
        %s3653 = scalar_lea.vmem [#allocation1], 32
        %3654 = vst [vmem:[%s3653] ss:$4 sm:$0xff] %v3479
        %s3655 = scalar_lea.vmem [#allocation1], 33
        %3656 = vst [vmem:[%s3655] ss:$4 sm:$0xff] %v3553
        %s3657 = scalar_lea.vmem [#allocation1], 34
        %3658 = vst [vmem:[%s3657] ss:$4 sm:$0xff] %v3554
        %s3659 = scalar_lea.vmem [#allocation1], 35
        %3660 = vst [vmem:[%s3659] ss:$4 sm:$0xff] %v3555
        %v3661 = vld.sshfl [vmem:[#allocation1] sm:$0xff pattern:$0x73625140]
        %v3662 = vld.sshfl [vmem:[#allocation1 + $0x20] sm:$0xff pattern:$0x73625140]
        %3663 = vst [vmem:[#allocation1] ss:$4 sm:$0xff] %v3556
        %3664 = vst [vmem:[%s3647] ss:$4 sm:$0xff] %v3557
        %3665 = vst [vmem:[%s3649] ss:$4 sm:$0xff] %v3558
        %3666 = vst [vmem:[%s3651] ss:$4 sm:$0xff] %v3481
        %3667 = vst [vmem:[%s3653] ss:$4 sm:$0xff] %v3559
        %3668 = vst [vmem:[%s3655] ss:$4 sm:$0xff] %v3560
        %3669 = vst [vmem:[%s3657] ss:$4 sm:$0xff] %v3561
        %3670 = vst [vmem:[%s3659] ss:$4 sm:$0xff] %v3482
        %v3671 = vld.sshfl [vmem:[#allocation1] sm:$0xff pattern:$0x73625140]
        %v3672 = vld.sshfl [vmem:[#allocation1 + $0x20] sm:$0xff pattern:$0x73625140]
        %3673 = vst [vmem:[#allocation1] ss:$4 sm:$0xff] %v3562
        %3674 = vst [vmem:[%s3647] ss:$4 sm:$0xff] %v3563
        %3675 = vst [vmem:[%s3649] ss:$4 sm:$0xff] %v3483
        %3676 = vst [vmem:[%s3651] ss:$4 sm:$0xff] %v3564
        %3677 = vst [vmem:[%s3653] ss:$4 sm:$0xff] %v3565
        %3678 = vst [vmem:[%s3655] ss:$4 sm:$0xff] %v3566
        %3679 = vst [vmem:[%s3657] ss:$4 sm:$0xff] %v3484
        %3680 = vst [vmem:[%s3659] ss:$4 sm:$0xff] %v3567
        %v3681 = vld.sshfl [vmem:[#allocation1] sm:$0xff pattern:$0x73625140]
        %v3682 = vld.sshfl [vmem:[#allocation1 + $0x20] sm:$0xff pattern:$0x73625140]
        %3683 = vst [vmem:[#allocation1] ss:$4 sm:$0xff] %v3568
        %3684 = vst [vmem:[%s3647] ss:$4 sm:$0xff] %v3485
        %3685 = vst [vmem:[%s3649] ss:$4 sm:$0xff] %v3569
        %3686 = vst [vmem:[%s3651] ss:$4 sm:$0xff] %v3570
        %3687 = vst [vmem:[%s3653] ss:$4 sm:$0xff] %v3571
        %3688 = vst [vmem:[%s3655] ss:$4 sm:$0xff] %v3486
        %3689 = vst [vmem:[%s3657] ss:$4 sm:$0xff] %v3572
        %3690 = vst [vmem:[%s3659] ss:$4 sm:$0xff] %v3573
        %v3691 = vld.sshfl [vmem:[#allocation1] sm:$0xff pattern:$0x73625140]
        %v3692 = vld.sshfl [vmem:[#allocation1 + $0x20] sm:$0xff pattern:$0x73625140]
        %3693 = vst [vmem:[#allocation1] ss:$4 sm:$0xff] %v3487
        %3694 = vst [vmem:[%s3647] ss:$4 sm:$0xff] %v3574
        %3695 = vst [vmem:[%s3649] ss:$4 sm:$0xff] %v3575
        %3696 = vst [vmem:[%s3651] ss:$4 sm:$0xff] %v3576
        %3697 = vst [vmem:[%s3653] ss:$4 sm:$0xff] %v3488
        %3698 = vst [vmem:[%s3655] ss:$4 sm:$0xff] %v3577
        %3699 = vst [vmem:[%s3657] ss:$4 sm:$0xff] %v3578
        %3700 = vst [vmem:[%s3659] ss:$4 sm:$0xff] %v3579
        %v3701 = vld.sshfl [vmem:[#allocation1] sm:$0xff pattern:$0x73625140]
        %v3702 = vld.sshfl [vmem:[#allocation1 + $0x20] sm:$0xff pattern:$0x73625140]
        %3703 = vst [vmem:[#allocation1] ss:$4 sm:$0xff] %v3580
        %3704 = vst [vmem:[%s3647] ss:$4 sm:$0xff] %v3581
        %3705 = vst [vmem:[%s3649] ss:$4 sm:$0xff] %v3582
        %3706 = vst [vmem:[%s3651] ss:$4 sm:$0xff] %v3490
        %3707 = vst [vmem:[%s3653] ss:$4 sm:$0xff] %v3583
        %3708 = vst [vmem:[%s3655] ss:$4 sm:$0xff] %v3584
        %3709 = vst [vmem:[%s3657] ss:$4 sm:$0xff] %v3585
        %3710 = vst [vmem:[%s3659] ss:$4 sm:$0xff] %v3491
        %v3711 = vld.sshfl [vmem:[#allocation1] sm:$0xff pattern:$0x73625140]
        %v3712 = vld.sshfl [vmem:[#allocation1 + $0x20] sm:$0xff pattern:$0x73625140]
        %3713 = vst [vmem:[#allocation1] ss:$4 sm:$0xff] %v3586
        %3714 = vst [vmem:[%s3647] ss:$4 sm:$0xff] %v3587
        %3715 = vst [vmem:[%s3649] ss:$4 sm:$0xff] %v3492
        %3716 = vst [vmem:[%s3651] ss:$4 sm:$0xff] %v3588
        %3717 = vst [vmem:[%s3653] ss:$4 sm:$0xff] %v3589
        %3718 = vst [vmem:[%s3655] ss:$4 sm:$0xff] %v3590
        %3719 = vst [vmem:[%s3657] ss:$4 sm:$0xff] %v3493
        %3720 = vst [vmem:[%s3659] ss:$4 sm:$0xff] %v3591
        %v3721 = vld.sshfl [vmem:[#allocation1] sm:$0xff pattern:$0x73625140]
        %v3722 = vld.sshfl [vmem:[#allocation1 + $0x20] sm:$0xff pattern:$0x73625140]
        %3723 = vst [vmem:[#allocation1] ss:$4 sm:$0xff] %v3592
        %3724 = vst [vmem:[%s3647] ss:$4 sm:$0xff] %v3494
        %3725 = vst [vmem:[%s3649] ss:$4 sm:$0xff] %v3593
        %3726 = vst [vmem:[%s3651] ss:$4 sm:$0xff] %v3594
        %3727 = vst [vmem:[%s3653] ss:$4 sm:$0xff] %v3595
        %3728 = vst [vmem:[%s3655] ss:$4 sm:$0xff] %v3495
        %3729 = vst [vmem:[%s3657] ss:$4 sm:$0xff] %v3596
        %3730 = vst [vmem:[%s3659] ss:$4 sm:$0xff] %v3597
        %v3731 = vld.sshfl [vmem:[#allocation1] sm:$0xff pattern:$0x73625140]
        %v3732 = vld.sshfl [vmem:[#allocation1 + $0x20] sm:$0xff pattern:$0x73625140]
        %3733 = vst [vmem:[#allocation1] ss:$4 sm:$0xff] %v3496
        %3734 = vst [vmem:[%s3647] ss:$4 sm:$0xff] %v3598
        %3735 = vst [vmem:[%s3649] ss:$4 sm:$0xff] %v3599
        %3736 = vst [vmem:[%s3651] ss:$4 sm:$0xff] %v3600
        %3737 = vst [vmem:[%s3653] ss:$4 sm:$0xff] %v3497
        %3738 = vst [vmem:[%s3655] ss:$4 sm:$0xff] %v3601
        %3739 = vst [vmem:[%s3657] ss:$4 sm:$0xff] %v3602
        %3740 = vst [vmem:[%s3659] ss:$4 sm:$0xff] %v3603
        %v3741 = vld.sshfl [vmem:[#allocation1] sm:$0xff pattern:$0x73625140]
        %v3742 = vld.sshfl [vmem:[#allocation1 + $0x20] sm:$0xff pattern:$0x73625140]
        %3743 = vst [vmem:[#allocation1] ss:$4 sm:$0xff] %v3604
        %3744 = vst [vmem:[%s3647] ss:$4 sm:$0xff] %v3605
        %3745 = vst [vmem:[%s3649] ss:$4 sm:$0xff] %v3606
        %3746 = vst [vmem:[%s3651] ss:$4 sm:$0xff] %v3499
        %3747 = vst [vmem:[%s3653] ss:$4 sm:$0xff] %v3607
        %3748 = vst [vmem:[%s3655] ss:$4 sm:$0xff] %v3608
        %3749 = vst [vmem:[%s3657] ss:$4 sm:$0xff] %v3609
        %3750 = vst [vmem:[%s3659] ss:$4 sm:$0xff] %v3500
        %v3751 = vld.sshfl [vmem:[#allocation1] sm:$0xff pattern:$0x73625140]
        %v3752 = vld.sshfl [vmem:[#allocation1 + $0x20] sm:$0xff pattern:$0x73625140]
        %3753 = vst [vmem:[#allocation1] ss:$4 sm:$0xff] %v3610
        %3754 = vst [vmem:[%s3647] ss:$4 sm:$0xff] %v3611
        %3755 = vst [vmem:[%s3649] ss:$4 sm:$0xff] %v3501
        %3756 = vst [vmem:[%s3651] ss:$4 sm:$0xff] %v3612
        %3757 = vst [vmem:[%s3653] ss:$4 sm:$0xff] %v3613
        %3758 = vst [vmem:[%s3655] ss:$4 sm:$0xff] %v3614
        %3759 = vst [vmem:[%s3657] ss:$4 sm:$0xff] %v3502
        %3760 = vst [vmem:[%s3659] ss:$4 sm:$0xff] %v3615
        %v3761 = vld.sshfl [vmem:[#allocation1] sm:$0xff pattern:$0x73625140]
        %v3762 = vld.sshfl [vmem:[#allocation1 + $0x20] sm:$0xff pattern:$0x73625140]
        %3763 = vst [vmem:[#allocation1] ss:$4 sm:$0xff] %v3616
        %3764 = vst [vmem:[%s3647] ss:$4 sm:$0xff] %v3503
        %3765 = vst [vmem:[%s3649] ss:$4 sm:$0xff] %v3617
        %3766 = vst [vmem:[%s3651] ss:$4 sm:$0xff] %v3618
        %3767 = vst [vmem:[%s3653] ss:$4 sm:$0xff] %v3619
        %3768 = vst [vmem:[%s3655] ss:$4 sm:$0xff] %v3504
        %3769 = vst [vmem:[%s3657] ss:$4 sm:$0xff] %v3620
        %3770 = vst [vmem:[%s3659] ss:$4 sm:$0xff] %v3621
        %v3771 = vld.sshfl [vmem:[#allocation1] sm:$0xff pattern:$0x73625140]
        %v3772 = vld.sshfl [vmem:[#allocation1 + $0x20] sm:$0xff pattern:$0x73625140]
        %3773 = vst [vmem:[#allocation1] ss:$4 sm:$0xff] %v3505
        %3774 = vst [vmem:[%s3647] ss:$4 sm:$0xff] %v3622
        %3775 = vst [vmem:[%s3649] ss:$4 sm:$0xff] %v3623
        %3776 = vst [vmem:[%s3651] ss:$4 sm:$0xff] %v3624
        %3777 = vst [vmem:[%s3653] ss:$4 sm:$0xff] %v3506
        %3778 = vst [vmem:[%s3655] ss:$4 sm:$0xff] %v3625
        %3779 = vst [vmem:[%s3657] ss:$4 sm:$0xff] %v3626
        %3780 = vst [vmem:[%s3659] ss:$4 sm:$0xff] %v3627
        %v3781 = vld.sshfl [vmem:[#allocation1] sm:$0xff pattern:$0x73625140]
        %v3782 = vld.sshfl [vmem:[#allocation1 + $0x20] sm:$0xff pattern:$0x73625140]
        %3783 = vst [vmem:[#allocation1] ss:$4 sm:$0xff] %v3628
        %3784 = vst [vmem:[%s3647] ss:$4 sm:$0xff] %v3629
        %3785 = vst [vmem:[%s3649] ss:$4 sm:$0xff] %v3630
        %3786 = vst [vmem:[%s3651] ss:$4 sm:$0xff] %v3508
        %3787 = vst [vmem:[%s3653] ss:$4 sm:$0xff] %v3631
        %3788 = vst [vmem:[%s3655] ss:$4 sm:$0xff] %v3632
        %3789 = vst [vmem:[%s3657] ss:$4 sm:$0xff] %v3633
        %3790 = vst [vmem:[%s3659] ss:$4 sm:$0xff] %v3509
        %v3791 = vld.sshfl [vmem:[#allocation1] sm:$0xff pattern:$0x73625140]
        %v3792 = vld.sshfl [vmem:[#allocation1 + $0x20] sm:$0xff pattern:$0x73625140]
        %3793 = vst [vmem:[#allocation1] ss:$4 sm:$0xff] %v3634
        %3794 = vst [vmem:[%s3647] ss:$4 sm:$0xff] %v3635
        %3795 = vst [vmem:[%s3649] ss:$4 sm:$0xff] %v3510
        %3796 = vst [vmem:[%s3651] ss:$4 sm:$0xff] %v3636
        %3797 = vst [vmem:[%s3653] ss:$4 sm:$0xff] %v3637
        %3798 = vst [vmem:[%s3655] ss:$4 sm:$0xff] %v3638
        %3799 = vst [vmem:[%s3657] ss:$4 sm:$0xff] %v3511
        %3800 = vst [vmem:[%s3659] ss:$4 sm:$0xff] %v3639
        %v3801 = vld.sshfl [vmem:[#allocation1] sm:$0xff pattern:$0x73625140]
        %v3802 = vld.sshfl [vmem:[#allocation1 + $0x20] sm:$0xff pattern:$0x73625140]
        %3803 = vst [vmem:[#allocation1] ss:$4 sm:$0xff] %v3640
        %3804 = vst [vmem:[%s3647] ss:$4 sm:$0xff] %v3512
        %3805 = vst [vmem:[%s3649] ss:$4 sm:$0xff] %v3641
        %3806 = vst [vmem:[%s3651] ss:$4 sm:$0xff] %v3642
        %3807 = vst [vmem:[%s3653] ss:$4 sm:$0xff] %v3643
        %3808 = vst [vmem:[%s3655] ss:$4 sm:$0xff] %v3513
        %3809 = vst [vmem:[%s3657] ss:$4 sm:$0xff] %v3644
        %3810 = vst [vmem:[%s3659] ss:$4 sm:$0xff] %v3645
        %v3811 = vld.sshfl [vmem:[#allocation1] sm:$0xff pattern:$0x73625140]
        %v3812 = vld.sshfl [vmem:[#allocation1 + $0x20] sm:$0xff pattern:$0x73625140]
        %3813 = vrot.lane.b32.xlu0 %v3661, 8
        %v3814 = vpop.permute.xlu0 %3813
        %3815 = vrot.lane.b32.xlu0 %v3662, 8
        %v3816 = vpop.permute.xlu0 %3815
        %3817 = vrot.lane.b32.xlu0 %v3671, 8
        %v3818 = vpop.permute.xlu0 %3817
        %3819 = vrot.lane.b32.xlu0 %v3672, 8
        %v3820 = vpop.permute.xlu0 %3819
        %3821 = vrot.lane.b32.xlu0 %v3681, 8
        %v3822 = vpop.permute.xlu0 %3821
        %3823 = vrot.lane.b32.xlu0 %v3682, 8
        %v3824 = vpop.permute.xlu0 %3823
        %3825 = vrot.lane.b32.xlu0 %v3691, 8
        %v3826 = vpop.permute.xlu0 %3825
        %3827 = vrot.lane.b32.xlu0 %v3692, 8
        %v3828 = vpop.permute.xlu0 %3827
        %3829 = vrot.lane.b32.xlu0 %v3701, 8
        %v3830 = vpop.permute.xlu0 %3829
        %3831 = vrot.lane.b32.xlu0 %v3702, 8
        %v3832 = vpop.permute.xlu0 %3831
        %3833 = vrot.lane.b32.xlu0 %v3711, 8
        %v3834 = vpop.permute.xlu0 %3833
        %3835 = vrot.lane.b32.xlu0 %v3712, 8
        %v3836 = vpop.permute.xlu0 %3835
        %3837 = vrot.lane.b32.xlu0 %v3721, 8
        %v3838 = vpop.permute.xlu0 %3837
        %3839 = vrot.lane.b32.xlu0 %v3722, 8
        %v3840 = vpop.permute.xlu0 %3839
        %3841 = vrot.lane.b32.xlu0 %v3731, 8
        %v3842 = vpop.permute.xlu0 %3841
        %3843 = vrot.lane.b32.xlu0 %v3732, 8
        %v3844 = vpop.permute.xlu0 %3843
        %3845 = vrot.lane.b32.xlu0 %v3741, 8
        %v3846 = vpop.permute.xlu0 %3845
        %3847 = vrot.lane.b32.xlu0 %v3742, 8
        %v3848 = vpop.permute.xlu0 %3847
        %3849 = vrot.lane.b32.xlu0 %v3751, 8
        %v3850 = vpop.permute.xlu0 %3849
        %3851 = vrot.lane.b32.xlu0 %v3752, 8
        %v3852 = vpop.permute.xlu0 %3851
        %3853 = vrot.lane.b32.xlu0 %v3761, 8
        %v3854 = vpop.permute.xlu0 %3853
        %3855 = vrot.lane.b32.xlu0 %v3762, 8
        %v3856 = vpop.permute.xlu0 %3855
        %3857 = vrot.lane.b32.xlu0 %v3771, 8
        %v3858 = vpop.permute.xlu0 %3857
        %3859 = vrot.lane.b32.xlu0 %v3772, 8
        %v3860 = vpop.permute.xlu0 %3859
        %3861 = vrot.lane.b32.xlu0 %v3781, 8
        %v3862 = vpop.permute.xlu0 %3861
        %3863 = vrot.lane.b32.xlu0 %v3782, 8
        %v3864 = vpop.permute.xlu0 %3863
        %3865 = vrot.lane.b32.xlu0 %v3791, 8
        %v3866 = vpop.permute.xlu0 %3865
        %3867 = vrot.lane.b32.xlu0 %v3792, 8
        %v3868 = vpop.permute.xlu0 %3867
        %3869 = vrot.lane.b32.xlu0 %v3801, 8
        %v3870 = vpop.permute.xlu0 %3869
        %3871 = vrot.lane.b32.xlu0 %v3802, 8
        %v3872 = vpop.permute.xlu0 %3871
        %3873 = vrot.lane.b32.xlu0 %v3811, 8
        %v3874 = vpop.permute.xlu0 %3873
        %3875 = vrot.lane.b32.xlu0 %v3812, 8
        %v3876 = vpop.permute.xlu0 %3875
        %v3909 = vsel %vm326, %v784, %v3814
        %v3910 = vsel %vm326, %v785, %v3816
        %v3911 = vsel %vm326, %v786, %v3818
        %v3912 = vsel %vm326, %v787, %v3820
        %v3913 = vsel %vm326, %v788, %v3822
        %v3914 = vsel %vm326, %v789, %v3824
        %v3915 = vsel %vm326, %v790, %v3826
        %v3916 = vsel %vm326, %v791, %v3828
        %v3917 = vsel %vm326, %v792, %v3830
        %v3918 = vsel %vm326, %v793, %v3832
        %v3919 = vsel %vm326, %v794, %v3834
        %v3920 = vsel %vm326, %v795, %v3836
        %v3921 = vsel %vm326, %v796, %v3838
        %v3922 = vsel %vm326, %v797, %v3840
        %v3923 = vsel %vm326, %v798, %v3842
        %v3924 = vsel %vm326, %v799, %v3844
        %v3925 = vsel %vm326, %v800, %v3846
        %v3926 = vsel %vm326, %v801, %v3848
        %v3927 = vsel %vm326, %v802, %v3850
        %v3928 = vsel %vm326, %v803, %v3852
        %v3929 = vsel %vm326, %v804, %v3854
        %v3930 = vsel %vm326, %v805, %v3856
        %v3931 = vsel %vm326, %v806, %v3858
        %v3932 = vsel %vm326, %v807, %v3860
        %v3933 = vsel %vm326, %v808, %v3862
        %v3934 = vsel %vm326, %v809, %v3864
        %v3935 = vsel %vm326, %v810, %v3866
        %v3936 = vsel %vm326, %v811, %v3868
        %v3937 = vsel %vm326, %v812, %v3870
        %v3938 = vsel %vm326, %v813, %v3872
        %v3939 = vsel %vm326, %v814, %v3874
        %v3940 = vsel %vm326, %v815, %v3876
        %vm3941 = vcmask 130048
        %3942 = vst.msk [vmem:[%s271] sm:$0xff] %vm3941, %v3909
        %3943 = vst.msk [vmem:[%s271 + $0x8] sm:$0xff] %vm3941, %v3910
        %3944 = vst.msk [vmem:[%s271 + $0x10] sm:$0xff] %vm3941, %v3911
        %3945 = vst.msk [vmem:[%s271 + $0x18] sm:$0xff] %vm3941, %v3912
        %3946 = vst.msk [vmem:[%s271 + $0x20] sm:$0xff] %vm3941, %v3913
        %3947 = vst.msk [vmem:[%s271 + $0x28] sm:$0xff] %vm3941, %v3914
        %3948 = vst.msk [vmem:[%s271 + $0x30] sm:$0xff] %vm3941, %v3915
        %3949 = vst.msk [vmem:[%s271 + $0x38] sm:$0xff] %vm3941, %v3916
        %3950 = vst.msk [vmem:[%s271 + $0x40] sm:$0xff] %vm3941, %v3917
        %3951 = vst.msk [vmem:[%s271 + $0x48] sm:$0xff] %vm3941, %v3918
        %3952 = vst.msk [vmem:[%s271 + $0x50] sm:$0xff] %vm3941, %v3919
        %3953 = vst.msk [vmem:[%s271 + $0x58] sm:$0xff] %vm3941, %v3920
        %3954 = vst.msk [vmem:[%s271 + $0x60] sm:$0xff] %vm3941, %v3921
        %3955 = vst.msk [vmem:[%s271 + $0x68] sm:$0xff] %vm3941, %v3922
        %3956 = vst.msk [vmem:[%s271 + $0x70] sm:$0xff] %vm3941, %v3923
        %3957 = vst.msk [vmem:[%s271 + $0x78] sm:$0xff] %vm3941, %v3924
        %3958 = vst.msk [vmem:[%s271 + $0x80] sm:$0xff] %vm3941, %v3925
        %3959 = vst.msk [vmem:[%s271 + $0x88] sm:$0xff] %vm3941, %v3926
        %3960 = vst.msk [vmem:[%s271 + $0x90] sm:$0xff] %vm3941, %v3927
        %3961 = vst.msk [vmem:[%s271 + $0x98] sm:$0xff] %vm3941, %v3928
        %3962 = vst.msk [vmem:[%s271 + $0xa0] sm:$0xff] %vm3941, %v3929
        %3963 = vst.msk [vmem:[%s271 + $0xa8] sm:$0xff] %vm3941, %v3930
        %3964 = vst.msk [vmem:[%s271 + $0xb0] sm:$0xff] %vm3941, %v3931
        %3965 = vst.msk [vmem:[%s271 + $0xb8] sm:$0xff] %vm3941, %v3932
        %3966 = vst.msk [vmem:[%s271 + $0xc0] sm:$0xff] %vm3941, %v3933
        %3967 = vst.msk [vmem:[%s271 + $0xc8] sm:$0xff] %vm3941, %v3934
        %3968 = vst.msk [vmem:[%s271 + $0xd0] sm:$0xff] %vm3941, %v3935
        %3969 = vst.msk [vmem:[%s271 + $0xd8] sm:$0xff] %vm3941, %v3936
        %3970 = vst.msk [vmem:[%s271 + $0xe0] sm:$0xff] %vm3941, %v3937
        %3971 = vst.msk [vmem:[%s271 + $0xe8] sm:$0xff] %vm3941, %v3938
        %3972 = vst.msk [vmem:[%s271 + $0xf0] sm:$0xff] %vm3941, %v3939
        %3973 = vst.msk [vmem:[%s271 + $0xf8] sm:$0xff] %vm3941, %v3940
        %s3974 = sand.u32 %s181, 1
        %s3975 = scalar_lea.sflag [#allocation4], %s3974
        %s3976 = sand.u32 %s181, 1
        %s3977 = smul.addr %s3976, 256
        %s3978 = scalar_lea.vmem [#allocation3], %s3977
        // Predicated region
        $region49: #{tpu_custom_call.1} parent=47 // pred_check
          %p3979 = pneg %p191
        $region50: #{tpu_custom_call.1} parent=47 // pred_check_branch
          %3981 = sbr.rel (%p3979) target = $region52
        $region51: #{tpu_custom_call.1} parent=47 // pred_region
          %3983 = vsyncadd %s3975, 0
          %s3984 = smul.addr %s21, 32
          %s3985 = smul.addr %s3984, 8
          %s3986 = scalar_lea.hbm %s7, %s3985
          %s3987 = sshll.u32 %s3978, 4
          %s3988 = int_to_ptr.vmem [resolvable:$true] %s3987
          %s3989 = sshll.u32 %s3986, 4
          %s3990 = int_to_ptr.hbm [resolvable:$true] %s3989
          %3995 = dma.vmem_to_hbm [thread:$0]  %s3988, 4096, %s3990, %s3975, 128, 128, 8
        $region52: #{tpu_custom_call.1} parent=47 // pred_fallthru
          _
      $region48: #{tpu_custom_call.1} parent=5 // pred_fallthru
        _
      %p3996 = scmp.le.s32.totalorder 2, %s16
      // Predicated region
      $region53: #{tpu_custom_call.1} parent=5 // pred_check
        %p3997 = pneg %p3996
      $region54: #{tpu_custom_call.1} parent=5 // pred_check_branch
        %3999 = sbr.rel (%p3997) target = $region56
      $region55: #{tpu_custom_call.1} parent=5 // pred_region
        %s4000 = ssub.s32 %s16, 2
        // Predicated region
        $region57: #{tpu_custom_call.1} parent=55 // pred_check
          %p4001 = pneg %p197
        $region58: #{tpu_custom_call.1} parent=55 // pred_check_branch
          %4003 = sbr.rel (%p4001) target = $region60
        $region59: #{tpu_custom_call.1} parent=55 // pred_region
          %s4004 = sand.u32 %s182, 1
          %s4005 = scalar_lea.sflag [#allocation4], %s4004
          %s4006 = sand.u32 %s182, 1
          %s4007 = smul.addr %s4006, 256
          %s4008 = scalar_lea.vmem [#allocation3], %s4007
          %4010 = dma.done %s4005, 4096
        $region60: #{tpu_custom_call.1} parent=55 // pred_fallthru
          _
      $region56: #{tpu_custom_call.1} parent=5 // pred_fallthru
        _
    $region6: #{tpu_custom_call.1} parent=1 // loop_footer
      %s20 = sadd.s32 1, %s16
    $region7: #{tpu_custom_call.1} parent=1 // loop_footer_branch
      %15 = sbr.rel target = $region3
    $region8: #{tpu_custom_call.1} parent=1 // loop_exit
      _
    %4011 = vsyncpa [#allocation4], 1
    %s4012 = scalar_lea.sflag [#allocation4], 1
    %4013 = vsyncpa %s4012, 1

</llo_original>
